<compile_context>
chip_gen: v6e
topology: v6e:2x2x1
jax: 0.10.0
libtpu: 0.0.40
codegen_flags: <defaults>
</compile_context>

<pallas_src>
import numpy as np
import jax
import jax.numpy as jnp
from jax.experimental import pallas as pl
from jax.experimental.pallas import tpu as pltpu

NEG_SLOPE = 0.2      # nn.LeakyReLU(0.2) in the module
BN_EPS = 1e-5        # nn.BatchNorm2d default eps


def _leaky(x, slope=NEG_SLOPE):
    return jnp.where(x > 0, x, slope * x)


# ---------------------------------------------------------------------------
# Host-side packing: 3x3 conv (OIHW) + eval-mode BN  ->  3 banded lane-dense
# weight matrices (one per ky tap) of shape (W*Cin, W*Cout) and a lane-dense
# bias row of shape (1, W*Cout).  The band encodes the kx taps AND the zero
# padding along W, so the kernel never needs a W-padded buffer.
# ---------------------------------------------------------------------------
def pack_banded_conv(w, gamma, beta, mean, var, W):
    Cout, Cin = w.shape[0], w.shape[1]
    scale = gamma / jnp.sqrt(var + BN_EPS)          # (Cout,)
    shift = beta - mean * scale                     # (Cout,)

    w_in = jnp.arange(W)
    w_out = jnp.arange(W)
    kx = w_in[:, None] - w_out[None, :] + 1         # (W, W) tap index
    valid = (kx >= 0) & (kx <= 2)
    kx_c = jnp.clip(kx, 0, 2)

    bands = []
    for ky in range(3):
        wk = jnp.transpose(w[:, :, ky, :], (2, 1, 0))        # (3[kx], Cin, Cout)
        band = jnp.where(valid[:, :, None, None], wk[kx_c], 0.0)   # (W_in, W_out, Cin, Cout)
        band = jnp.transpose(band, (0, 2, 1, 3)).reshape(W * Cin, W * Cout)
        bands.append(band)
    wb = jnp.stack(bands, axis=0)                             # (3, W*Cin, W*Cout)
    wb = wb * jnp.tile(scale, W)[None, None, :]               # fold BN scale (per out lane)
    b = jnp.tile(shift, W).reshape(1, W * Cout)               # folded BN shift, lane-dense
    return wb, b


# ---------------------------------------------------------------------------
# Pallas kernel: fused conv1+bn1+leaky -> conv2+bn2 -> +identity -> leaky
# All buffers are lane-dense (last dim = W*C).
# ---------------------------------------------------------------------------
def basic_block_kernel(xp_ref, w1_ref, b1_ref, w2_ref, b2_ref, out_ref, y1pad_ref):
    # xp_ref:    (Hp, W*Cin)        H-padded, lane-dense input (one image)
    # w1_ref:    (3, W*Cin, W*Cin)  banded conv1 weights (BN1 folded), one per ky
    # b1_ref:    (1, W*Cin)         folded BN1 shift (lane-dense)
    # w2_ref:    (3, W*Cin, W*Cout) banded conv2 weights (BN2 folded)
    # b2_ref:    (1, W*Cout)        folded BN2 shift
    # out_ref:   (H, W*Cout)        lane-dense output tile
    # y1pad_ref: VMEM scratch (Hp, W*Cin) for the H-padded intermediate
    Hp, WC_in = y1pad_ref.shape
    H = Hp - 2
    f32 = jnp.float32

    # ---- conv1 (3 banded matmuls, one per ky tap) + folded BN1 + LeakyReLU(0.2) ----
    y1 = (jnp.dot(xp_ref[0:H, :],     w1_ref[0], preferred_element_type=f32)
          + jnp.dot(xp_ref[1:H + 1, :], w1_ref[1], preferred_element_type=f32)
          + jnp.dot(xp_ref[2:H + 2, :], w1_ref[2], preferred_element_type=f32)
          + b1_ref[...])
    y1 = _leaky(y1)                                            # (H, W*Cin)

    # ---- H-pad the intermediate in VMEM scratch: only the 2 border rows are zeroed ----
    # (NOT gated on program_id: each core owns its scratch instance under "parallel".)
    y1pad_ref[0:1, :] = jnp.zeros((1, WC_in), f32)
    y1pad_ref[Hp - 1:Hp, :] = jnp.zeros((1, WC_in), f32)
    y1pad_ref[1:H + 1, :] = y1

    # ---- conv2 (3 banded matmuls fed from VMEM scratch) + folded BN2 ----
    y2 = (jnp.dot(y1pad_ref[0:H, :],     w2_ref[0], preferred_element_type=f32)
          + jnp.dot(y1pad_ref[1:H + 1, :], w2_ref[1], preferred_element_type=f32)
          + jnp.dot(y1pad_ref[2:H + 2, :], w2_ref[2], preferred_element_type=f32)
          + b2_ref[...])                                       # (H, W*Cout)

    # ---- residual add (identity = interior rows of H-padded input) + LeakyReLU(0.2) ----
    y = _leaky(y2 + xp_ref[1:H + 1, :])
    out_ref[...] = y.astype(out_ref.dtype)                     # full-width lane-dense store


# ---------------------------------------------------------------------------
# Wrapper
# ---------------------------------------------------------------------------
def basic_block_forward(x, params):
    """x: (B, Cin, H, W) NCHW float32.  stride=1, upsample=None (module defaults)."""
    B, Cin, H, W = x.shape
    Cout = params['w2'].shape[0]
    assert Cout == Cin, "upsample=None requires planes == inplanes for the residual add"
    WC_in, WC_out = W * Cin, W * Cout
    Hp = H + 2

    # NCHW -> lane-dense (B, H, W*Cin); pad H only (W padding is encoded in the bands)
    x_ld = jnp.transpose(x, (0, 2, 3, 1)).reshape(B, H, WC_in)
    xp = jnp.pad(x_ld, ((0, 0), (1, 1), (0, 0)))

    w1b, b1 = pack_banded_conv(params['w1'], *params['bn1'], W=W)
    w2b, b2 = pack_banded_conv(params['w2'], *params['bn2'], W=W)

    out = pl.pallas_call(
        basic_block_kernel,
        out_shape=jax.ShapeDtypeStruct((B, H, WC_out), x.dtype),
        grid_spec=pltpu.PrefetchScalarGridSpec(
            num_scalar_prefetch=0,
            grid=(B,),
            in_specs=[
                pl.BlockSpec((None, Hp, WC_in), lambda b: (b, 0, 0)),
                pl.BlockSpec((3, WC_in, WC_in), lambda b: (0, 0, 0)),
                pl.BlockSpec((1, WC_in), lambda b: (0, 0)),
                pl.BlockSpec((3, WC_in, WC_out), lambda b: (0, 0, 0)),
                pl.BlockSpec((1, WC_out), lambda b: (0, 0)),
            ],
            out_specs=pl.BlockSpec((None, H, WC_out), lambda b: (b, 0, 0)),
            scratch_shapes=[pltpu.VMEM((Hp, WC_in), jnp.float32)],
        ),
        compiler_params=pltpu.CompilerParams(
            dimension_semantics=("parallel",),
            vmem_limit_bytes=32 * 1024 * 1024,
        ),
    )(xp, w1b, b1, w2b, b2)

    # lane-dense (B, H, W*Cout) -> NCHW
    return jnp.transpose(out.reshape(B, H, W, Cout), (0, 3, 1, 2))


# ---------------------------------------------------------------------------
# Pure-JAX reference (for correctness check)
# ---------------------------------------------------------------------------
def basic_block_reference(x, params):
    def conv3x3(z, w):
        return jax.lax.conv_general_dilated(
            z, w, window_strides=(1, 1), padding=((1, 1), (1, 1)),
            dimension_numbers=('NCHW', 'OIHW', 'NCHW'))

    def bn(z, gamma, beta, mean, var):
        s = gamma / jnp.sqrt(var + BN_EPS)
        return z * s[None, :, None, None] + (beta - mean * s)[None, :, None, None]

    out = conv3x3(x, params['w1'])
    out = _leaky(bn(out, *params['bn1']))
    out = conv3x3(out, params['w2'])
    out = bn(out, *params['bn2'])
    return _leaky(out + x)


# ---------------------------------------------------------------------------
# Deterministic parameter init (matches PyTorch module shapes, eval-mode BN)
# ---------------------------------------------------------------------------
def init_params(key, inplanes, planes):
    ks = jax.random.split(key, 4)

    def bn_params(k, c):
        k1, k2, k3, k4 = jax.random.split(k, 4)
        gamma = 1.0 + 0.1 * jax.random.normal(k1, (c,), jnp.float32)
        beta = 0.1 * jax.random.normal(k2, (c,), jnp.float32)
        mean = 0.1 * jax.random.normal(k3, (c,), jnp.float32)
        var = 1.0 + 0.2 * jax.random.uniform(k4, (c,), jnp.float32)
        return gamma, beta, mean, var

    return {
        'w1': 0.1 * jax.random.normal(ks[0], (inplanes, inplanes, 3, 3), jnp.float32),
        'bn1': bn_params(ks[1], inplanes),
        'w2': 0.1 * jax.random.normal(ks[2], (planes, inplanes, 3, 3), jnp.float32),
        'bn2': bn_params(ks[3], planes),
    }


if __name__ == "__main__":
    key = jax.random.PRNGKey(0)
    k_x, k_p = jax.random.split(key)

    B, C, H, W = 2, 32, 16, 16            # inplanes = planes = 32
    x = jax.random.normal(k_x, (B, C, H, W), jnp.float32)
    params = init_params(k_p, C, C)

    out = jax.block_until_ready(basic_block_forward(x, params))
    ref = jax.block_until_ready(basic_block_reference(x, params))

    assert out.shape == (B, C, H, W)
    np.testing.assert_allclose(np.asarray(out), np.asarray(ref), rtol=1e-4, atol=1e-4)
    print("KERNEL_OK")
</pallas_src>

<mosaic_0001>
module attributes {stable_mosaic.version = 11 : i64} {
  func.func @basic_block_kernel(%arg0: i32, %arg1: memref<1x18x512xf32, #tpu.memory_space<vmem>>, %arg2: memref<3x512x512xf32, #tpu.memory_space<vmem>>, %arg3: memref<1x512xf32, #tpu.memory_space<vmem>>, %arg4: memref<3x512x512xf32, #tpu.memory_space<vmem>>, %arg5: memref<1x512xf32, #tpu.memory_space<vmem>>, %arg6: memref<1x16x512xf32, #tpu.memory_space<vmem>>, %arg7: memref<18x512xf32, #tpu.memory_space<vmem>>) attributes {dimension_semantics = [#tpu.dimension_semantics<parallel>], iteration_bounds = array<i64: 2>, scalar_prefetch = 0 : i64, scratch_operands = 1 : i64, tpu.core_type = #tpu.core_type<tc>, window_params = [{transform_indices = @transform_0, window_bounds = array<i64: 1, 18, 512>}, {pipeline_mode = #tpu.pipeline_mode<synchronous>, transform_indices = @transform_1, window_bounds = array<i64: 3, 512, 512>}, {pipeline_mode = #tpu.pipeline_mode<synchronous>, transform_indices = @transform_2, window_bounds = array<i64: 1, 512>}, {pipeline_mode = #tpu.pipeline_mode<synchronous>, transform_indices = @transform_3, window_bounds = array<i64: 3, 512, 512>}, {pipeline_mode = #tpu.pipeline_mode<synchronous>, transform_indices = @transform_4, window_bounds = array<i64: 1, 512>}, {transform_indices = @transform_5, window_bounds = array<i64: 1, 16, 512>}]} {
    %c0 = arith.constant 0 : index
    %c0_0 = arith.constant 0 : index
    %c0_1 = arith.constant 0 : index
    %0 = vector.load %arg1[%c0, %c0_0, %c0_1] : memref<1x18x512xf32, #tpu.memory_space<vmem>>, vector<1x16x512xf32>
    %1 = vector.shape_cast %0 : vector<1x16x512xf32> to vector<16x512xf32>
    %c0_2 = arith.constant 0 : index
    %c0_3 = arith.constant 0 : index
    %c0_4 = arith.constant 0 : index
    %2 = vector.load %arg2[%c0_2, %c0_3, %c0_4] : memref<3x512x512xf32, #tpu.memory_space<vmem>>, vector<1x512x512xf32>
    %3 = vector.shape_cast %2 : vector<1x512x512xf32> to vector<512x512xf32>
    %cst = arith.constant dense<0.000000e+00> : vector<16x512xf32>
    %4 = tpu.matmul %1, %3, %cst {dimension_numbers = #tpu.dot_dimension_numbers<[1], [0], [0], [1], [0, 0, 1, 1], [], []>} : vector<16x512xf32>, vector<512x512xf32>, vector<16x512xf32> -> vector<16x512xf32>
    %c0_5 = arith.constant 0 : index
    %c1 = arith.constant 1 : index
    %c0_6 = arith.constant 0 : index
    %5 = vector.load %arg1[%c0_5, %c1, %c0_6] : memref<1x18x512xf32, #tpu.memory_space<vmem>>, vector<1x16x512xf32>
    %6 = vector.shape_cast %5 : vector<1x16x512xf32> to vector<16x512xf32>
    %c1_7 = arith.constant 1 : index
    %c0_8 = arith.constant 0 : index
    %c0_9 = arith.constant 0 : index
    %7 = vector.load %arg2[%c1_7, %c0_8, %c0_9] : memref<3x512x512xf32, #tpu.memory_space<vmem>>, vector<1x512x512xf32>
    %8 = vector.shape_cast %7 : vector<1x512x512xf32> to vector<512x512xf32>
    %cst_10 = arith.constant dense<0.000000e+00> : vector<16x512xf32>
    %9 = tpu.matmul %6, %8, %cst_10 {dimension_numbers = #tpu.dot_dimension_numbers<[1], [0], [0], [1], [0, 0, 1, 1], [], []>} : vector<16x512xf32>, vector<512x512xf32>, vector<16x512xf32> -> vector<16x512xf32>
    %10 = arith.addf %4, %9 : vector<16x512xf32>
    %c0_11 = arith.constant 0 : index
    %c2 = arith.constant 2 : index
    %c0_12 = arith.constant 0 : index
    %11 = vector.load %arg1[%c0_11, %c2, %c0_12] : memref<1x18x512xf32, #tpu.memory_space<vmem>>, vector<1x16x512xf32>
    %12 = vector.shape_cast %11 : vector<1x16x512xf32> to vector<16x512xf32>
    %c2_13 = arith.constant 2 : index
    %c0_14 = arith.constant 0 : index
    %c0_15 = arith.constant 0 : index
    %13 = vector.load %arg2[%c2_13, %c0_14, %c0_15] : memref<3x512x512xf32, #tpu.memory_space<vmem>>, vector<1x512x512xf32>
    %14 = vector.shape_cast %13 : vector<1x512x512xf32> to vector<512x512xf32>
    %cst_16 = arith.constant dense<0.000000e+00> : vector<16x512xf32>
    %15 = tpu.matmul %12, %14, %cst_16 {dimension_numbers = #tpu.dot_dimension_numbers<[1], [0], [0], [1], [0, 0, 1, 1], [], []>} : vector<16x512xf32>, vector<512x512xf32>, vector<16x512xf32> -> vector<16x512xf32>
    %16 = arith.addf %10, %15 : vector<16x512xf32>
    %c0_17 = arith.constant 0 : index
    %c0_18 = arith.constant 0 : index
    %17 = vector.load %arg3[%c0_17, %c0_18] : memref<1x512xf32, #tpu.memory_space<vmem>>, vector<1x512xf32>
    %18 = vector.broadcast %17 : vector<1x512xf32> to vector<16x512xf32>
    %19 = arith.addf %16, %18 : vector<16x512xf32>
    %cst_19 = arith.constant 0.000000e+00 : f32
    %20 = vector.broadcast %cst_19 : f32 to vector<16x512xf32>
    %21 = arith.cmpf ogt, %19, %20 : vector<16x512xf32>
    %cst_20 = arith.constant 2.000000e-01 : f32
    %22 = vector.broadcast %cst_20 : f32 to vector<16x512xf32>
    %23 = arith.mulf %22, %19 : vector<16x512xf32>
    %24 = arith.select %21, %19, %23 : vector<16x512xi1>, vector<16x512xf32>
    %cst_21 = arith.constant 0.000000e+00 : f32
    %25 = vector.broadcast %cst_21 : f32 to vector<1x512xf32>
    %c0_22 = arith.constant 0 : index
    %c0_23 = arith.constant 0 : index
    %26 = vector.load %arg7[%c0_22, %c0_23] : memref<18x512xf32, #tpu.memory_space<vmem>>, vector<1x512xf32>
    tpu.vector_store %arg7[%c0_22, %c0_23], %25 {strides = array<i32>} : memref<18x512xf32, #tpu.memory_space<vmem>>, vector<1x512xf32>,
    %cst_24 = arith.constant 0.000000e+00 : f32
    %27 = vector.broadcast %cst_24 : f32 to vector<1x512xf32>
    %c17 = arith.constant 17 : index
    %c0_25 = arith.constant 0 : index
    %28 = vector.load %arg7[%c17, %c0_25] : memref<18x512xf32, #tpu.memory_space<vmem>>, vector<1x512xf32>
    tpu.vector_store %arg7[%c17, %c0_25], %27 {strides = array<i32>} : memref<18x512xf32, #tpu.memory_space<vmem>>, vector<1x512xf32>,
    %c1_26 = arith.constant 1 : index
    %c0_27 = arith.constant 0 : index
    %29 = vector.load %arg7[%c1_26, %c0_27] : memref<18x512xf32, #tpu.memory_space<vmem>>, vector<16x512xf32>
    tpu.vector_store %arg7[%c1_26, %c0_27], %24 {strides = array<i32>} : memref<18x512xf32, #tpu.memory_space<vmem>>, vector<16x512xf32>,
    %c0_28 = arith.constant 0 : index
    %c0_29 = arith.constant 0 : index
    %30 = vector.load %arg7[%c0_28, %c0_29] : memref<18x512xf32, #tpu.memory_space<vmem>>, vector<16x512xf32>
    %c0_30 = arith.constant 0 : index
    %c0_31 = arith.constant 0 : index
    %c0_32 = arith.constant 0 : index
    %31 = vector.load %arg4[%c0_30, %c0_31, %c0_32] : memref<3x512x512xf32, #tpu.memory_space<vmem>>, vector<1x512x512xf32>
    %32 = vector.shape_cast %31 : vector<1x512x512xf32> to vector<512x512xf32>
    %cst_33 = arith.constant dense<0.000000e+00> : vector<16x512xf32>
    %33 = tpu.matmul %30, %32, %cst_33 {dimension_numbers = #tpu.dot_dimension_numbers<[1], [0], [0], [1], [0, 0, 1, 1], [], []>} : vector<16x512xf32>, vector<512x512xf32>, vector<16x512xf32> -> vector<16x512xf32>
    %c1_34 = arith.constant 1 : index
    %c0_35 = arith.constant 0 : index
    %34 = vector.load %arg7[%c1_34, %c0_35] : memref<18x512xf32, #tpu.memory_space<vmem>>, vector<16x512xf32>
    %c1_36 = arith.constant 1 : index
    %c0_37 = arith.constant 0 : index
    %c0_38 = arith.constant 0 : index
    %35 = vector.load %arg4[%c1_36, %c0_37, %c0_38] : memref<3x512x512xf32, #tpu.memory_space<vmem>>, vector<1x512x512xf32>
    %36 = vector.shape_cast %35 : vector<1x512x512xf32> to vector<512x512xf32>
    %cst_39 = arith.constant dense<0.000000e+00> : vector<16x512xf32>
    %37 = tpu.matmul %34, %36, %cst_39 {dimension_numbers = #tpu.dot_dimension_numbers<[1], [0], [0], [1], [0, 0, 1, 1], [], []>} : vector<16x512xf32>, vector<512x512xf32>, vector<16x512xf32> -> vector<16x512xf32>
    %38 = arith.addf %33, %37 : vector<16x512xf32>
    %c2_40 = arith.constant 2 : index
    %c0_41 = arith.constant 0 : index
    %39 = vector.load %arg7[%c2_40, %c0_41] : memref<18x512xf32, #tpu.memory_space<vmem>>, vector<16x512xf32>
    %c2_42 = arith.constant 2 : index
    %c0_43 = arith.constant 0 : index
    %c0_44 = arith.constant 0 : index
    %40 = vector.load %arg4[%c2_42, %c0_43, %c0_44] : memref<3x512x512xf32, #tpu.memory_space<vmem>>, vector<1x512x512xf32>
    %41 = vector.shape_cast %40 : vector<1x512x512xf32> to vector<512x512xf32>
    %cst_45 = arith.constant dense<0.000000e+00> : vector<16x512xf32>
    %42 = tpu.matmul %39, %41, %cst_45 {dimension_numbers = #tpu.dot_dimension_numbers<[1], [0], [0], [1], [0, 0, 1, 1], [], []>} : vector<16x512xf32>, vector<512x512xf32>, vector<16x512xf32> -> vector<16x512xf32>
    %43 = arith.addf %38, %42 : vector<16x512xf32>
    %c0_46 = arith.constant 0 : index
    %c0_47 = arith.constant 0 : index
    %44 = vector.load %arg5[%c0_46, %c0_47] : memref<1x512xf32, #tpu.memory_space<vmem>>, vector<1x512xf32>
    %45 = vector.broadcast %44 : vector<1x512xf32> to vector<16x512xf32>
    %46 = arith.addf %43, %45 : vector<16x512xf32>
    %c0_48 = arith.constant 0 : index
    %c1_49 = arith.constant 1 : index
    %c0_50 = arith.constant 0 : index
    %47 = vector.load %arg1[%c0_48, %c1_49, %c0_50] : memref<1x18x512xf32, #tpu.memory_space<vmem>>, vector<1x16x512xf32>
    %48 = vector.shape_cast %47 : vector<1x16x512xf32> to vector<16x512xf32>
    %49 = arith.addf %46, %48 : vector<16x512xf32>
    %cst_51 = arith.constant 0.000000e+00 : f32
    %50 = vector.broadcast %cst_51 : f32 to vector<16x512xf32>
    %51 = arith.cmpf ogt, %49, %50 : vector<16x512xf32>
    %cst_52 = arith.constant 2.000000e-01 : f32
    %52 = vector.broadcast %cst_52 : f32 to vector<16x512xf32>
    %53 = arith.mulf %52, %49 : vector<16x512xf32>
    %54 = arith.select %51, %49, %53 : vector<16x512xi1>, vector<16x512xf32>
    %c0_53 = arith.constant 0 : index
    %c0_54 = arith.constant 0 : index
    %c0_55 = arith.constant 0 : index
    %55 = vector.load %arg6[%c0_53, %c0_54, %c0_55] : memref<1x16x512xf32, #tpu.memory_space<vmem>>, vector<1x16x512xf32>
    %56 = vector.shape_cast %55 : vector<1x16x512xf32> to vector<16x512xf32>
    %57 = vector.shape_cast %54 : vector<16x512xf32> to vector<1x16x512xf32>
    tpu.vector_store %arg6[%c0_53, %c0_54, %c0_55], %57 {strides = array<i32>} : memref<1x16x512xf32, #tpu.memory_space<vmem>>, vector<1x16x512xf32>,
    return
  }
  func.func @transform_0(%arg0: i32) -> (i32, i32, i32) {
    %c0_i32 = arith.constant 0 : i32
    %c0_i32_0 = arith.constant 0 : i32
    %c0_i32_1 = arith.constant 0 : i32
    return %arg0, %c0_i32, %c0_i32_0 : i32, i32, i32
  }
  func.func @transform_1(%arg0: i32) -> (i32, i32, i32) {
    %c0_i32 = arith.constant 0 : i32
    %c0_i32_0 = arith.constant 0 : i32
    %c0_i32_1 = arith.constant 0 : i32
    %c0_i32_2 = arith.constant 0 : i32
    return %c0_i32, %c0_i32_0, %c0_i32_1 : i32, i32, i32
  }
  func.func @transform_2(%arg0: i32) -> (i32, i32) {
    %c0_i32 = arith.constant 0 : i32
    %c0_i32_0 = arith.constant 0 : i32
    %c0_i32_1 = arith.constant 0 : i32
    return %c0_i32, %c0_i32_0 : i32, i32
  }
  func.func @transform_3(%arg0: i32) -> (i32, i32, i32) {
    %c0_i32 = arith.constant 0 : i32
    %c0_i32_0 = arith.constant 0 : i32
    %c0_i32_1 = arith.constant 0 : i32
    %c0_i32_2 = arith.constant 0 : i32
    return %c0_i32, %c0_i32_0, %c0_i32_1 : i32, i32, i32
  }
  func.func @transform_4(%arg0: i32) -> (i32, i32) {
    %c0_i32 = arith.constant 0 : i32
    %c0_i32_0 = arith.constant 0 : i32
    %c0_i32_1 = arith.constant 0 : i32
    return %c0_i32, %c0_i32_0 : i32, i32
  }
  func.func @transform_5(%arg0: i32) -> (i32, i32, i32) {
    %c0_i32 = arith.constant 0 : i32
    %c0_i32_0 = arith.constant 0 : i32
    %c0_i32_1 = arith.constant 0 : i32
    return %arg0, %c0_i32, %c0_i32_0 : i32, i32, i32
  }
}

</mosaic_0001>

<llo_original>
// kernel: tpu_custom_call.1
$region0: #{tpu_custom_call.1}
  #allocation0 [shape = 'u32[]', space=smem, size = 0x4, offset = 0x4, fixed_abs, tag = 'smem constant byte address 0x4 - core index']
  #allocation1 [shape = 'u32[144,128]{1,0:T(1,128)}', space=vmem, size = 0x12000, scoped, tag = 'internal scratch']
  #allocation2 [shape = 'f32[18,512]{1,0:T(8,128)}', space=vmem, size = 0xc000, scoped, tag = 'scratch operand']
  %s0 = inlined_call_operand.vmem [shape: f32[2,18,512], index: 0, kind: input, shape index: {}]
  %s1 = inlined_call_operand.hbm [shape: f32[3,512,512], index: 1, kind: input, shape index: {}]
  %s2 = inlined_call_operand.hbm [shape: f32[1,512], index: 2, kind: input, shape index: {}]
  %s3 = inlined_call_operand.hbm [shape: f32[3,512,512], index: 3, kind: input, shape index: {}]
  %s4 = inlined_call_operand.hbm [shape: f32[1,512], index: 4, kind: input, shape index: {}]
  %s5 = inlined_call_operand.hbm [shape: f32[2,16,512], index: 5, kind: output, shape index: {}]
  %s6 = sld [smem:[#allocation0]]
  $region69: #{tpu_custom_call.1} parent=0
    _
  %s8 = ssub.s32 1, %s6
  %s9 = scalar_select 0, %s8, %s6
  $region1: #{tpu_custom_call.1} parent=0
    #allocation3 [shape = 'u8[3145728]{0}', space=vmem, size = 0x300000, scoped, tag = 'input window, operand 1, single buffered']
    #allocation4 [shape = 's32[2]{0}', space=sflag, size = 0x8, scoped, tag = 'scoped memory for tpu_custom_call.1']
    #allocation5 [shape = 's32[2]{0}', space=sflag, size = 0x8, scoped, tag = 'scoped memory for tpu_custom_call.1']
    #allocation6 [shape = 'u8[2048]{0}', space=vmem, size = 0x800, scoped, tag = 'input window, operand 2, single buffered']
    #allocation7 [shape = 's32[1]{0}', space=sflag, size = 0x4, scoped, tag = 'scoped memory for tpu_custom_call.1']
    #allocation8 [shape = 'u8[3145728]{0}', space=vmem, size = 0x300000, scoped, tag = 'input window, operand 3, single buffered']
    #allocation9 [shape = 'u8[2048]{0}', space=vmem, size = 0x800, scoped, tag = 'input window, operand 4, single buffered']
    #allocation10 [shape = 's32[1]{0}', space=sflag, size = 0x4, scoped, tag = 'scoped memory for tpu_custom_call.1']
    #allocation11 [shape = 'u8[65536]{0}', space=vmem, size = 0x10000, scoped, tag = 'output window, operand 0']
    %10 = vsyncpa [#allocation4], 0
    %11 = vsyncpa [#allocation7], 0
    %12 = vsyncpa [#allocation10], 0
    %13 = vsyncpa [#allocation5], 0
    %s14 = scalar_lea.sflag [#allocation5], 1
    %15 = vsyncpa %s14, 0
    loop: start=0, step=1, limit=4
    $region2: #{tpu_custom_call.1} parent=1 // loop_pre_header
      _
    $region3: #{tpu_custom_call.1} parent=1 // loop_header
      %s17 = sphi 0, %s21
      %p18 = scmp.ge.s32.totalorder %s17, 4
      %s27 = sphi 0, %s29
      %s30 = sphi 0, %s27
      %s31 = sphi 0, %s30
      %s47 = sphi 0, %s31
      %s51 = sphi 0, %s51
      %s53 = sphi 0, %s51
      %s54 = sphi 0, %s53
      %s68 = sphi 0, %s54
      %s72 = sphi 0, %s72
      %s74 = sphi 0, %s72
      %s75 = sphi 0, %s74
      %s89 = sphi 0, %s75
      %s93 = sphi 0, %s93
      %s95 = sphi 0, %s93
      %s96 = sphi 0, %s95
      %s110 = sphi 0, %s96
      %s114 = sphi 0, %s114
      %s116 = sphi 0, %s114
      %s117 = sphi 0, %s116
      %s131 = sphi 0, %s117
      %s137 = sphi 0, %s139
      %s140 = sphi 0, %s137
      %s141 = sphi 0, %s140
      %s157 = sphi 0, %s141
    $region4: #{tpu_custom_call.1} parent=1 // loop_header_branch
      %20 = sbr.rel (%p18) target = $region8
    $region5: #{tpu_custom_call.1} parent=1 // loop_body
      %s22 = ssub.s32 %s17, 1
      %s23 = ssub.s32 %s17, 2
      %s24 = sadd.s32 %s17, 1
      %s25 = ssub.s32 %s17, %s24
      %p26 = scmp.eq.s32.totalorder %s25, 0
      %s28 = sadd.s32 %s27, 1
      %s29 = scalar_select %p26, %s27, %s28
      %p32 = pneg %p26
      %p33 = scmp.eq.s32.totalorder %s17, 1
      %p34 = por %p32, %p33
      %p35 = scmp.ne.s32.totalorder %s27, %s30
      %p36 = scmp.eq.s32.totalorder %s17, 0
      %p37 = por %p35, %p36
      %p38 = scmp.ne.s32.totalorder %s27, %s30
      %p39 = scmp.eq.s32.totalorder %s22, 1
      %p40 = por %p38, %p39
      %p41 = scmp.ne.s32.totalorder %s30, %s31
      %p42 = scmp.eq.s32.totalorder %s22, 0
      %p43 = por %p41, %p42
      %p44 = scmp.ne.s32.totalorder %s30, %s31
      %p45 = scmp.eq.s32.totalorder %s23, 1
      %p46 = por %p44, %p45
      %p48 = scmp.ne.s32.totalorder %s31, %s47
      %p49 = scmp.eq.s32.totalorder %s23, 0
      %p50 = por %p48, %p49
      %s52 = sadd.s32 %s51, 1
      %p55 = scmp.eq.s32.totalorder %s17, 1
      %p56 = scmp.ne.s32.totalorder %s51, %s53
      %p57 = scmp.eq.s32.totalorder %s17, 0
      %p58 = por %p56, %p57
      %p59 = scmp.ne.s32.totalorder %s51, %s53
      %p60 = scmp.eq.s32.totalorder %s22, 1
      %p61 = por %p59, %p60
      %p62 = scmp.ne.s32.totalorder %s53, %s54
      %p63 = scmp.eq.s32.totalorder %s22, 0
      %p64 = por %p62, %p63
      %p65 = scmp.ne.s32.totalorder %s53, %s54
      %p66 = scmp.eq.s32.totalorder %s23, 1
      %p67 = por %p65, %p66
      %p69 = scmp.ne.s32.totalorder %s54, %s68
      %p70 = scmp.eq.s32.totalorder %s23, 0
      %p71 = por %p69, %p70
      %s73 = sadd.s32 %s72, 1
      %p76 = scmp.eq.s32.totalorder %s17, 1
      %p77 = scmp.ne.s32.totalorder %s72, %s74
      %p78 = scmp.eq.s32.totalorder %s17, 0
      %p79 = por %p77, %p78
      %p80 = scmp.ne.s32.totalorder %s72, %s74
      %p81 = scmp.eq.s32.totalorder %s22, 1
      %p82 = por %p80, %p81
      %p83 = scmp.ne.s32.totalorder %s74, %s75
      %p84 = scmp.eq.s32.totalorder %s22, 0
      %p85 = por %p83, %p84
      %p86 = scmp.ne.s32.totalorder %s74, %s75
      %p87 = scmp.eq.s32.totalorder %s23, 1
      %p88 = por %p86, %p87
      %p90 = scmp.ne.s32.totalorder %s75, %s89
      %p91 = scmp.eq.s32.totalorder %s23, 0
      %p92 = por %p90, %p91
      %s94 = sadd.s32 %s93, 1
      %p97 = scmp.eq.s32.totalorder %s17, 1
      %p98 = scmp.ne.s32.totalorder %s93, %s95
      %p99 = scmp.eq.s32.totalorder %s17, 0
      %p100 = por %p98, %p99
      %p101 = scmp.ne.s32.totalorder %s93, %s95
      %p102 = scmp.eq.s32.totalorder %s22, 1
      %p103 = por %p101, %p102
      %p104 = scmp.ne.s32.totalorder %s95, %s96
      %p105 = scmp.eq.s32.totalorder %s22, 0
      %p106 = por %p104, %p105
      %p107 = scmp.ne.s32.totalorder %s95, %s96
      %p108 = scmp.eq.s32.totalorder %s23, 1
      %p109 = por %p107, %p108
      %p111 = scmp.ne.s32.totalorder %s96, %s110
      %p112 = scmp.eq.s32.totalorder %s23, 0
      %p113 = por %p111, %p112
      %s115 = sadd.s32 %s114, 1
      %p118 = scmp.eq.s32.totalorder %s17, 1
      %p119 = scmp.ne.s32.totalorder %s114, %s116
      %p120 = scmp.eq.s32.totalorder %s17, 0
      %p121 = por %p119, %p120
      %p122 = scmp.ne.s32.totalorder %s114, %s116
      %p123 = scmp.eq.s32.totalorder %s22, 1
      %p124 = por %p122, %p123
      %p125 = scmp.ne.s32.totalorder %s116, %s117
      %p126 = scmp.eq.s32.totalorder %s22, 0
      %p127 = por %p125, %p126
      %p128 = scmp.ne.s32.totalorder %s116, %s117
      %p129 = scmp.eq.s32.totalorder %s23, 1
      %p130 = por %p128, %p129
      %p132 = scmp.ne.s32.totalorder %s117, %s131
      %p133 = scmp.eq.s32.totalorder %s23, 0
      %p134 = por %p132, %p133
      %s135 = ssub.s32 %s17, %s24
      %p136 = scmp.eq.s32.totalorder %s135, 0
      %s138 = sadd.s32 %s137, 1
      %s139 = scalar_select %p136, %s137, %s138
      %p142 = pneg %p136
      %p143 = scmp.eq.s32.totalorder %s17, 1
      %p144 = por %p142, %p143
      %p145 = scmp.ne.s32.totalorder %s137, %s140
      %p146 = scmp.eq.s32.totalorder %s17, 0
      %p147 = por %p145, %p146
      %p148 = scmp.ne.s32.totalorder %s137, %s140
      %p149 = scmp.eq.s32.totalorder %s22, 1
      %p150 = por %p148, %p149
      %p151 = scmp.ne.s32.totalorder %s140, %s141
      %p152 = scmp.eq.s32.totalorder %s22, 0
      %p153 = por %p151, %p152
      %p154 = scmp.ne.s32.totalorder %s140, %s141
      %p155 = scmp.eq.s32.totalorder %s23, 1
      %p156 = por %p154, %p155
      %p158 = scmp.ne.s32.totalorder %s141, %s157
      %p159 = scmp.eq.s32.totalorder %s23, 0
      %p160 = por %p158, %p159
      %p161 = scmp.le.s32.totalorder 1, %s17
      %p162 = scmp.lt.s32.totalorder %s17, 3
      %p163 = pnand %p161, %p162
      %p164 = pneg %p163
      // Predicated region
      $region9: #{tpu_custom_call.1} parent=5 // pred_check
        _
      $region10: #{tpu_custom_call.1} parent=5 // pred_check_branch
        %166 = sbr.rel (%p163) target = $region12
      $region11: #{tpu_custom_call.1} parent=5 // pred_region
        %s167 = ssub.s32 %s17, 1
        // Predicated region
        $region13: #{tpu_custom_call.1} parent=11 // pred_check
          %p168 = pneg %p64
        $region14: #{tpu_custom_call.1} parent=11 // pred_check_branch
          %170 = sbr.rel (%p168) target = $region16
        $region15: #{tpu_custom_call.1} parent=11 // pred_region
          %s172 = ssub.s32 98304, 98304
          %173 = vsyncadd [#allocation4], %s172
          %s174 = sshll.u32 [#allocation3], 4
          %s175 = int_to_ptr.vmem [resolvable:$true] %s174
          %180 = dma.hbm_to_vmem [thread:$0]  %s1, 98304, %s175, [#allocation4], 512, 512, 32
        $region16: #{tpu_custom_call.1} parent=11 // pred_fallthru
          _
        // Predicated region
        $region17: #{tpu_custom_call.1} parent=11 // pred_check
          %p181 = pneg %p85
        $region18: #{tpu_custom_call.1} parent=11 // pred_check_branch
          %183 = sbr.rel (%p181) target = $region20
        $region19: #{tpu_custom_call.1} parent=11 // pred_region
          %s185 = ssub.s32 64, 64
          %186 = vsyncadd [#allocation7], %s185
          %s188 = sshll.u32 [#allocation6], 4
          %s189 = int_to_ptr.vmem [resolvable:$true] %s188
          %191 = dma.hbm_to_vmem [thread:$0]  %s2, 64, %s189, [#allocation7]
        $region20: #{tpu_custom_call.1} parent=11 // pred_fallthru
          _
        // Predicated region
        $region21: #{tpu_custom_call.1} parent=11 // pred_check
          %p192 = pneg %p106
        $region22: #{tpu_custom_call.1} parent=11 // pred_check_branch
          %194 = sbr.rel (%p192) target = $region24
        $region23: #{tpu_custom_call.1} parent=11 // pred_region
          %s196 = ssub.s32 98304, 98304
          %197 = vsyncadd [#allocation7], %s196
          %s198 = sshll.u32 [#allocation8], 4
          %s199 = int_to_ptr.vmem [resolvable:$true] %s198
          %204 = dma.hbm_to_vmem [thread:$0]  %s3, 98304, %s199, [#allocation7], 512, 512, 32
        $region24: #{tpu_custom_call.1} parent=11 // pred_fallthru
          _
        // Predicated region
        $region25: #{tpu_custom_call.1} parent=11 // pred_check
          %p205 = pneg %p127
        $region26: #{tpu_custom_call.1} parent=11 // pred_check_branch
          %207 = sbr.rel (%p205) target = $region28
        $region27: #{tpu_custom_call.1} parent=11 // pred_region
          %s209 = ssub.s32 64, 64
          %210 = vsyncadd [#allocation10], %s209
          %s212 = sshll.u32 [#allocation9], 4
          %s213 = int_to_ptr.vmem [resolvable:$true] %s212
          %215 = dma.hbm_to_vmem [thread:$0]  %s4, 64, %s213, [#allocation10]
        $region28: #{tpu_custom_call.1} parent=11 // pred_fallthru
          _
      $region12: #{tpu_custom_call.1} parent=5 // pred_fallthru
        _
      %p216 = scmp.lt.s32.totalorder %s17, 2
      // Predicated region
      $region29: #{tpu_custom_call.1} parent=5 // pred_check
        %p217 = pneg %p216
      $region30: #{tpu_custom_call.1} parent=5 // pred_check_branch
        %219 = sbr.rel (%p217) target = $region32
      $region31: #{tpu_custom_call.1} parent=5 // pred_region
        // Predicated region
        $region33: #{tpu_custom_call.1} parent=31 // pred_check
          %p220 = pneg %p37
        $region34: #{tpu_custom_call.1} parent=31 // pred_check_branch
          %222 = sbr.rel (%p220) target = $region36
        $region35: #{tpu_custom_call.1} parent=31 // pred_region
          %p223 = scmp.lt.s32.totalorder %s17, 1
          %s224 = scalar_select %p223, %s17, 1
          %s225 = smul.addr %s224, 12
          %s226 = smul.addr %s225, 8
          %s227 = scalar_lea.vmem %s0, %s226
        $region36: #{tpu_custom_call.1} parent=31 // pred_fallthru
          _
      $region32: #{tpu_custom_call.1} parent=5 // pred_fallthru
        _
      %p228 = scmp.le.s32.totalorder 1, %s17
      %p229 = scmp.lt.s32.totalorder %s17, 3
      %p230 = pnand %p228, %p229
      %p231 = pneg %p230
      // Predicated region
      $region37: #{tpu_custom_call.1} parent=5 // pred_check
        _
      $region38: #{tpu_custom_call.1} parent=5 // pred_check_branch
        %233 = sbr.rel (%p230) target = $region40
      $region39: #{tpu_custom_call.1} parent=5 // pred_region
        %s234 = ssub.s32 %s17, 1
        // Predicated region
        $region41: #{tpu_custom_call.1} parent=39 // pred_check
          %p235 = pneg %p64
        $region42: #{tpu_custom_call.1} parent=39 // pred_check_branch
          %237 = sbr.rel (%p235) target = $region44
        $region43: #{tpu_custom_call.1} parent=39 // pred_region
          %238 = dma.done [#allocation4], 98304
        $region44: #{tpu_custom_call.1} parent=39 // pred_fallthru
          _
        // Predicated region
        $region45: #{tpu_custom_call.1} parent=39 // pred_check
          %p239 = pneg %p85
        $region46: #{tpu_custom_call.1} parent=39 // pred_check_branch
          %241 = sbr.rel (%p239) target = $region48
        $region47: #{tpu_custom_call.1} parent=39 // pred_region
          %242 = dma.done [#allocation7], 64
        $region48: #{tpu_custom_call.1} parent=39 // pred_fallthru
          _
        // Predicated region
        $region49: #{tpu_custom_call.1} parent=39 // pred_check
          %p243 = pneg %p106
        $region50: #{tpu_custom_call.1} parent=39 // pred_check_branch
          %245 = sbr.rel (%p243) target = $region52
        $region51: #{tpu_custom_call.1} parent=39 // pred_region
          %246 = dma.done [#allocation7], 98304
        $region52: #{tpu_custom_call.1} parent=39 // pred_fallthru
          _
        // Predicated region
        $region53: #{tpu_custom_call.1} parent=39 // pred_check
          %p247 = pneg %p127
        $region54: #{tpu_custom_call.1} parent=39 // pred_check_branch
          %249 = sbr.rel (%p247) target = $region56
        $region55: #{tpu_custom_call.1} parent=39 // pred_region
          %250 = dma.done [#allocation10], 64
        $region56: #{tpu_custom_call.1} parent=39 // pred_fallthru
          _
        %p251 = scmp.lt.s32.totalorder %s22, 1
        %s252 = scalar_select %p251, %s22, 1
        %s253 = smul.addr %s252, 12
        %s254 = smul.addr %s253, 8
        %s255 = scalar_lea.vmem %s0, %s254
        %p256 = pneg %p43
        %p257 = pneg %p40
        %p258 = pneg %p64
        %p259 = pneg %p61
        %p260 = pneg %p85
        %p261 = pneg %p82
        %p262 = pneg %p106
        %p263 = pneg %p103
        %p264 = pneg %p127
        %p265 = pneg %p124
        %p266 = pneg %p153
        %p267 = pneg %p150
        %s268 = sand.u32 %s140, 1
        %s269 = scalar_lea.sflag [#allocation5], %s268
        %s270 = sand.u32 %s140, 1
        %s271 = smul.addr %s270, 64
        %s272 = scalar_lea.vmem [#allocation11], %s271
        %p273 = scmp.lt.s32.totalorder %s22, 1
        %s274 = scalar_select %p273, %s22, 1
        %s275 = smul.addr %s274, 12
        %s276 = smul.addr %s275, 8
        %s277 = scalar_lea.vmem %s0, %s276
        %v278 = vld [vmem:[%s277] sm:$0xff]
        %v279 = vld [vmem:[%s277 + $0x8] sm:$0xff]
        %v280 = vld [vmem:[%s277 + $0x10] sm:$0xff]
        %v281 = vld [vmem:[%s277 + $0x18] sm:$0xff]
        %v282 = vld [vmem:[%s277 + $0x20] sm:$0xff]
        %v283 = vld [vmem:[%s277 + $0x28] sm:$0xff]
        %v284 = vld [vmem:[%s277 + $0x30] sm:$0xff]
        %v285 = vld [vmem:[%s277 + $0x38] sm:$0xff]
        %v286 = vld [vmem:[#allocation3] sm:$0xff]
        %v287 = vld [vmem:[#allocation3 + $0x8] sm:$0xff]
        %v288 = vld [vmem:[#allocation3 + $0x10] sm:$0xff]
        %v289 = vld [vmem:[#allocation3 + $0x18] sm:$0xff]
        %v290 = vld [vmem:[#allocation3 + $0x20] sm:$0xff]
        %v291 = vld [vmem:[#allocation3 + $0x28] sm:$0xff]
        %v292 = vld [vmem:[#allocation3 + $0x30] sm:$0xff]
        %v293 = vld [vmem:[#allocation3 + $0x38] sm:$0xff]
        %v294 = vld [vmem:[#allocation3 + $0x40] sm:$0xff]
        %v295 = vld [vmem:[#allocation3 + $0x48] sm:$0xff]
        %v296 = vld [vmem:[#allocation3 + $0x50] sm:$0xff]
        %v297 = vld [vmem:[#allocation3 + $0x58] sm:$0xff]
        %v298 = vld [vmem:[#allocation3 + $0x60] sm:$0xff]
        %v299 = vld [vmem:[#allocation3 + $0x68] sm:$0xff]
        %v300 = vld [vmem:[#allocation3 + $0x70] sm:$0xff]
        %v301 = vld [vmem:[#allocation3 + $0x78] sm:$0xff]
        %v302 = vld [vmem:[#allocation3 + $0x80] sm:$0xff]
        %v303 = vld [vmem:[#allocation3 + $0x88] sm:$0xff]
        %v304 = vld [vmem:[#allocation3 + $0x90] sm:$0xff]
        %v305 = vld [vmem:[#allocation3 + $0x98] sm:$0xff]
        %v306 = vld [vmem:[#allocation3 + $0xa0] sm:$0xff]
        %v307 = vld [vmem:[#allocation3 + $0xa8] sm:$0xff]
        %v308 = vld [vmem:[#allocation3 + $0xb0] sm:$0xff]
        %v309 = vld [vmem:[#allocation3 + $0xb8] sm:$0xff]
        %v310 = vld [vmem:[#allocation3 + $0xc0] sm:$0xff]
        %v311 = vld [vmem:[#allocation3 + $0xc8] sm:$0xff]
        %v312 = vld [vmem:[#allocation3 + $0xd0] sm:$0xff]
        %v313 = vld [vmem:[#allocation3 + $0xd8] sm:$0xff]
        %v314 = vld [vmem:[#allocation3 + $0xe0] sm:$0xff]
        %v315 = vld [vmem:[#allocation3 + $0xe8] sm:$0xff]
        %v316 = vld [vmem:[#allocation3 + $0xf0] sm:$0xff]
        %v317 = vld [vmem:[#allocation3 + $0xf8] sm:$0xff]
        %v318 = vld [vmem:[#allocation3 + $0x100] sm:$0xff]
        %v319 = vld [vmem:[#allocation3 + $0x108] sm:$0xff]
        %v320 = vld [vmem:[#allocation3 + $0x110] sm:$0xff]
        %v321 = vld [vmem:[#allocation3 + $0x118] sm:$0xff]
        %v322 = vld [vmem:[#allocation3 + $0x120] sm:$0xff]
        %v323 = vld [vmem:[#allocation3 + $0x128] sm:$0xff]
        %v324 = vld [vmem:[#allocation3 + $0x130] sm:$0xff]
        %v325 = vld [vmem:[#allocation3 + $0x138] sm:$0xff]
        %v326 = vld [vmem:[#allocation3 + $0x140] sm:$0xff]
        %v327 = vld [vmem:[#allocation3 + $0x148] sm:$0xff]
        %v328 = vld [vmem:[#allocation3 + $0x150] sm:$0xff]
        %v329 = vld [vmem:[#allocation3 + $0x158] sm:$0xff]
        %v330 = vld [vmem:[#allocation3 + $0x160] sm:$0xff]
        %v331 = vld [vmem:[#allocation3 + $0x168] sm:$0xff]
        %v332 = vld [vmem:[#allocation3 + $0x170] sm:$0xff]
        %v333 = vld [vmem:[#allocation3 + $0x178] sm:$0xff]
        %v334 = vld [vmem:[#allocation3 + $0x180] sm:$0xff]
        %v335 = vld [vmem:[#allocation3 + $0x188] sm:$0xff]
        %v336 = vld [vmem:[#allocation3 + $0x190] sm:$0xff]
        %v337 = vld [vmem:[#allocation3 + $0x198] sm:$0xff]
        %v338 = vld [vmem:[#allocation3 + $0x1a0] sm:$0xff]
        %v339 = vld [vmem:[#allocation3 + $0x1a8] sm:$0xff]
        %v340 = vld [vmem:[#allocation3 + $0x1b0] sm:$0xff]
        %v341 = vld [vmem:[#allocation3 + $0x1b8] sm:$0xff]
        %v342 = vld [vmem:[#allocation3 + $0x1c0] sm:$0xff]
        %v343 = vld [vmem:[#allocation3 + $0x1c8] sm:$0xff]
        %v344 = vld [vmem:[#allocation3 + $0x1d0] sm:$0xff]
        %v345 = vld [vmem:[#allocation3 + $0x1d8] sm:$0xff]
        %v346 = vld [vmem:[#allocation3 + $0x1e0] sm:$0xff]
        %v347 = vld [vmem:[#allocation3 + $0x1e8] sm:$0xff]
        %v348 = vld [vmem:[#allocation3 + $0x1f0] sm:$0xff]
        %v349 = vld [vmem:[#allocation3 + $0x1f8] sm:$0xff]
        %v350 = vld [vmem:[#allocation3 + $0x200] sm:$0xff]
        %v351 = vld [vmem:[#allocation3 + $0x208] sm:$0xff]
        %v352 = vld [vmem:[#allocation3 + $0x210] sm:$0xff]
        %v353 = vld [vmem:[#allocation3 + $0x218] sm:$0xff]
        %v354 = vld [vmem:[#allocation3 + $0x220] sm:$0xff]
        %v355 = vld [vmem:[#allocation3 + $0x228] sm:$0xff]
        %v356 = vld [vmem:[#allocation3 + $0x230] sm:$0xff]
        %v357 = vld [vmem:[#allocation3 + $0x238] sm:$0xff]
        %v358 = vld [vmem:[#allocation3 + $0x240] sm:$0xff]
        %v359 = vld [vmem:[#allocation3 + $0x248] sm:$0xff]
        %v360 = vld [vmem:[#allocation3 + $0x250] sm:$0xff]
        %v361 = vld [vmem:[#allocation3 + $0x258] sm:$0xff]
        %v362 = vld [vmem:[#allocation3 + $0x260] sm:$0xff]
        %v363 = vld [vmem:[#allocation3 + $0x268] sm:$0xff]
        %v364 = vld [vmem:[#allocation3 + $0x270] sm:$0xff]
        %v365 = vld [vmem:[#allocation3 + $0x278] sm:$0xff]
        %v366 = vld [vmem:[#allocation3 + $0x280] sm:$0xff]
        %v367 = vld [vmem:[#allocation3 + $0x288] sm:$0xff]
        %v368 = vld [vmem:[#allocation3 + $0x290] sm:$0xff]
        %v369 = vld [vmem:[#allocation3 + $0x298] sm:$0xff]
        %v370 = vld [vmem:[#allocation3 + $0x2a0] sm:$0xff]
        %v371 = vld [vmem:[#allocation3 + $0x2a8] sm:$0xff]
        %v372 = vld [vmem:[#allocation3 + $0x2b0] sm:$0xff]
        %v373 = vld [vmem:[#allocation3 + $0x2b8] sm:$0xff]
        %v374 = vld [vmem:[#allocation3 + $0x2c0] sm:$0xff]
        %v375 = vld [vmem:[#allocation3 + $0x2c8] sm:$0xff]
        %v376 = vld [vmem:[#allocation3 + $0x2d0] sm:$0xff]
        %v377 = vld [vmem:[#allocation3 + $0x2d8] sm:$0xff]
        %v378 = vld [vmem:[#allocation3 + $0x2e0] sm:$0xff]
        %v379 = vld [vmem:[#allocation3 + $0x2e8] sm:$0xff]
        %v380 = vld [vmem:[#allocation3 + $0x2f0] sm:$0xff]
        %v381 = vld [vmem:[#allocation3 + $0x2f8] sm:$0xff]
        %v382 = vld [vmem:[#allocation3 + $0x300] sm:$0xff]
        %v383 = vld [vmem:[#allocation3 + $0x308] sm:$0xff]
        %v384 = vld [vmem:[#allocation3 + $0x310] sm:$0xff]
        %v385 = vld [vmem:[#allocation3 + $0x318] sm:$0xff]
        %v386 = vld [vmem:[#allocation3 + $0x320] sm:$0xff]
        %v387 = vld [vmem:[#allocation3 + $0x328] sm:$0xff]
        %v388 = vld [vmem:[#allocation3 + $0x330] sm:$0xff]
        %v389 = vld [vmem:[#allocation3 + $0x338] sm:$0xff]
        %v390 = vld [vmem:[#allocation3 + $0x340] sm:$0xff]
        %v391 = vld [vmem:[#allocation3 + $0x348] sm:$0xff]
        %v392 = vld [vmem:[#allocation3 + $0x350] sm:$0xff]
        %v393 = vld [vmem:[#allocation3 + $0x358] sm:$0xff]
        %v394 = vld [vmem:[#allocation3 + $0x360] sm:$0xff]
        %v395 = vld [vmem:[#allocation3 + $0x368] sm:$0xff]
        %v396 = vld [vmem:[#allocation3 + $0x370] sm:$0xff]
        %v397 = vld [vmem:[#allocation3 + $0x378] sm:$0xff]
        %v398 = vld [vmem:[#allocation3 + $0x380] sm:$0xff]
        %v399 = vld [vmem:[#allocation3 + $0x388] sm:$0xff]
        %v400 = vld [vmem:[#allocation3 + $0x390] sm:$0xff]
        %v401 = vld [vmem:[#allocation3 + $0x398] sm:$0xff]
        %v402 = vld [vmem:[#allocation3 + $0x3a0] sm:$0xff]
        %v403 = vld [vmem:[#allocation3 + $0x3a8] sm:$0xff]
        %v404 = vld [vmem:[#allocation3 + $0x3b0] sm:$0xff]
        %v405 = vld [vmem:[#allocation3 + $0x3b8] sm:$0xff]
        %v406 = vld [vmem:[#allocation3 + $0x3c0] sm:$0xff]
        %v407 = vld [vmem:[#allocation3 + $0x3c8] sm:$0xff]
        %v408 = vld [vmem:[#allocation3 + $0x3d0] sm:$0xff]
        %v409 = vld [vmem:[#allocation3 + $0x3d8] sm:$0xff]
        %v410 = vld [vmem:[#allocation3 + $0x3e0] sm:$0xff]
        %v411 = vld [vmem:[#allocation3 + $0x3e8] sm:$0xff]
        %v412 = vld [vmem:[#allocation3 + $0x3f0] sm:$0xff]
        %v413 = vld [vmem:[#allocation3 + $0x3f8] sm:$0xff]
        %v414 = vld [vmem:[#allocation3 + $0x400] sm:$0xff]
        %v415 = vld [vmem:[#allocation3 + $0x408] sm:$0xff]
        %v416 = vld [vmem:[#allocation3 + $0x410] sm:$0xff]
        %v417 = vld [vmem:[#allocation3 + $0x418] sm:$0xff]
        %v418 = vld [vmem:[#allocation3 + $0x420] sm:$0xff]
        %v419 = vld [vmem:[#allocation3 + $0x428] sm:$0xff]
        %v420 = vld [vmem:[#allocation3 + $0x430] sm:$0xff]
        %v421 = vld [vmem:[#allocation3 + $0x438] sm:$0xff]
        %v422 = vld [vmem:[#allocation3 + $0x440] sm:$0xff]
        %v423 = vld [vmem:[#allocation3 + $0x448] sm:$0xff]
        %v424 = vld [vmem:[#allocation3 + $0x450] sm:$0xff]
        %v425 = vld [vmem:[#allocation3 + $0x458] sm:$0xff]
        %v426 = vld [vmem:[#allocation3 + $0x460] sm:$0xff]
        %v427 = vld [vmem:[#allocation3 + $0x468] sm:$0xff]
        %v428 = vld [vmem:[#allocation3 + $0x470] sm:$0xff]
        %v429 = vld [vmem:[#allocation3 + $0x478] sm:$0xff]
        %v430 = vld [vmem:[#allocation3 + $0x480] sm:$0xff]
        %v431 = vld [vmem:[#allocation3 + $0x488] sm:$0xff]
        %v432 = vld [vmem:[#allocation3 + $0x490] sm:$0xff]
        %v433 = vld [vmem:[#allocation3 + $0x498] sm:$0xff]
        %v434 = vld [vmem:[#allocation3 + $0x4a0] sm:$0xff]
        %v435 = vld [vmem:[#allocation3 + $0x4a8] sm:$0xff]
        %v436 = vld [vmem:[#allocation3 + $0x4b0] sm:$0xff]
        %v437 = vld [vmem:[#allocation3 + $0x4b8] sm:$0xff]
        %v438 = vld [vmem:[#allocation3 + $0x4c0] sm:$0xff]
        %v439 = vld [vmem:[#allocation3 + $0x4c8] sm:$0xff]
        %v440 = vld [vmem:[#allocation3 + $0x4d0] sm:$0xff]
        %v441 = vld [vmem:[#allocation3 + $0x4d8] sm:$0xff]
        %v442 = vld [vmem:[#allocation3 + $0x4e0] sm:$0xff]
        %v443 = vld [vmem:[#allocation3 + $0x4e8] sm:$0xff]
        %v444 = vld [vmem:[#allocation3 + $0x4f0] sm:$0xff]
        %v445 = vld [vmem:[#allocation3 + $0x4f8] sm:$0xff]
        %v446 = vld [vmem:[#allocation3 + $0x500] sm:$0xff]
        %v447 = vld [vmem:[#allocation3 + $0x508] sm:$0xff]
        %v448 = vld [vmem:[#allocation3 + $0x510] sm:$0xff]
        %v449 = vld [vmem:[#allocation3 + $0x518] sm:$0xff]
        %v450 = vld [vmem:[#allocation3 + $0x520] sm:$0xff]
        %v451 = vld [vmem:[#allocation3 + $0x528] sm:$0xff]
        %v452 = vld [vmem:[#allocation3 + $0x530] sm:$0xff]
        %v453 = vld [vmem:[#allocation3 + $0x538] sm:$0xff]
        %v454 = vld [vmem:[#allocation3 + $0x540] sm:$0xff]
        %v455 = vld [vmem:[#allocation3 + $0x548] sm:$0xff]
        %v456 = vld [vmem:[#allocation3 + $0x550] sm:$0xff]
        %v457 = vld [vmem:[#allocation3 + $0x558] sm:$0xff]
        %v458 = vld [vmem:[#allocation3 + $0x560] sm:$0xff]
        %v459 = vld [vmem:[#allocation3 + $0x568] sm:$0xff]
        %v460 = vld [vmem:[#allocation3 + $0x570] sm:$0xff]
        %v461 = vld [vmem:[#allocation3 + $0x578] sm:$0xff]
        %v462 = vld [vmem:[#allocation3 + $0x580] sm:$0xff]
        %v463 = vld [vmem:[#allocation3 + $0x588] sm:$0xff]
        %v464 = vld [vmem:[#allocation3 + $0x590] sm:$0xff]
        %v465 = vld [vmem:[#allocation3 + $0x598] sm:$0xff]
        %v466 = vld [vmem:[#allocation3 + $0x5a0] sm:$0xff]
        %v467 = vld [vmem:[#allocation3 + $0x5a8] sm:$0xff]
        %v468 = vld [vmem:[#allocation3 + $0x5b0] sm:$0xff]
        %v469 = vld [vmem:[#allocation3 + $0x5b8] sm:$0xff]
        %v470 = vld [vmem:[#allocation3 + $0x5c0] sm:$0xff]
        %v471 = vld [vmem:[#allocation3 + $0x5c8] sm:$0xff]
        %v472 = vld [vmem:[#allocation3 + $0x5d0] sm:$0xff]
        %v473 = vld [vmem:[#allocation3 + $0x5d8] sm:$0xff]
        %v474 = vld [vmem:[#allocation3 + $0x5e0] sm:$0xff]
        %v475 = vld [vmem:[#allocation3 + $0x5e8] sm:$0xff]
        %v476 = vld [vmem:[#allocation3 + $0x5f0] sm:$0xff]
        %v477 = vld [vmem:[#allocation3 + $0x5f8] sm:$0xff]
        %v478 = vld [vmem:[#allocation3 + $0x600] sm:$0xff]
        %v479 = vld [vmem:[#allocation3 + $0x608] sm:$0xff]
        %v480 = vld [vmem:[#allocation3 + $0x610] sm:$0xff]
        %v481 = vld [vmem:[#allocation3 + $0x618] sm:$0xff]
        %v482 = vld [vmem:[#allocation3 + $0x620] sm:$0xff]
        %v483 = vld [vmem:[#allocation3 + $0x628] sm:$0xff]
        %v484 = vld [vmem:[#allocation3 + $0x630] sm:$0xff]
        %v485 = vld [vmem:[#allocation3 + $0x638] sm:$0xff]
        %v486 = vld [vmem:[#allocation3 + $0x640] sm:$0xff]
        %v487 = vld [vmem:[#allocation3 + $0x648] sm:$0xff]
        %v488 = vld [vmem:[#allocation3 + $0x650] sm:$0xff]
        %v489 = vld [vmem:[#allocation3 + $0x658] sm:$0xff]
        %v490 = vld [vmem:[#allocation3 + $0x660] sm:$0xff]
        %v491 = vld [vmem:[#allocation3 + $0x668] sm:$0xff]
        %v492 = vld [vmem:[#allocation3 + $0x670] sm:$0xff]
        %v493 = vld [vmem:[#allocation3 + $0x678] sm:$0xff]
        %v494 = vld [vmem:[#allocation3 + $0x680] sm:$0xff]
        %v495 = vld [vmem:[#allocation3 + $0x688] sm:$0xff]
        %v496 = vld [vmem:[#allocation3 + $0x690] sm:$0xff]
        %v497 = vld [vmem:[#allocation3 + $0x698] sm:$0xff]
        %v498 = vld [vmem:[#allocation3 + $0x6a0] sm:$0xff]
        %v499 = vld [vmem:[#allocation3 + $0x6a8] sm:$0xff]
        %v500 = vld [vmem:[#allocation3 + $0x6b0] sm:$0xff]
        %v501 = vld [vmem:[#allocation3 + $0x6b8] sm:$0xff]
        %v502 = vld [vmem:[#allocation3 + $0x6c0] sm:$0xff]
        %v503 = vld [vmem:[#allocation3 + $0x6c8] sm:$0xff]
        %v504 = vld [vmem:[#allocation3 + $0x6d0] sm:$0xff]
        %v505 = vld [vmem:[#allocation3 + $0x6d8] sm:$0xff]
        %v506 = vld [vmem:[#allocation3 + $0x6e0] sm:$0xff]
        %v507 = vld [vmem:[#allocation3 + $0x6e8] sm:$0xff]
        %v508 = vld [vmem:[#allocation3 + $0x6f0] sm:$0xff]
        %v509 = vld [vmem:[#allocation3 + $0x6f8] sm:$0xff]
        %v510 = vld [vmem:[#allocation3 + $0x700] sm:$0xff]
        %v511 = vld [vmem:[#allocation3 + $0x708] sm:$0xff]
        %v512 = vld [vmem:[#allocation3 + $0x710] sm:$0xff]
        %v513 = vld [vmem:[#allocation3 + $0x718] sm:$0xff]
        %v514 = vld [vmem:[#allocation3 + $0x720] sm:$0xff]
        %v515 = vld [vmem:[#allocation3 + $0x728] sm:$0xff]
        %v516 = vld [vmem:[#allocation3 + $0x730] sm:$0xff]
        %v517 = vld [vmem:[#allocation3 + $0x738] sm:$0xff]
        %v518 = vld [vmem:[#allocation3 + $0x740] sm:$0xff]
        %v519 = vld [vmem:[#allocation3 + $0x748] sm:$0xff]
        %v520 = vld [vmem:[#allocation3 + $0x750] sm:$0xff]
        %v521 = vld [vmem:[#allocation3 + $0x758] sm:$0xff]
        %v522 = vld [vmem:[#allocation3 + $0x760] sm:$0xff]
        %v523 = vld [vmem:[#allocation3 + $0x768] sm:$0xff]
        %v524 = vld [vmem:[#allocation3 + $0x770] sm:$0xff]
        %v525 = vld [vmem:[#allocation3 + $0x778] sm:$0xff]
        %v526 = vld [vmem:[#allocation3 + $0x780] sm:$0xff]
        %v527 = vld [vmem:[#allocation3 + $0x788] sm:$0xff]
        %v528 = vld [vmem:[#allocation3 + $0x790] sm:$0xff]
        %v529 = vld [vmem:[#allocation3 + $0x798] sm:$0xff]
        %v530 = vld [vmem:[#allocation3 + $0x7a0] sm:$0xff]
        %v531 = vld [vmem:[#allocation3 + $0x7a8] sm:$0xff]
        %v532 = vld [vmem:[#allocation3 + $0x7b0] sm:$0xff]
        %v533 = vld [vmem:[#allocation3 + $0x7b8] sm:$0xff]
        %v534 = vld [vmem:[#allocation3 + $0x7c0] sm:$0xff]
        %v535 = vld [vmem:[#allocation3 + $0x7c8] sm:$0xff]
        %v536 = vld [vmem:[#allocation3 + $0x7d0] sm:$0xff]
        %v537 = vld [vmem:[#allocation3 + $0x7d8] sm:$0xff]
        %v538 = vld [vmem:[#allocation3 + $0x7e0] sm:$0xff]
        %v539 = vld [vmem:[#allocation3 + $0x7e8] sm:$0xff]
        %v540 = vld [vmem:[#allocation3 + $0x7f0] sm:$0xff]
        %v541 = vld [vmem:[#allocation3 + $0x7f8] sm:$0xff]
        %v542 = vld [vmem:[%s277] sm:$0xfe]
        %v543 = vld [vmem:[%s277 + $0x8] sm:$0xfe]
        %v544 = vld [vmem:[%s277 + $0x10] sm:$0xfe]
        %v545 = vld [vmem:[%s277 + $0x18] sm:$0xfe]
        %v546 = vld [vmem:[%s277 + $0x40] sm:$0x1]
        %v547 = vld [vmem:[%s277 + $0x48] sm:$0x1]
        %v548 = vld [vmem:[%s277 + $0x50] sm:$0x1]
        %v549 = vld [vmem:[%s277 + $0x58] sm:$0x1]
        %s550 = scalar_lea.vmem [#allocation3], 2048
        %v551 = vld [vmem:[%s550] sm:$0xff]
        %v552 = vld [vmem:[%s550 + $0x8] sm:$0xff]
        %v553 = vld [vmem:[%s550 + $0x10] sm:$0xff]
        %v554 = vld [vmem:[%s550 + $0x18] sm:$0xff]
        %v555 = vld [vmem:[%s550 + $0x20] sm:$0xff]
        %v556 = vld [vmem:[%s550 + $0x28] sm:$0xff]
        %v557 = vld [vmem:[%s550 + $0x30] sm:$0xff]
        %v558 = vld [vmem:[%s550 + $0x38] sm:$0xff]
        %v559 = vld [vmem:[%s550 + $0x40] sm:$0xff]
        %v560 = vld [vmem:[%s550 + $0x48] sm:$0xff]
        %v561 = vld [vmem:[%s550 + $0x50] sm:$0xff]
        %v562 = vld [vmem:[%s550 + $0x58] sm:$0xff]
        %v563 = vld [vmem:[%s550 + $0x60] sm:$0xff]
        %v564 = vld [vmem:[%s550 + $0x68] sm:$0xff]
        %v565 = vld [vmem:[%s550 + $0x70] sm:$0xff]
        %v566 = vld [vmem:[%s550 + $0x78] sm:$0xff]
        %v567 = vld [vmem:[%s550 + $0x80] sm:$0xff]
        %v568 = vld [vmem:[%s550 + $0x88] sm:$0xff]
        %v569 = vld [vmem:[%s550 + $0x90] sm:$0xff]
        %v570 = vld [vmem:[%s550 + $0x98] sm:$0xff]
        %v571 = vld [vmem:[%s550 + $0xa0] sm:$0xff]
        %v572 = vld [vmem:[%s550 + $0xa8] sm:$0xff]
        %v573 = vld [vmem:[%s550 + $0xb0] sm:$0xff]
        %v574 = vld [vmem:[%s550 + $0xb8] sm:$0xff]
        %v575 = vld [vmem:[%s550 + $0xc0] sm:$0xff]
        %v576 = vld [vmem:[%s550 + $0xc8] sm:$0xff]
        %v577 = vld [vmem:[%s550 + $0xd0] sm:$0xff]
        %v578 = vld [vmem:[%s550 + $0xd8] sm:$0xff]
        %v579 = vld [vmem:[%s550 + $0xe0] sm:$0xff]
        %v580 = vld [vmem:[%s550 + $0xe8] sm:$0xff]
        %v581 = vld [vmem:[%s550 + $0xf0] sm:$0xff]
        %v582 = vld [vmem:[%s550 + $0xf8] sm:$0xff]
        %v583 = vld [vmem:[%s550 + $0x100] sm:$0xff]
        %v584 = vld [vmem:[%s550 + $0x108] sm:$0xff]
        %v585 = vld [vmem:[%s550 + $0x110] sm:$0xff]
        %v586 = vld [vmem:[%s550 + $0x118] sm:$0xff]
        %v587 = vld [vmem:[%s550 + $0x120] sm:$0xff]
        %v588 = vld [vmem:[%s550 + $0x128] sm:$0xff]
        %v589 = vld [vmem:[%s550 + $0x130] sm:$0xff]
        %v590 = vld [vmem:[%s550 + $0x138] sm:$0xff]
        %v591 = vld [vmem:[%s550 + $0x140] sm:$0xff]
        %v592 = vld [vmem:[%s550 + $0x148] sm:$0xff]
        %v593 = vld [vmem:[%s550 + $0x150] sm:$0xff]
        %v594 = vld [vmem:[%s550 + $0x158] sm:$0xff]
        %v595 = vld [vmem:[%s550 + $0x160] sm:$0xff]
        %v596 = vld [vmem:[%s550 + $0x168] sm:$0xff]
        %v597 = vld [vmem:[%s550 + $0x170] sm:$0xff]
        %v598 = vld [vmem:[%s550 + $0x178] sm:$0xff]
        %v599 = vld [vmem:[%s550 + $0x180] sm:$0xff]
        %v600 = vld [vmem:[%s550 + $0x188] sm:$0xff]
        %v601 = vld [vmem:[%s550 + $0x190] sm:$0xff]
        %v602 = vld [vmem:[%s550 + $0x198] sm:$0xff]
        %v603 = vld [vmem:[%s550 + $0x1a0] sm:$0xff]
        %v604 = vld [vmem:[%s550 + $0x1a8] sm:$0xff]
        %v605 = vld [vmem:[%s550 + $0x1b0] sm:$0xff]
        %v606 = vld [vmem:[%s550 + $0x1b8] sm:$0xff]
        %v607 = vld [vmem:[%s550 + $0x1c0] sm:$0xff]
        %v608 = vld [vmem:[%s550 + $0x1c8] sm:$0xff]
        %v609 = vld [vmem:[%s550 + $0x1d0] sm:$0xff]
        %v610 = vld [vmem:[%s550 + $0x1d8] sm:$0xff]
        %v611 = vld [vmem:[%s550 + $0x1e0] sm:$0xff]
        %v612 = vld [vmem:[%s550 + $0x1e8] sm:$0xff]
        %v613 = vld [vmem:[%s550 + $0x1f0] sm:$0xff]
        %v614 = vld [vmem:[%s550 + $0x1f8] sm:$0xff]
        %v615 = vld [vmem:[%s550 + $0x200] sm:$0xff]
        %v616 = vld [vmem:[%s550 + $0x208] sm:$0xff]
        %v617 = vld [vmem:[%s550 + $0x210] sm:$0xff]
        %v618 = vld [vmem:[%s550 + $0x218] sm:$0xff]
        %v619 = vld [vmem:[%s550 + $0x220] sm:$0xff]
        %v620 = vld [vmem:[%s550 + $0x228] sm:$0xff]
        %v621 = vld [vmem:[%s550 + $0x230] sm:$0xff]
        %v622 = vld [vmem:[%s550 + $0x238] sm:$0xff]
        %v623 = vld [vmem:[%s550 + $0x240] sm:$0xff]
        %v624 = vld [vmem:[%s550 + $0x248] sm:$0xff]
        %v625 = vld [vmem:[%s550 + $0x250] sm:$0xff]
        %v626 = vld [vmem:[%s550 + $0x258] sm:$0xff]
        %v627 = vld [vmem:[%s550 + $0x260] sm:$0xff]
        %v628 = vld [vmem:[%s550 + $0x268] sm:$0xff]
        %v629 = vld [vmem:[%s550 + $0x270] sm:$0xff]
        %v630 = vld [vmem:[%s550 + $0x278] sm:$0xff]
        %v631 = vld [vmem:[%s550 + $0x280] sm:$0xff]
        %v632 = vld [vmem:[%s550 + $0x288] sm:$0xff]
        %v633 = vld [vmem:[%s550 + $0x290] sm:$0xff]
        %v634 = vld [vmem:[%s550 + $0x298] sm:$0xff]
        %v635 = vld [vmem:[%s550 + $0x2a0] sm:$0xff]
        %v636 = vld [vmem:[%s550 + $0x2a8] sm:$0xff]
        %v637 = vld [vmem:[%s550 + $0x2b0] sm:$0xff]
        %v638 = vld [vmem:[%s550 + $0x2b8] sm:$0xff]
        %v639 = vld [vmem:[%s550 + $0x2c0] sm:$0xff]
        %v640 = vld [vmem:[%s550 + $0x2c8] sm:$0xff]
        %v641 = vld [vmem:[%s550 + $0x2d0] sm:$0xff]
        %v642 = vld [vmem:[%s550 + $0x2d8] sm:$0xff]
        %v643 = vld [vmem:[%s550 + $0x2e0] sm:$0xff]
        %v644 = vld [vmem:[%s550 + $0x2e8] sm:$0xff]
        %v645 = vld [vmem:[%s550 + $0x2f0] sm:$0xff]
        %v646 = vld [vmem:[%s550 + $0x2f8] sm:$0xff]
        %v647 = vld [vmem:[%s550 + $0x300] sm:$0xff]
        %v648 = vld [vmem:[%s550 + $0x308] sm:$0xff]
        %v649 = vld [vmem:[%s550 + $0x310] sm:$0xff]
        %v650 = vld [vmem:[%s550 + $0x318] sm:$0xff]
        %v651 = vld [vmem:[%s550 + $0x320] sm:$0xff]
        %v652 = vld [vmem:[%s550 + $0x328] sm:$0xff]
        %v653 = vld [vmem:[%s550 + $0x330] sm:$0xff]
        %v654 = vld [vmem:[%s550 + $0x338] sm:$0xff]
        %v655 = vld [vmem:[%s550 + $0x340] sm:$0xff]
        %v656 = vld [vmem:[%s550 + $0x348] sm:$0xff]
        %v657 = vld [vmem:[%s550 + $0x350] sm:$0xff]
        %v658 = vld [vmem:[%s550 + $0x358] sm:$0xff]
        %v659 = vld [vmem:[%s550 + $0x360] sm:$0xff]
        %v660 = vld [vmem:[%s550 + $0x368] sm:$0xff]
        %v661 = vld [vmem:[%s550 + $0x370] sm:$0xff]
        %v662 = vld [vmem:[%s550 + $0x378] sm:$0xff]
        %v663 = vld [vmem:[%s550 + $0x380] sm:$0xff]
        %v664 = vld [vmem:[%s550 + $0x388] sm:$0xff]
        %v665 = vld [vmem:[%s550 + $0x390] sm:$0xff]
        %v666 = vld [vmem:[%s550 + $0x398] sm:$0xff]
        %v667 = vld [vmem:[%s550 + $0x3a0] sm:$0xff]
        %v668 = vld [vmem:[%s550 + $0x3a8] sm:$0xff]
        %v669 = vld [vmem:[%s550 + $0x3b0] sm:$0xff]
        %v670 = vld [vmem:[%s550 + $0x3b8] sm:$0xff]
        %v671 = vld [vmem:[%s550 + $0x3c0] sm:$0xff]
        %v672 = vld [vmem:[%s550 + $0x3c8] sm:$0xff]
        %v673 = vld [vmem:[%s550 + $0x3d0] sm:$0xff]
        %v674 = vld [vmem:[%s550 + $0x3d8] sm:$0xff]
        %v675 = vld [vmem:[%s550 + $0x3e0] sm:$0xff]
        %v676 = vld [vmem:[%s550 + $0x3e8] sm:$0xff]
        %v677 = vld [vmem:[%s550 + $0x3f0] sm:$0xff]
        %v678 = vld [vmem:[%s550 + $0x3f8] sm:$0xff]
        %v679 = vld [vmem:[%s550 + $0x400] sm:$0xff]
        %v680 = vld [vmem:[%s550 + $0x408] sm:$0xff]
        %v681 = vld [vmem:[%s550 + $0x410] sm:$0xff]
        %v682 = vld [vmem:[%s550 + $0x418] sm:$0xff]
        %v683 = vld [vmem:[%s550 + $0x420] sm:$0xff]
        %v684 = vld [vmem:[%s550 + $0x428] sm:$0xff]
        %v685 = vld [vmem:[%s550 + $0x430] sm:$0xff]
        %v686 = vld [vmem:[%s550 + $0x438] sm:$0xff]
        %v687 = vld [vmem:[%s550 + $0x440] sm:$0xff]
        %v688 = vld [vmem:[%s550 + $0x448] sm:$0xff]
        %v689 = vld [vmem:[%s550 + $0x450] sm:$0xff]
        %v690 = vld [vmem:[%s550 + $0x458] sm:$0xff]
        %v691 = vld [vmem:[%s550 + $0x460] sm:$0xff]
        %v692 = vld [vmem:[%s550 + $0x468] sm:$0xff]
        %v693 = vld [vmem:[%s550 + $0x470] sm:$0xff]
        %v694 = vld [vmem:[%s550 + $0x478] sm:$0xff]
        %v695 = vld [vmem:[%s550 + $0x480] sm:$0xff]
        %v696 = vld [vmem:[%s550 + $0x488] sm:$0xff]
        %v697 = vld [vmem:[%s550 + $0x490] sm:$0xff]
        %v698 = vld [vmem:[%s550 + $0x498] sm:$0xff]
        %v699 = vld [vmem:[%s550 + $0x4a0] sm:$0xff]
        %v700 = vld [vmem:[%s550 + $0x4a8] sm:$0xff]
        %v701 = vld [vmem:[%s550 + $0x4b0] sm:$0xff]
        %v702 = vld [vmem:[%s550 + $0x4b8] sm:$0xff]
        %v703 = vld [vmem:[%s550 + $0x4c0] sm:$0xff]
        %v704 = vld [vmem:[%s550 + $0x4c8] sm:$0xff]
        %v705 = vld [vmem:[%s550 + $0x4d0] sm:$0xff]
        %v706 = vld [vmem:[%s550 + $0x4d8] sm:$0xff]
        %v707 = vld [vmem:[%s550 + $0x4e0] sm:$0xff]
        %v708 = vld [vmem:[%s550 + $0x4e8] sm:$0xff]
        %v709 = vld [vmem:[%s550 + $0x4f0] sm:$0xff]
        %v710 = vld [vmem:[%s550 + $0x4f8] sm:$0xff]
        %v711 = vld [vmem:[%s550 + $0x500] sm:$0xff]
        %v712 = vld [vmem:[%s550 + $0x508] sm:$0xff]
        %v713 = vld [vmem:[%s550 + $0x510] sm:$0xff]
        %v714 = vld [vmem:[%s550 + $0x518] sm:$0xff]
        %v715 = vld [vmem:[%s550 + $0x520] sm:$0xff]
        %v716 = vld [vmem:[%s550 + $0x528] sm:$0xff]
        %v717 = vld [vmem:[%s550 + $0x530] sm:$0xff]
        %v718 = vld [vmem:[%s550 + $0x538] sm:$0xff]
        %v719 = vld [vmem:[%s550 + $0x540] sm:$0xff]
        %v720 = vld [vmem:[%s550 + $0x548] sm:$0xff]
        %v721 = vld [vmem:[%s550 + $0x550] sm:$0xff]
        %v722 = vld [vmem:[%s550 + $0x558] sm:$0xff]
        %v723 = vld [vmem:[%s550 + $0x560] sm:$0xff]
        %v724 = vld [vmem:[%s550 + $0x568] sm:$0xff]
        %v725 = vld [vmem:[%s550 + $0x570] sm:$0xff]
        %v726 = vld [vmem:[%s550 + $0x578] sm:$0xff]
        %v727 = vld [vmem:[%s550 + $0x580] sm:$0xff]
        %v728 = vld [vmem:[%s550 + $0x588] sm:$0xff]
        %v729 = vld [vmem:[%s550 + $0x590] sm:$0xff]
        %v730 = vld [vmem:[%s550 + $0x598] sm:$0xff]
        %v731 = vld [vmem:[%s550 + $0x5a0] sm:$0xff]
        %v732 = vld [vmem:[%s550 + $0x5a8] sm:$0xff]
        %v733 = vld [vmem:[%s550 + $0x5b0] sm:$0xff]
        %v734 = vld [vmem:[%s550 + $0x5b8] sm:$0xff]
        %v735 = vld [vmem:[%s550 + $0x5c0] sm:$0xff]
        %v736 = vld [vmem:[%s550 + $0x5c8] sm:$0xff]
        %v737 = vld [vmem:[%s550 + $0x5d0] sm:$0xff]
        %v738 = vld [vmem:[%s550 + $0x5d8] sm:$0xff]
        %v739 = vld [vmem:[%s550 + $0x5e0] sm:$0xff]
        %v740 = vld [vmem:[%s550 + $0x5e8] sm:$0xff]
        %v741 = vld [vmem:[%s550 + $0x5f0] sm:$0xff]
        %v742 = vld [vmem:[%s550 + $0x5f8] sm:$0xff]
        %v743 = vld [vmem:[%s550 + $0x600] sm:$0xff]
        %v744 = vld [vmem:[%s550 + $0x608] sm:$0xff]
        %v745 = vld [vmem:[%s550 + $0x610] sm:$0xff]
        %v746 = vld [vmem:[%s550 + $0x618] sm:$0xff]
        %v747 = vld [vmem:[%s550 + $0x620] sm:$0xff]
        %v748 = vld [vmem:[%s550 + $0x628] sm:$0xff]
        %v749 = vld [vmem:[%s550 + $0x630] sm:$0xff]
        %v750 = vld [vmem:[%s550 + $0x638] sm:$0xff]
        %v751 = vld [vmem:[%s550 + $0x640] sm:$0xff]
        %v752 = vld [vmem:[%s550 + $0x648] sm:$0xff]
        %v753 = vld [vmem:[%s550 + $0x650] sm:$0xff]
        %v754 = vld [vmem:[%s550 + $0x658] sm:$0xff]
        %v755 = vld [vmem:[%s550 + $0x660] sm:$0xff]
        %v756 = vld [vmem:[%s550 + $0x668] sm:$0xff]
        %v757 = vld [vmem:[%s550 + $0x670] sm:$0xff]
        %v758 = vld [vmem:[%s550 + $0x678] sm:$0xff]
        %v759 = vld [vmem:[%s550 + $0x680] sm:$0xff]
        %v760 = vld [vmem:[%s550 + $0x688] sm:$0xff]
        %v761 = vld [vmem:[%s550 + $0x690] sm:$0xff]
        %v762 = vld [vmem:[%s550 + $0x698] sm:$0xff]
        %v763 = vld [vmem:[%s550 + $0x6a0] sm:$0xff]
        %v764 = vld [vmem:[%s550 + $0x6a8] sm:$0xff]
        %v765 = vld [vmem:[%s550 + $0x6b0] sm:$0xff]
        %v766 = vld [vmem:[%s550 + $0x6b8] sm:$0xff]
        %v767 = vld [vmem:[%s550 + $0x6c0] sm:$0xff]
        %v768 = vld [vmem:[%s550 + $0x6c8] sm:$0xff]
        %v769 = vld [vmem:[%s550 + $0x6d0] sm:$0xff]
        %v770 = vld [vmem:[%s550 + $0x6d8] sm:$0xff]
        %v771 = vld [vmem:[%s550 + $0x6e0] sm:$0xff]
        %v772 = vld [vmem:[%s550 + $0x6e8] sm:$0xff]
        %v773 = vld [vmem:[%s550 + $0x6f0] sm:$0xff]
        %v774 = vld [vmem:[%s550 + $0x6f8] sm:$0xff]
        %v775 = vld [vmem:[%s550 + $0x700] sm:$0xff]
        %v776 = vld [vmem:[%s550 + $0x708] sm:$0xff]
        %v777 = vld [vmem:[%s550 + $0x710] sm:$0xff]
        %v778 = vld [vmem:[%s550 + $0x718] sm:$0xff]
        %v779 = vld [vmem:[%s550 + $0x720] sm:$0xff]
        %v780 = vld [vmem:[%s550 + $0x728] sm:$0xff]
        %v781 = vld [vmem:[%s550 + $0x730] sm:$0xff]
        %v782 = vld [vmem:[%s550 + $0x738] sm:$0xff]
        %v783 = vld [vmem:[%s550 + $0x740] sm:$0xff]
        %v784 = vld [vmem:[%s550 + $0x748] sm:$0xff]
        %v785 = vld [vmem:[%s550 + $0x750] sm:$0xff]
        %v786 = vld [vmem:[%s550 + $0x758] sm:$0xff]
        %v787 = vld [vmem:[%s550 + $0x760] sm:$0xff]
        %v788 = vld [vmem:[%s550 + $0x768] sm:$0xff]
        %v789 = vld [vmem:[%s550 + $0x770] sm:$0xff]
        %v790 = vld [vmem:[%s550 + $0x778] sm:$0xff]
        %v791 = vld [vmem:[%s550 + $0x780] sm:$0xff]
        %v792 = vld [vmem:[%s550 + $0x788] sm:$0xff]
        %v793 = vld [vmem:[%s550 + $0x790] sm:$0xff]
        %v794 = vld [vmem:[%s550 + $0x798] sm:$0xff]
        %v795 = vld [vmem:[%s550 + $0x7a0] sm:$0xff]
        %v796 = vld [vmem:[%s550 + $0x7a8] sm:$0xff]
        %v797 = vld [vmem:[%s550 + $0x7b0] sm:$0xff]
        %v798 = vld [vmem:[%s550 + $0x7b8] sm:$0xff]
        %v799 = vld [vmem:[%s550 + $0x7c0] sm:$0xff]
        %v800 = vld [vmem:[%s550 + $0x7c8] sm:$0xff]
        %v801 = vld [vmem:[%s550 + $0x7d0] sm:$0xff]
        %v802 = vld [vmem:[%s550 + $0x7d8] sm:$0xff]
        %v803 = vld [vmem:[%s550 + $0x7e0] sm:$0xff]
        %v804 = vld [vmem:[%s550 + $0x7e8] sm:$0xff]
        %v805 = vld [vmem:[%s550 + $0x7f0] sm:$0xff]
        %v806 = vld [vmem:[%s550 + $0x7f8] sm:$0xff]
        %vm819 = vcmask 1046528
        %v820 = vrot.slane %v542, 1
        %v821 = vrot.slane %v282, 1
        %v822 = vsel %vm819, %v820, %v821
        %v823 = vrot.slane %v543, 1
        %v824 = vrot.slane %v283, 1
        %v825 = vsel %vm819, %v823, %v824
        %v826 = vrot.slane %v544, 1
        %v827 = vrot.slane %v284, 1
        %v828 = vsel %vm819, %v826, %v827
        %v829 = vrot.slane %v545, 1
        %v830 = vrot.slane %v285, 1
        %v831 = vsel %vm819, %v829, %v830
        %v832 = vrot.slane %v546, 1
        %v833 = vsel %vm819, %v821, %v832
        %v834 = vrot.slane %v547, 1
        %v835 = vsel %vm819, %v824, %v834
        %v836 = vrot.slane %v548, 1
        %v837 = vsel %vm819, %v827, %v836
        %v838 = vrot.slane %v549, 1
        %v839 = vsel %vm819, %v830, %v838
        %848 = vmatprep.subr.mxu0 %v612
        %849 = vmatpush1.msra.mxu0 %v611
        %850 = vmatprep.subr.mxu0 %v608
        %851 = vmatpush1.msra.mxu0 %v607
        %852 = vmatprep.subr.mxu0 %v604
        %853 = vmatpush1.msra.mxu0 %v603
        %854 = vmatprep.subr.mxu0 %v600
        %855 = vmatpush1.msra.mxu0 %v599
        %856 = vmatprep.subr.mxu0 %v596
        %857 = vmatpush1.msra.mxu0 %v595
        %858 = vmatprep.subr.mxu0 %v592
        %859 = vmatpush1.msra.mxu0 %v591
        %860 = vmatprep.subr.mxu0 %v588
        %861 = vmatpush1.msra.mxu0 %v587
        %862 = vmatprep.subr.mxu0 %v584
        %863 = vmatpush1.msra.mxu0 %v583
        %864 = vmatprep.subr.mxu0 %v580
        %865 = vmatpush1.msra.mxu0 %v579
        %866 = vmatprep.subr.mxu0 %v576
        %867 = vmatpush1.msra.mxu0 %v575
        %868 = vmatprep.subr.mxu0 %v572
        %869 = vmatpush1.msra.mxu0 %v571
        %870 = vmatprep.subr.mxu0 %v568
        %871 = vmatpush1.msra.mxu0 %v567
        %872 = vmatprep.subr.mxu0 %v564
        %873 = vmatpush1.msra.mxu0 %v563
        %874 = vmatprep.subr.mxu0 %v560
        %875 = vmatpush1.msra.mxu0 %v559
        %876 = vmatprep.subr.mxu0 %v556
        %877 = vmatpush1.msra.mxu0 %v555
        %878 = vmatprep.subr.mxu0 %v552
        %879 = vmatpush1.msra.mxu0 %v551
        %880 = vmatprep.subr.mxu0 %v676
        %881 = vmatpush2.msra.mxu0 %v675
        %882 = vmatprep.subr.mxu0 %v672
        %883 = vmatpush2.msra.mxu0 %v671
        %884 = vmatprep.subr.mxu0 %v668
        %885 = vmatpush2.msra.mxu0 %v667
        %886 = vmatprep.subr.mxu0 %v664
        %887 = vmatpush2.msra.mxu0 %v663
        %888 = vmatprep.subr.mxu0 %v660
        %889 = vmatpush2.msra.mxu0 %v659
        %890 = vmatprep.subr.mxu0 %v656
        %891 = vmatpush2.msra.mxu0 %v655
        %892 = vmatprep.subr.mxu0 %v652
        %893 = vmatpush2.msra.mxu0 %v651
        %894 = vmatprep.subr.mxu0 %v648
        %895 = vmatpush2.msra.mxu0 %v647
        %896 = vmatprep.subr.mxu0 %v644
        %897 = vmatpush2.msra.mxu0 %v643
        %898 = vmatprep.subr.mxu0 %v640
        %899 = vmatpush2.msra.mxu0 %v639
        %900 = vmatprep.subr.mxu0 %v636
        %901 = vmatpush2.msra.mxu0 %v635
        %902 = vmatprep.subr.mxu0 %v632
        %903 = vmatpush2.msra.mxu0 %v631
        %904 = vmatprep.subr.mxu0 %v628
        %905 = vmatpush2.msra.mxu0 %v627
        %906 = vmatprep.subr.mxu0 %v624
        %907 = vmatpush2.msra.mxu0 %v623
        %908 = vmatprep.subr.mxu0 %v620
        %909 = vmatpush2.msra.mxu0 %v619
        %910 = vmatprep.subr.mxu0 %v616
        %911 = vmatpush2.msra.mxu0 %v615
        %912 = vmatprep.mubr.f32.mxu0 %v825
        %913 = vmatmul.mubr.f32.gmra.mxu0 %v822
        %v914 = vpop.f32.mrf.mxu0
        %v915 = vadd.f32 0.0, %v914
        %v916 = vpop.f32.mrf.mxu0
        %v917 = vadd.f32 0.0, %v916
        %918 = vmatprep.mubr.f32.mxu0 %v835
        %919 = vmatmul.mubr.f32.gmra.mxu0 %v833
        %v920 = vpop.f32.mrf.mxu0
        %v921 = vadd.f32 0.0, %v920
        %v922 = vpop.f32.mrf.mxu0
        %v923 = vadd.f32 0.0, %v922
        %924 = vdwg.mxu0
        %925 = vmatprep.subr.mxu0 %v740
        %926 = vmatpush1.msra.mxu0 %v739
        %927 = vmatprep.subr.mxu0 %v736
        %928 = vmatpush1.msra.mxu0 %v735
        %929 = vmatprep.subr.mxu0 %v732
        %930 = vmatpush1.msra.mxu0 %v731
        %931 = vmatprep.subr.mxu0 %v728
        %932 = vmatpush1.msra.mxu0 %v727
        %933 = vmatprep.subr.mxu0 %v724
        %934 = vmatpush1.msra.mxu0 %v723
        %935 = vmatprep.subr.mxu0 %v720
        %936 = vmatpush1.msra.mxu0 %v719
        %937 = vmatprep.subr.mxu0 %v716
        %938 = vmatpush1.msra.mxu0 %v715
        %939 = vmatprep.subr.mxu0 %v712
        %940 = vmatpush1.msra.mxu0 %v711
        %941 = vmatprep.subr.mxu0 %v708
        %942 = vmatpush1.msra.mxu0 %v707
        %943 = vmatprep.subr.mxu0 %v704
        %944 = vmatpush1.msra.mxu0 %v703
        %945 = vmatprep.subr.mxu0 %v700
        %946 = vmatpush1.msra.mxu0 %v699
        %947 = vmatprep.subr.mxu0 %v696
        %948 = vmatpush1.msra.mxu0 %v695
        %949 = vmatprep.subr.mxu0 %v692
        %950 = vmatpush1.msra.mxu0 %v691
        %951 = vmatprep.subr.mxu0 %v688
        %952 = vmatpush1.msra.mxu0 %v687
        %953 = vmatprep.subr.mxu0 %v684
        %954 = vmatpush1.msra.mxu0 %v683
        %955 = vmatprep.subr.mxu0 %v680
        %956 = vmatpush1.msra.mxu0 %v679
        %957 = vmatprep.subr.mxu0 %v804
        %958 = vmatpush2.msra.mxu0 %v803
        %959 = vmatprep.subr.mxu0 %v800
        %960 = vmatpush2.msra.mxu0 %v799
        %961 = vmatprep.subr.mxu0 %v796
        %962 = vmatpush2.msra.mxu0 %v795
        %963 = vmatprep.subr.mxu0 %v792
        %964 = vmatpush2.msra.mxu0 %v791
        %965 = vmatprep.subr.mxu0 %v788
        %966 = vmatpush2.msra.mxu0 %v787
        %967 = vmatprep.subr.mxu0 %v784
        %968 = vmatpush2.msra.mxu0 %v783
        %969 = vmatprep.subr.mxu0 %v780
        %970 = vmatpush2.msra.mxu0 %v779
        %971 = vmatprep.subr.mxu0 %v776
        %972 = vmatpush2.msra.mxu0 %v775
        %973 = vmatprep.subr.mxu0 %v772
        %974 = vmatpush2.msra.mxu0 %v771
        %975 = vmatprep.subr.mxu0 %v768
        %976 = vmatpush2.msra.mxu0 %v767
        %977 = vmatprep.subr.mxu0 %v764
        %978 = vmatpush2.msra.mxu0 %v763
        %979 = vmatprep.subr.mxu0 %v760
        %980 = vmatpush2.msra.mxu0 %v759
        %981 = vmatprep.subr.mxu0 %v756
        %982 = vmatpush2.msra.mxu0 %v755
        %983 = vmatprep.subr.mxu0 %v752
        %984 = vmatpush2.msra.mxu0 %v751
        %985 = vmatprep.subr.mxu0 %v748
        %986 = vmatpush2.msra.mxu0 %v747
        %987 = vmatprep.subr.mxu0 %v744
        %988 = vmatpush2.msra.mxu0 %v743
        %989 = vmatprep.mubr.f32.mxu0 %v831
        %990 = vmatmul.mubr.f32.gmra.mxu0 %v828
        %v991 = vpop.f32.mrf.mxu0
        %v992 = vadd.f32 %v915, %v991
        %v993 = vpop.f32.mrf.mxu0
        %v994 = vadd.f32 %v917, %v993
        %995 = vmatprep.mubr.f32.mxu0 %v839
        %996 = vmatmul.mubr.f32.gmra.mxu0 %v837
        %v997 = vpop.f32.mrf.mxu0
        %v998 = vadd.f32 %v921, %v997
        %v999 = vpop.f32.mrf.mxu0
        %v1000 = vadd.f32 %v923, %v999
        %1001 = vdwg.mxu0
        %1002 = vmatprep.subr.mxu0 %v614
        %1003 = vmatpush1.msra.mxu0 %v613
        %1004 = vmatprep.subr.mxu0 %v610
        %1005 = vmatpush1.msra.mxu0 %v609
        %1006 = vmatprep.subr.mxu0 %v606
        %1007 = vmatpush1.msra.mxu0 %v605
        %1008 = vmatprep.subr.mxu0 %v602
        %1009 = vmatpush1.msra.mxu0 %v601
        %1010 = vmatprep.subr.mxu0 %v598
        %1011 = vmatpush1.msra.mxu0 %v597
        %1012 = vmatprep.subr.mxu0 %v594
        %1013 = vmatpush1.msra.mxu0 %v593
        %1014 = vmatprep.subr.mxu0 %v590
        %1015 = vmatpush1.msra.mxu0 %v589
        %1016 = vmatprep.subr.mxu0 %v586
        %1017 = vmatpush1.msra.mxu0 %v585
        %1018 = vmatprep.subr.mxu0 %v582
        %1019 = vmatpush1.msra.mxu0 %v581
        %1020 = vmatprep.subr.mxu0 %v578
        %1021 = vmatpush1.msra.mxu0 %v577
        %1022 = vmatprep.subr.mxu0 %v574
        %1023 = vmatpush1.msra.mxu0 %v573
        %1024 = vmatprep.subr.mxu0 %v570
        %1025 = vmatpush1.msra.mxu0 %v569
        %1026 = vmatprep.subr.mxu0 %v566
        %1027 = vmatpush1.msra.mxu0 %v565
        %1028 = vmatprep.subr.mxu0 %v562
        %1029 = vmatpush1.msra.mxu0 %v561
        %1030 = vmatprep.subr.mxu0 %v558
        %1031 = vmatpush1.msra.mxu0 %v557
        %1032 = vmatprep.subr.mxu0 %v554
        %1033 = vmatpush1.msra.mxu0 %v553
        %1034 = vmatprep.subr.mxu0 %v678
        %1035 = vmatpush2.msra.mxu0 %v677
        %1036 = vmatprep.subr.mxu0 %v674
        %1037 = vmatpush2.msra.mxu0 %v673
        %1038 = vmatprep.subr.mxu0 %v670
        %1039 = vmatpush2.msra.mxu0 %v669
        %1040 = vmatprep.subr.mxu0 %v666
        %1041 = vmatpush2.msra.mxu0 %v665
        %1042 = vmatprep.subr.mxu0 %v662
        %1043 = vmatpush2.msra.mxu0 %v661
        %1044 = vmatprep.subr.mxu0 %v658
        %1045 = vmatpush2.msra.mxu0 %v657
        %1046 = vmatprep.subr.mxu0 %v654
        %1047 = vmatpush2.msra.mxu0 %v653
        %1048 = vmatprep.subr.mxu0 %v650
        %1049 = vmatpush2.msra.mxu0 %v649
        %1050 = vmatprep.subr.mxu0 %v646
        %1051 = vmatpush2.msra.mxu0 %v645
        %1052 = vmatprep.subr.mxu0 %v642
        %1053 = vmatpush2.msra.mxu0 %v641
        %1054 = vmatprep.subr.mxu0 %v638
        %1055 = vmatpush2.msra.mxu0 %v637
        %1056 = vmatprep.subr.mxu0 %v634
        %1057 = vmatpush2.msra.mxu0 %v633
        %1058 = vmatprep.subr.mxu0 %v630
        %1059 = vmatpush2.msra.mxu0 %v629
        %1060 = vmatprep.subr.mxu0 %v626
        %1061 = vmatpush2.msra.mxu0 %v625
        %1062 = vmatprep.subr.mxu0 %v622
        %1063 = vmatpush2.msra.mxu0 %v621
        %1064 = vmatprep.subr.mxu0 %v618
        %1065 = vmatpush2.msra.mxu0 %v617
        %1066 = vmatprep.mubr.f32.mxu0 %v825
        %1067 = vmatmul.mubr.f32.gmra.mxu0 %v822
        %v1068 = vpop.f32.mrf.mxu0
        %v1069 = vadd.f32 0.0, %v1068
        %v1070 = vpop.f32.mrf.mxu0
        %v1071 = vadd.f32 0.0, %v1070
        %1072 = vmatprep.mubr.f32.mxu0 %v835
        %1073 = vmatmul.mubr.f32.gmra.mxu0 %v833
        %v1074 = vpop.f32.mrf.mxu0
        %v1075 = vadd.f32 0.0, %v1074
        %v1076 = vpop.f32.mrf.mxu0
        %v1077 = vadd.f32 0.0, %v1076
        %1078 = vdwg.mxu0
        %1079 = vmatprep.subr.mxu0 %v742
        %1080 = vmatpush1.msra.mxu0 %v741
        %1081 = vmatprep.subr.mxu0 %v738
        %1082 = vmatpush1.msra.mxu0 %v737
        %1083 = vmatprep.subr.mxu0 %v734
        %1084 = vmatpush1.msra.mxu0 %v733
        %1085 = vmatprep.subr.mxu0 %v730
        %1086 = vmatpush1.msra.mxu0 %v729
        %1087 = vmatprep.subr.mxu0 %v726
        %1088 = vmatpush1.msra.mxu0 %v725
        %1089 = vmatprep.subr.mxu0 %v722
        %1090 = vmatpush1.msra.mxu0 %v721
        %1091 = vmatprep.subr.mxu0 %v718
        %1092 = vmatpush1.msra.mxu0 %v717
        %1093 = vmatprep.subr.mxu0 %v714
        %1094 = vmatpush1.msra.mxu0 %v713
        %1095 = vmatprep.subr.mxu0 %v710
        %1096 = vmatpush1.msra.mxu0 %v709
        %1097 = vmatprep.subr.mxu0 %v706
        %1098 = vmatpush1.msra.mxu0 %v705
        %1099 = vmatprep.subr.mxu0 %v702
        %1100 = vmatpush1.msra.mxu0 %v701
        %1101 = vmatprep.subr.mxu0 %v698
        %1102 = vmatpush1.msra.mxu0 %v697
        %1103 = vmatprep.subr.mxu0 %v694
        %1104 = vmatpush1.msra.mxu0 %v693
        %1105 = vmatprep.subr.mxu0 %v690
        %1106 = vmatpush1.msra.mxu0 %v689
        %1107 = vmatprep.subr.mxu0 %v686
        %1108 = vmatpush1.msra.mxu0 %v685
        %1109 = vmatprep.subr.mxu0 %v682
        %1110 = vmatpush1.msra.mxu0 %v681
        %1111 = vmatprep.subr.mxu0 %v806
        %1112 = vmatpush2.msra.mxu0 %v805
        %1113 = vmatprep.subr.mxu0 %v802
        %1114 = vmatpush2.msra.mxu0 %v801
        %1115 = vmatprep.subr.mxu0 %v798
        %1116 = vmatpush2.msra.mxu0 %v797
        %1117 = vmatprep.subr.mxu0 %v794
        %1118 = vmatpush2.msra.mxu0 %v793
        %1119 = vmatprep.subr.mxu0 %v790
        %1120 = vmatpush2.msra.mxu0 %v789
        %1121 = vmatprep.subr.mxu0 %v786
        %1122 = vmatpush2.msra.mxu0 %v785
        %1123 = vmatprep.subr.mxu0 %v782
        %1124 = vmatpush2.msra.mxu0 %v781
        %1125 = vmatprep.subr.mxu0 %v778
        %1126 = vmatpush2.msra.mxu0 %v777
        %1127 = vmatprep.subr.mxu0 %v774
        %1128 = vmatpush2.msra.mxu0 %v773
        %1129 = vmatprep.subr.mxu0 %v770
        %1130 = vmatpush2.msra.mxu0 %v769
        %1131 = vmatprep.subr.mxu0 %v766
        %1132 = vmatpush2.msra.mxu0 %v765
        %1133 = vmatprep.subr.mxu0 %v762
        %1134 = vmatpush2.msra.mxu0 %v761
        %1135 = vmatprep.subr.mxu0 %v758
        %1136 = vmatpush2.msra.mxu0 %v757
        %1137 = vmatprep.subr.mxu0 %v754
        %1138 = vmatpush2.msra.mxu0 %v753
        %1139 = vmatprep.subr.mxu0 %v750
        %1140 = vmatpush2.msra.mxu0 %v749
        %1141 = vmatprep.subr.mxu0 %v746
        %1142 = vmatpush2.msra.mxu0 %v745
        %1143 = vmatprep.mubr.f32.mxu0 %v831
        %1144 = vmatmul.mubr.f32.gmra.mxu0 %v828
        %v1145 = vpop.f32.mrf.mxu0
        %v1146 = vadd.f32 %v1069, %v1145
        %v1147 = vpop.f32.mrf.mxu0
        %v1148 = vadd.f32 %v1071, %v1147
        %1149 = vmatprep.mubr.f32.mxu0 %v839
        %1150 = vmatmul.mubr.f32.gmra.mxu0 %v837
        %v1151 = vpop.f32.mrf.mxu0
        %v1152 = vadd.f32 %v1075, %v1151
        %v1153 = vpop.f32.mrf.mxu0
        %v1154 = vadd.f32 %v1077, %v1153
        %1155 = vdwg.mxu0
        %1156 = vmatprep.subr.mxu0 %v347
        %1157 = vmatpush1.msra.mxu0 %v346
        %1158 = vmatprep.subr.mxu0 %v343
        %1159 = vmatpush1.msra.mxu0 %v342
        %1160 = vmatprep.subr.mxu0 %v339
        %1161 = vmatpush1.msra.mxu0 %v338
        %1162 = vmatprep.subr.mxu0 %v335
        %1163 = vmatpush1.msra.mxu0 %v334
        %1164 = vmatprep.subr.mxu0 %v331
        %1165 = vmatpush1.msra.mxu0 %v330
        %1166 = vmatprep.subr.mxu0 %v327
        %1167 = vmatpush1.msra.mxu0 %v326
        %1168 = vmatprep.subr.mxu0 %v323
        %1169 = vmatpush1.msra.mxu0 %v322
        %1170 = vmatprep.subr.mxu0 %v319
        %1171 = vmatpush1.msra.mxu0 %v318
        %1172 = vmatprep.subr.mxu0 %v315
        %1173 = vmatpush1.msra.mxu0 %v314
        %1174 = vmatprep.subr.mxu0 %v311
        %1175 = vmatpush1.msra.mxu0 %v310
        %1176 = vmatprep.subr.mxu0 %v307
        %1177 = vmatpush1.msra.mxu0 %v306
        %1178 = vmatprep.subr.mxu0 %v303
        %1179 = vmatpush1.msra.mxu0 %v302
        %1180 = vmatprep.subr.mxu0 %v299
        %1181 = vmatpush1.msra.mxu0 %v298
        %1182 = vmatprep.subr.mxu0 %v295
        %1183 = vmatpush1.msra.mxu0 %v294
        %1184 = vmatprep.subr.mxu0 %v291
        %1185 = vmatpush1.msra.mxu0 %v290
        %1186 = vmatprep.subr.mxu0 %v287
        %1187 = vmatpush1.msra.mxu0 %v286
        %1188 = vmatprep.subr.mxu0 %v411
        %1189 = vmatpush2.msra.mxu0 %v410
        %1190 = vmatprep.subr.mxu0 %v407
        %1191 = vmatpush2.msra.mxu0 %v406
        %1192 = vmatprep.subr.mxu0 %v403
        %1193 = vmatpush2.msra.mxu0 %v402
        %1194 = vmatprep.subr.mxu0 %v399
        %1195 = vmatpush2.msra.mxu0 %v398
        %1196 = vmatprep.subr.mxu0 %v395
        %1197 = vmatpush2.msra.mxu0 %v394
        %1198 = vmatprep.subr.mxu0 %v391
        %1199 = vmatpush2.msra.mxu0 %v390
        %1200 = vmatprep.subr.mxu0 %v387
        %1201 = vmatpush2.msra.mxu0 %v386
        %1202 = vmatprep.subr.mxu0 %v383
        %1203 = vmatpush2.msra.mxu0 %v382
        %1204 = vmatprep.subr.mxu0 %v379
        %1205 = vmatpush2.msra.mxu0 %v378
        %1206 = vmatprep.subr.mxu0 %v375
        %1207 = vmatpush2.msra.mxu0 %v374
        %1208 = vmatprep.subr.mxu0 %v371
        %1209 = vmatpush2.msra.mxu0 %v370
        %1210 = vmatprep.subr.mxu0 %v367
        %1211 = vmatpush2.msra.mxu0 %v366
        %1212 = vmatprep.subr.mxu0 %v363
        %1213 = vmatpush2.msra.mxu0 %v362
        %1214 = vmatprep.subr.mxu0 %v359
        %1215 = vmatpush2.msra.mxu0 %v358
        %1216 = vmatprep.subr.mxu0 %v355
        %1217 = vmatpush2.msra.mxu0 %v354
        %1218 = vmatprep.subr.mxu0 %v351
        %1219 = vmatpush2.msra.mxu0 %v350
        %1220 = vmatprep.mubr.f32.mxu0 %v279
        %1221 = vmatmul.mubr.f32.gmra.mxu0 %v278
        %v1222 = vpop.f32.mrf.mxu0
        %v1223 = vadd.f32 %v992, %v1222
        %v1224 = vpop.f32.mrf.mxu0
        %v1225 = vadd.f32 %v994, %v1224
        %1226 = vmatprep.mubr.f32.mxu0 %v283
        %1227 = vmatmul.mubr.f32.gmra.mxu0 %v282
        %v1228 = vpop.f32.mrf.mxu0
        %v1229 = vadd.f32 %v998, %v1228
        %v1230 = vpop.f32.mrf.mxu0
        %v1231 = vadd.f32 %v1000, %v1230
        %1232 = vdwg.mxu0
        %1233 = vmatprep.subr.mxu0 %v475
        %1234 = vmatpush1.msra.mxu0 %v474
        %1235 = vmatprep.subr.mxu0 %v471
        %1236 = vmatpush1.msra.mxu0 %v470
        %1237 = vmatprep.subr.mxu0 %v467
        %1238 = vmatpush1.msra.mxu0 %v466
        %1239 = vmatprep.subr.mxu0 %v463
        %1240 = vmatpush1.msra.mxu0 %v462
        %1241 = vmatprep.subr.mxu0 %v459
        %1242 = vmatpush1.msra.mxu0 %v458
        %1243 = vmatprep.subr.mxu0 %v455
        %1244 = vmatpush1.msra.mxu0 %v454
        %1245 = vmatprep.subr.mxu0 %v451
        %1246 = vmatpush1.msra.mxu0 %v450
        %1247 = vmatprep.subr.mxu0 %v447
        %1248 = vmatpush1.msra.mxu0 %v446
        %1249 = vmatprep.subr.mxu0 %v443
        %1250 = vmatpush1.msra.mxu0 %v442
        %1251 = vmatprep.subr.mxu0 %v439
        %1252 = vmatpush1.msra.mxu0 %v438
        %1253 = vmatprep.subr.mxu0 %v435
        %1254 = vmatpush1.msra.mxu0 %v434
        %1255 = vmatprep.subr.mxu0 %v431
        %1256 = vmatpush1.msra.mxu0 %v430
        %1257 = vmatprep.subr.mxu0 %v427
        %1258 = vmatpush1.msra.mxu0 %v426
        %1259 = vmatprep.subr.mxu0 %v423
        %1260 = vmatpush1.msra.mxu0 %v422
        %1261 = vmatprep.subr.mxu0 %v419
        %1262 = vmatpush1.msra.mxu0 %v418
        %1263 = vmatprep.subr.mxu0 %v415
        %1264 = vmatpush1.msra.mxu0 %v414
        %1265 = vmatprep.subr.mxu0 %v539
        %1266 = vmatpush2.msra.mxu0 %v538
        %1267 = vmatprep.subr.mxu0 %v535
        %1268 = vmatpush2.msra.mxu0 %v534
        %1269 = vmatprep.subr.mxu0 %v531
        %1270 = vmatpush2.msra.mxu0 %v530
        %1271 = vmatprep.subr.mxu0 %v527
        %1272 = vmatpush2.msra.mxu0 %v526
        %1273 = vmatprep.subr.mxu0 %v523
        %1274 = vmatpush2.msra.mxu0 %v522
        %1275 = vmatprep.subr.mxu0 %v519
        %1276 = vmatpush2.msra.mxu0 %v518
        %1277 = vmatprep.subr.mxu0 %v515
        %1278 = vmatpush2.msra.mxu0 %v514
        %1279 = vmatprep.subr.mxu0 %v511
        %1280 = vmatpush2.msra.mxu0 %v510
        %1281 = vmatprep.subr.mxu0 %v507
        %1282 = vmatpush2.msra.mxu0 %v506
        %1283 = vmatprep.subr.mxu0 %v503
        %1284 = vmatpush2.msra.mxu0 %v502
        %1285 = vmatprep.subr.mxu0 %v499
        %1286 = vmatpush2.msra.mxu0 %v498
        %1287 = vmatprep.subr.mxu0 %v495
        %1288 = vmatpush2.msra.mxu0 %v494
        %1289 = vmatprep.subr.mxu0 %v491
        %1290 = vmatpush2.msra.mxu0 %v490
        %1291 = vmatprep.subr.mxu0 %v487
        %1292 = vmatpush2.msra.mxu0 %v486
        %1293 = vmatprep.subr.mxu0 %v483
        %1294 = vmatpush2.msra.mxu0 %v482
        %1295 = vmatprep.subr.mxu0 %v479
        %1296 = vmatpush2.msra.mxu0 %v478
        %1297 = vmatprep.mubr.f32.mxu0 %v281
        %1298 = vmatmul.mubr.f32.gmra.mxu0 %v280
        %v1299 = vpop.f32.mrf.mxu0
        %v1300 = vadd.f32 %v1223, %v1299
        %v1301 = vpop.f32.mrf.mxu0
        %v1302 = vadd.f32 %v1225, %v1301
        %1303 = vmatprep.mubr.f32.mxu0 %v285
        %1304 = vmatmul.mubr.f32.gmra.mxu0 %v284
        %v1305 = vpop.f32.mrf.mxu0
        %v1306 = vadd.f32 %v1229, %v1305
        %v1307 = vpop.f32.mrf.mxu0
        %v1308 = vadd.f32 %v1231, %v1307
        %1309 = vdwg.mxu0
        %1310 = vmatprep.subr.mxu0 %v349
        %1311 = vmatpush1.msra.mxu0 %v348
        %1312 = vmatprep.subr.mxu0 %v345
        %1313 = vmatpush1.msra.mxu0 %v344
        %1314 = vmatprep.subr.mxu0 %v341
        %1315 = vmatpush1.msra.mxu0 %v340
        %1316 = vmatprep.subr.mxu0 %v337
        %1317 = vmatpush1.msra.mxu0 %v336
        %1318 = vmatprep.subr.mxu0 %v333
        %1319 = vmatpush1.msra.mxu0 %v332
        %1320 = vmatprep.subr.mxu0 %v329
        %1321 = vmatpush1.msra.mxu0 %v328
        %1322 = vmatprep.subr.mxu0 %v325
        %1323 = vmatpush1.msra.mxu0 %v324
        %1324 = vmatprep.subr.mxu0 %v321
        %1325 = vmatpush1.msra.mxu0 %v320
        %1326 = vmatprep.subr.mxu0 %v317
        %1327 = vmatpush1.msra.mxu0 %v316
        %1328 = vmatprep.subr.mxu0 %v313
        %1329 = vmatpush1.msra.mxu0 %v312
        %1330 = vmatprep.subr.mxu0 %v309
        %1331 = vmatpush1.msra.mxu0 %v308
        %1332 = vmatprep.subr.mxu0 %v305
        %1333 = vmatpush1.msra.mxu0 %v304
        %1334 = vmatprep.subr.mxu0 %v301
        %1335 = vmatpush1.msra.mxu0 %v300
        %1336 = vmatprep.subr.mxu0 %v297
        %1337 = vmatpush1.msra.mxu0 %v296
        %1338 = vmatprep.subr.mxu0 %v293
        %1339 = vmatpush1.msra.mxu0 %v292
        %1340 = vmatprep.subr.mxu0 %v289
        %1341 = vmatpush1.msra.mxu0 %v288
        %1342 = vmatprep.subr.mxu0 %v413
        %1343 = vmatpush2.msra.mxu0 %v412
        %1344 = vmatprep.subr.mxu0 %v409
        %1345 = vmatpush2.msra.mxu0 %v408
        %1346 = vmatprep.subr.mxu0 %v405
        %1347 = vmatpush2.msra.mxu0 %v404
        %1348 = vmatprep.subr.mxu0 %v401
        %1349 = vmatpush2.msra.mxu0 %v400
        %1350 = vmatprep.subr.mxu0 %v397
        %1351 = vmatpush2.msra.mxu0 %v396
        %1352 = vmatprep.subr.mxu0 %v393
        %1353 = vmatpush2.msra.mxu0 %v392
        %1354 = vmatprep.subr.mxu0 %v389
        %1355 = vmatpush2.msra.mxu0 %v388
        %1356 = vmatprep.subr.mxu0 %v385
        %1357 = vmatpush2.msra.mxu0 %v384
        %1358 = vmatprep.subr.mxu0 %v381
        %1359 = vmatpush2.msra.mxu0 %v380
        %1360 = vmatprep.subr.mxu0 %v377
        %1361 = vmatpush2.msra.mxu0 %v376
        %1362 = vmatprep.subr.mxu0 %v373
        %1363 = vmatpush2.msra.mxu0 %v372
        %1364 = vmatprep.subr.mxu0 %v369
        %1365 = vmatpush2.msra.mxu0 %v368
        %1366 = vmatprep.subr.mxu0 %v365
        %1367 = vmatpush2.msra.mxu0 %v364
        %1368 = vmatprep.subr.mxu0 %v361
        %1369 = vmatpush2.msra.mxu0 %v360
        %1370 = vmatprep.subr.mxu0 %v357
        %1371 = vmatpush2.msra.mxu0 %v356
        %1372 = vmatprep.subr.mxu0 %v353
        %1373 = vmatpush2.msra.mxu0 %v352
        %1374 = vmatprep.mubr.f32.mxu0 %v279
        %1375 = vmatmul.mubr.f32.gmra.mxu0 %v278
        %v1376 = vpop.f32.mrf.mxu0
        %v1377 = vadd.f32 %v1146, %v1376
        %v1378 = vpop.f32.mrf.mxu0
        %v1379 = vadd.f32 %v1148, %v1378
        %1380 = vmatprep.mubr.f32.mxu0 %v283
        %1381 = vmatmul.mubr.f32.gmra.mxu0 %v282
        %v1382 = vpop.f32.mrf.mxu0
        %v1383 = vadd.f32 %v1152, %v1382
        %v1384 = vpop.f32.mrf.mxu0
        %v1385 = vadd.f32 %v1154, %v1384
        %1386 = vdwg.mxu0
        %1387 = vmatprep.subr.mxu0 %v477
        %1388 = vmatpush1.msra.mxu0 %v476
        %1389 = vmatprep.subr.mxu0 %v473
        %1390 = vmatpush1.msra.mxu0 %v472
        %1391 = vmatprep.subr.mxu0 %v469
        %1392 = vmatpush1.msra.mxu0 %v468
        %1393 = vmatprep.subr.mxu0 %v465
        %1394 = vmatpush1.msra.mxu0 %v464
        %1395 = vmatprep.subr.mxu0 %v461
        %1396 = vmatpush1.msra.mxu0 %v460
        %1397 = vmatprep.subr.mxu0 %v457
        %1398 = vmatpush1.msra.mxu0 %v456
        %1399 = vmatprep.subr.mxu0 %v453
        %1400 = vmatpush1.msra.mxu0 %v452
        %1401 = vmatprep.subr.mxu0 %v449
        %1402 = vmatpush1.msra.mxu0 %v448
        %1403 = vmatprep.subr.mxu0 %v445
        %1404 = vmatpush1.msra.mxu0 %v444
        %1405 = vmatprep.subr.mxu0 %v441
        %1406 = vmatpush1.msra.mxu0 %v440
        %1407 = vmatprep.subr.mxu0 %v437
        %1408 = vmatpush1.msra.mxu0 %v436
        %1409 = vmatprep.subr.mxu0 %v433
        %1410 = vmatpush1.msra.mxu0 %v432
        %1411 = vmatprep.subr.mxu0 %v429
        %1412 = vmatpush1.msra.mxu0 %v428
        %1413 = vmatprep.subr.mxu0 %v425
        %1414 = vmatpush1.msra.mxu0 %v424
        %1415 = vmatprep.subr.mxu0 %v421
        %1416 = vmatpush1.msra.mxu0 %v420
        %1417 = vmatprep.subr.mxu0 %v417
        %1418 = vmatpush1.msra.mxu0 %v416
        %1419 = vmatprep.subr.mxu0 %v541
        %1420 = vmatpush2.msra.mxu0 %v540
        %1421 = vmatprep.subr.mxu0 %v537
        %1422 = vmatpush2.msra.mxu0 %v536
        %1423 = vmatprep.subr.mxu0 %v533
        %1424 = vmatpush2.msra.mxu0 %v532
        %1425 = vmatprep.subr.mxu0 %v529
        %1426 = vmatpush2.msra.mxu0 %v528
        %1427 = vmatprep.subr.mxu0 %v525
        %1428 = vmatpush2.msra.mxu0 %v524
        %1429 = vmatprep.subr.mxu0 %v521
        %1430 = vmatpush2.msra.mxu0 %v520
        %1431 = vmatprep.subr.mxu0 %v517
        %1432 = vmatpush2.msra.mxu0 %v516
        %1433 = vmatprep.subr.mxu0 %v513
        %1434 = vmatpush2.msra.mxu0 %v512
        %1435 = vmatprep.subr.mxu0 %v509
        %1436 = vmatpush2.msra.mxu0 %v508
        %1437 = vmatprep.subr.mxu0 %v505
        %1438 = vmatpush2.msra.mxu0 %v504
        %1439 = vmatprep.subr.mxu0 %v501
        %1440 = vmatpush2.msra.mxu0 %v500
        %1441 = vmatprep.subr.mxu0 %v497
        %1442 = vmatpush2.msra.mxu0 %v496
        %1443 = vmatprep.subr.mxu0 %v493
        %1444 = vmatpush2.msra.mxu0 %v492
        %1445 = vmatprep.subr.mxu0 %v489
        %1446 = vmatpush2.msra.mxu0 %v488
        %1447 = vmatprep.subr.mxu0 %v485
        %1448 = vmatpush2.msra.mxu0 %v484
        %1449 = vmatprep.subr.mxu0 %v481
        %1450 = vmatpush2.msra.mxu0 %v480
        %1451 = vmatprep.mubr.f32.mxu0 %v281
        %1452 = vmatmul.mubr.f32.gmra.mxu0 %v280
        %v1453 = vpop.f32.mrf.mxu0
        %v1454 = vadd.f32 %v1377, %v1453
        %v1455 = vpop.f32.mrf.mxu0
        %v1456 = vadd.f32 %v1379, %v1455
        %1457 = vmatprep.mubr.f32.mxu0 %v285
        %1458 = vmatmul.mubr.f32.gmra.mxu0 %v284
        %v1459 = vpop.f32.mrf.mxu0
        %v1460 = vadd.f32 %v1383, %v1459
        %v1461 = vpop.f32.mrf.mxu0
        %v1462 = vadd.f32 %v1385, %v1461
        %1463 = vdwg.mxu0
        %v1464 = vld [vmem:[%s277] sm:$0xfc]
        %v1465 = vld [vmem:[%s277 + $0x8] sm:$0xfc]
        %v1466 = vld [vmem:[%s277 + $0x10] sm:$0xfc]
        %v1467 = vld [vmem:[%s277 + $0x18] sm:$0xfc]
        %v1468 = vld [vmem:[%s277 + $0x40] sm:$0x3]
        %v1469 = vld [vmem:[%s277 + $0x48] sm:$0x3]
        %v1470 = vld [vmem:[%s277 + $0x50] sm:$0x3]
        %v1471 = vld [vmem:[%s277 + $0x58] sm:$0x3]
        %s1472 = scalar_lea.vmem [#allocation3], 4096
        %v1473 = vld [vmem:[%s1472] sm:$0xff]
        %v1474 = vld [vmem:[%s1472 + $0x8] sm:$0xff]
        %v1475 = vld [vmem:[%s1472 + $0x10] sm:$0xff]
        %v1476 = vld [vmem:[%s1472 + $0x18] sm:$0xff]
        %v1477 = vld [vmem:[%s1472 + $0x20] sm:$0xff]
        %v1478 = vld [vmem:[%s1472 + $0x28] sm:$0xff]
        %v1479 = vld [vmem:[%s1472 + $0x30] sm:$0xff]
        %v1480 = vld [vmem:[%s1472 + $0x38] sm:$0xff]
        %v1481 = vld [vmem:[%s1472 + $0x40] sm:$0xff]
        %v1482 = vld [vmem:[%s1472 + $0x48] sm:$0xff]
        %v1483 = vld [vmem:[%s1472 + $0x50] sm:$0xff]
        %v1484 = vld [vmem:[%s1472 + $0x58] sm:$0xff]
        %v1485 = vld [vmem:[%s1472 + $0x60] sm:$0xff]
        %v1486 = vld [vmem:[%s1472 + $0x68] sm:$0xff]
        %v1487 = vld [vmem:[%s1472 + $0x70] sm:$0xff]
        %v1488 = vld [vmem:[%s1472 + $0x78] sm:$0xff]
        %v1489 = vld [vmem:[%s1472 + $0x80] sm:$0xff]
        %v1490 = vld [vmem:[%s1472 + $0x88] sm:$0xff]
        %v1491 = vld [vmem:[%s1472 + $0x90] sm:$0xff]
        %v1492 = vld [vmem:[%s1472 + $0x98] sm:$0xff]
        %v1493 = vld [vmem:[%s1472 + $0xa0] sm:$0xff]
        %v1494 = vld [vmem:[%s1472 + $0xa8] sm:$0xff]
        %v1495 = vld [vmem:[%s1472 + $0xb0] sm:$0xff]
        %v1496 = vld [vmem:[%s1472 + $0xb8] sm:$0xff]
        %v1497 = vld [vmem:[%s1472 + $0xc0] sm:$0xff]
        %v1498 = vld [vmem:[%s1472 + $0xc8] sm:$0xff]
        %v1499 = vld [vmem:[%s1472 + $0xd0] sm:$0xff]
        %v1500 = vld [vmem:[%s1472 + $0xd8] sm:$0xff]
        %v1501 = vld [vmem:[%s1472 + $0xe0] sm:$0xff]
        %v1502 = vld [vmem:[%s1472 + $0xe8] sm:$0xff]
        %v1503 = vld [vmem:[%s1472 + $0xf0] sm:$0xff]
        %v1504 = vld [vmem:[%s1472 + $0xf8] sm:$0xff]
        %v1505 = vld [vmem:[%s1472 + $0x100] sm:$0xff]
        %v1506 = vld [vmem:[%s1472 + $0x108] sm:$0xff]
        %v1507 = vld [vmem:[%s1472 + $0x110] sm:$0xff]
        %v1508 = vld [vmem:[%s1472 + $0x118] sm:$0xff]
        %v1509 = vld [vmem:[%s1472 + $0x120] sm:$0xff]
        %v1510 = vld [vmem:[%s1472 + $0x128] sm:$0xff]
        %v1511 = vld [vmem:[%s1472 + $0x130] sm:$0xff]
        %v1512 = vld [vmem:[%s1472 + $0x138] sm:$0xff]
        %v1513 = vld [vmem:[%s1472 + $0x140] sm:$0xff]
        %v1514 = vld [vmem:[%s1472 + $0x148] sm:$0xff]
        %v1515 = vld [vmem:[%s1472 + $0x150] sm:$0xff]
        %v1516 = vld [vmem:[%s1472 + $0x158] sm:$0xff]
        %v1517 = vld [vmem:[%s1472 + $0x160] sm:$0xff]
        %v1518 = vld [vmem:[%s1472 + $0x168] sm:$0xff]
        %v1519 = vld [vmem:[%s1472 + $0x170] sm:$0xff]
        %v1520 = vld [vmem:[%s1472 + $0x178] sm:$0xff]
        %v1521 = vld [vmem:[%s1472 + $0x180] sm:$0xff]
        %v1522 = vld [vmem:[%s1472 + $0x188] sm:$0xff]
        %v1523 = vld [vmem:[%s1472 + $0x190] sm:$0xff]
        %v1524 = vld [vmem:[%s1472 + $0x198] sm:$0xff]
        %v1525 = vld [vmem:[%s1472 + $0x1a0] sm:$0xff]
        %v1526 = vld [vmem:[%s1472 + $0x1a8] sm:$0xff]
        %v1527 = vld [vmem:[%s1472 + $0x1b0] sm:$0xff]
        %v1528 = vld [vmem:[%s1472 + $0x1b8] sm:$0xff]
        %v1529 = vld [vmem:[%s1472 + $0x1c0] sm:$0xff]
        %v1530 = vld [vmem:[%s1472 + $0x1c8] sm:$0xff]
        %v1531 = vld [vmem:[%s1472 + $0x1d0] sm:$0xff]
        %v1532 = vld [vmem:[%s1472 + $0x1d8] sm:$0xff]
        %v1533 = vld [vmem:[%s1472 + $0x1e0] sm:$0xff]
        %v1534 = vld [vmem:[%s1472 + $0x1e8] sm:$0xff]
        %v1535 = vld [vmem:[%s1472 + $0x1f0] sm:$0xff]
        %v1536 = vld [vmem:[%s1472 + $0x1f8] sm:$0xff]
        %v1537 = vld [vmem:[%s1472 + $0x200] sm:$0xff]
        %v1538 = vld [vmem:[%s1472 + $0x208] sm:$0xff]
        %v1539 = vld [vmem:[%s1472 + $0x210] sm:$0xff]
        %v1540 = vld [vmem:[%s1472 + $0x218] sm:$0xff]
        %v1541 = vld [vmem:[%s1472 + $0x220] sm:$0xff]
        %v1542 = vld [vmem:[%s1472 + $0x228] sm:$0xff]
        %v1543 = vld [vmem:[%s1472 + $0x230] sm:$0xff]
        %v1544 = vld [vmem:[%s1472 + $0x238] sm:$0xff]
        %v1545 = vld [vmem:[%s1472 + $0x240] sm:$0xff]
        %v1546 = vld [vmem:[%s1472 + $0x248] sm:$0xff]
        %v1547 = vld [vmem:[%s1472 + $0x250] sm:$0xff]
        %v1548 = vld [vmem:[%s1472 + $0x258] sm:$0xff]
        %v1549 = vld [vmem:[%s1472 + $0x260] sm:$0xff]
        %v1550 = vld [vmem:[%s1472 + $0x268] sm:$0xff]
        %v1551 = vld [vmem:[%s1472 + $0x270] sm:$0xff]
        %v1552 = vld [vmem:[%s1472 + $0x278] sm:$0xff]
        %v1553 = vld [vmem:[%s1472 + $0x280] sm:$0xff]
        %v1554 = vld [vmem:[%s1472 + $0x288] sm:$0xff]
        %v1555 = vld [vmem:[%s1472 + $0x290] sm:$0xff]
        %v1556 = vld [vmem:[%s1472 + $0x298] sm:$0xff]
        %v1557 = vld [vmem:[%s1472 + $0x2a0] sm:$0xff]
        %v1558 = vld [vmem:[%s1472 + $0x2a8] sm:$0xff]
        %v1559 = vld [vmem:[%s1472 + $0x2b0] sm:$0xff]
        %v1560 = vld [vmem:[%s1472 + $0x2b8] sm:$0xff]
        %v1561 = vld [vmem:[%s1472 + $0x2c0] sm:$0xff]
        %v1562 = vld [vmem:[%s1472 + $0x2c8] sm:$0xff]
        %v1563 = vld [vmem:[%s1472 + $0x2d0] sm:$0xff]
        %v1564 = vld [vmem:[%s1472 + $0x2d8] sm:$0xff]
        %v1565 = vld [vmem:[%s1472 + $0x2e0] sm:$0xff]
        %v1566 = vld [vmem:[%s1472 + $0x2e8] sm:$0xff]
        %v1567 = vld [vmem:[%s1472 + $0x2f0] sm:$0xff]
        %v1568 = vld [vmem:[%s1472 + $0x2f8] sm:$0xff]
        %v1569 = vld [vmem:[%s1472 + $0x300] sm:$0xff]
        %v1570 = vld [vmem:[%s1472 + $0x308] sm:$0xff]
        %v1571 = vld [vmem:[%s1472 + $0x310] sm:$0xff]
        %v1572 = vld [vmem:[%s1472 + $0x318] sm:$0xff]
        %v1573 = vld [vmem:[%s1472 + $0x320] sm:$0xff]
        %v1574 = vld [vmem:[%s1472 + $0x328] sm:$0xff]
        %v1575 = vld [vmem:[%s1472 + $0x330] sm:$0xff]
        %v1576 = vld [vmem:[%s1472 + $0x338] sm:$0xff]
        %v1577 = vld [vmem:[%s1472 + $0x340] sm:$0xff]
        %v1578 = vld [vmem:[%s1472 + $0x348] sm:$0xff]
        %v1579 = vld [vmem:[%s1472 + $0x350] sm:$0xff]
        %v1580 = vld [vmem:[%s1472 + $0x358] sm:$0xff]
        %v1581 = vld [vmem:[%s1472 + $0x360] sm:$0xff]
        %v1582 = vld [vmem:[%s1472 + $0x368] sm:$0xff]
        %v1583 = vld [vmem:[%s1472 + $0x370] sm:$0xff]
        %v1584 = vld [vmem:[%s1472 + $0x378] sm:$0xff]
        %v1585 = vld [vmem:[%s1472 + $0x380] sm:$0xff]
        %v1586 = vld [vmem:[%s1472 + $0x388] sm:$0xff]
        %v1587 = vld [vmem:[%s1472 + $0x390] sm:$0xff]
        %v1588 = vld [vmem:[%s1472 + $0x398] sm:$0xff]
        %v1589 = vld [vmem:[%s1472 + $0x3a0] sm:$0xff]
        %v1590 = vld [vmem:[%s1472 + $0x3a8] sm:$0xff]
        %v1591 = vld [vmem:[%s1472 + $0x3b0] sm:$0xff]
        %v1592 = vld [vmem:[%s1472 + $0x3b8] sm:$0xff]
        %v1593 = vld [vmem:[%s1472 + $0x3c0] sm:$0xff]
        %v1594 = vld [vmem:[%s1472 + $0x3c8] sm:$0xff]
        %v1595 = vld [vmem:[%s1472 + $0x3d0] sm:$0xff]
        %v1596 = vld [vmem:[%s1472 + $0x3d8] sm:$0xff]
        %v1597 = vld [vmem:[%s1472 + $0x3e0] sm:$0xff]
        %v1598 = vld [vmem:[%s1472 + $0x3e8] sm:$0xff]
        %v1599 = vld [vmem:[%s1472 + $0x3f0] sm:$0xff]
        %v1600 = vld [vmem:[%s1472 + $0x3f8] sm:$0xff]
        %v1601 = vld [vmem:[%s1472 + $0x400] sm:$0xff]
        %v1602 = vld [vmem:[%s1472 + $0x408] sm:$0xff]
        %v1603 = vld [vmem:[%s1472 + $0x410] sm:$0xff]
        %v1604 = vld [vmem:[%s1472 + $0x418] sm:$0xff]
        %v1605 = vld [vmem:[%s1472 + $0x420] sm:$0xff]
        %v1606 = vld [vmem:[%s1472 + $0x428] sm:$0xff]
        %v1607 = vld [vmem:[%s1472 + $0x430] sm:$0xff]
        %v1608 = vld [vmem:[%s1472 + $0x438] sm:$0xff]
        %v1609 = vld [vmem:[%s1472 + $0x440] sm:$0xff]
        %v1610 = vld [vmem:[%s1472 + $0x448] sm:$0xff]
        %v1611 = vld [vmem:[%s1472 + $0x450] sm:$0xff]
        %v1612 = vld [vmem:[%s1472 + $0x458] sm:$0xff]
        %v1613 = vld [vmem:[%s1472 + $0x460] sm:$0xff]
        %v1614 = vld [vmem:[%s1472 + $0x468] sm:$0xff]
        %v1615 = vld [vmem:[%s1472 + $0x470] sm:$0xff]
        %v1616 = vld [vmem:[%s1472 + $0x478] sm:$0xff]
        %v1617 = vld [vmem:[%s1472 + $0x480] sm:$0xff]
        %v1618 = vld [vmem:[%s1472 + $0x488] sm:$0xff]
        %v1619 = vld [vmem:[%s1472 + $0x490] sm:$0xff]
        %v1620 = vld [vmem:[%s1472 + $0x498] sm:$0xff]
        %v1621 = vld [vmem:[%s1472 + $0x4a0] sm:$0xff]
        %v1622 = vld [vmem:[%s1472 + $0x4a8] sm:$0xff]
        %v1623 = vld [vmem:[%s1472 + $0x4b0] sm:$0xff]
        %v1624 = vld [vmem:[%s1472 + $0x4b8] sm:$0xff]
        %v1625 = vld [vmem:[%s1472 + $0x4c0] sm:$0xff]
        %v1626 = vld [vmem:[%s1472 + $0x4c8] sm:$0xff]
        %v1627 = vld [vmem:[%s1472 + $0x4d0] sm:$0xff]
        %v1628 = vld [vmem:[%s1472 + $0x4d8] sm:$0xff]
        %v1629 = vld [vmem:[%s1472 + $0x4e0] sm:$0xff]
        %v1630 = vld [vmem:[%s1472 + $0x4e8] sm:$0xff]
        %v1631 = vld [vmem:[%s1472 + $0x4f0] sm:$0xff]
        %v1632 = vld [vmem:[%s1472 + $0x4f8] sm:$0xff]
        %v1633 = vld [vmem:[%s1472 + $0x500] sm:$0xff]
        %v1634 = vld [vmem:[%s1472 + $0x508] sm:$0xff]
        %v1635 = vld [vmem:[%s1472 + $0x510] sm:$0xff]
        %v1636 = vld [vmem:[%s1472 + $0x518] sm:$0xff]
        %v1637 = vld [vmem:[%s1472 + $0x520] sm:$0xff]
        %v1638 = vld [vmem:[%s1472 + $0x528] sm:$0xff]
        %v1639 = vld [vmem:[%s1472 + $0x530] sm:$0xff]
        %v1640 = vld [vmem:[%s1472 + $0x538] sm:$0xff]
        %v1641 = vld [vmem:[%s1472 + $0x540] sm:$0xff]
        %v1642 = vld [vmem:[%s1472 + $0x548] sm:$0xff]
        %v1643 = vld [vmem:[%s1472 + $0x550] sm:$0xff]
        %v1644 = vld [vmem:[%s1472 + $0x558] sm:$0xff]
        %v1645 = vld [vmem:[%s1472 + $0x560] sm:$0xff]
        %v1646 = vld [vmem:[%s1472 + $0x568] sm:$0xff]
        %v1647 = vld [vmem:[%s1472 + $0x570] sm:$0xff]
        %v1648 = vld [vmem:[%s1472 + $0x578] sm:$0xff]
        %v1649 = vld [vmem:[%s1472 + $0x580] sm:$0xff]
        %v1650 = vld [vmem:[%s1472 + $0x588] sm:$0xff]
        %v1651 = vld [vmem:[%s1472 + $0x590] sm:$0xff]
        %v1652 = vld [vmem:[%s1472 + $0x598] sm:$0xff]
        %v1653 = vld [vmem:[%s1472 + $0x5a0] sm:$0xff]
        %v1654 = vld [vmem:[%s1472 + $0x5a8] sm:$0xff]
        %v1655 = vld [vmem:[%s1472 + $0x5b0] sm:$0xff]
        %v1656 = vld [vmem:[%s1472 + $0x5b8] sm:$0xff]
        %v1657 = vld [vmem:[%s1472 + $0x5c0] sm:$0xff]
        %v1658 = vld [vmem:[%s1472 + $0x5c8] sm:$0xff]
        %v1659 = vld [vmem:[%s1472 + $0x5d0] sm:$0xff]
        %v1660 = vld [vmem:[%s1472 + $0x5d8] sm:$0xff]
        %v1661 = vld [vmem:[%s1472 + $0x5e0] sm:$0xff]
        %v1662 = vld [vmem:[%s1472 + $0x5e8] sm:$0xff]
        %v1663 = vld [vmem:[%s1472 + $0x5f0] sm:$0xff]
        %v1664 = vld [vmem:[%s1472 + $0x5f8] sm:$0xff]
        %v1665 = vld [vmem:[%s1472 + $0x600] sm:$0xff]
        %v1666 = vld [vmem:[%s1472 + $0x608] sm:$0xff]
        %v1667 = vld [vmem:[%s1472 + $0x610] sm:$0xff]
        %v1668 = vld [vmem:[%s1472 + $0x618] sm:$0xff]
        %v1669 = vld [vmem:[%s1472 + $0x620] sm:$0xff]
        %v1670 = vld [vmem:[%s1472 + $0x628] sm:$0xff]
        %v1671 = vld [vmem:[%s1472 + $0x630] sm:$0xff]
        %v1672 = vld [vmem:[%s1472 + $0x638] sm:$0xff]
        %v1673 = vld [vmem:[%s1472 + $0x640] sm:$0xff]
        %v1674 = vld [vmem:[%s1472 + $0x648] sm:$0xff]
        %v1675 = vld [vmem:[%s1472 + $0x650] sm:$0xff]
        %v1676 = vld [vmem:[%s1472 + $0x658] sm:$0xff]
        %v1677 = vld [vmem:[%s1472 + $0x660] sm:$0xff]
        %v1678 = vld [vmem:[%s1472 + $0x668] sm:$0xff]
        %v1679 = vld [vmem:[%s1472 + $0x670] sm:$0xff]
        %v1680 = vld [vmem:[%s1472 + $0x678] sm:$0xff]
        %v1681 = vld [vmem:[%s1472 + $0x680] sm:$0xff]
        %v1682 = vld [vmem:[%s1472 + $0x688] sm:$0xff]
        %v1683 = vld [vmem:[%s1472 + $0x690] sm:$0xff]
        %v1684 = vld [vmem:[%s1472 + $0x698] sm:$0xff]
        %v1685 = vld [vmem:[%s1472 + $0x6a0] sm:$0xff]
        %v1686 = vld [vmem:[%s1472 + $0x6a8] sm:$0xff]
        %v1687 = vld [vmem:[%s1472 + $0x6b0] sm:$0xff]
        %v1688 = vld [vmem:[%s1472 + $0x6b8] sm:$0xff]
        %v1689 = vld [vmem:[%s1472 + $0x6c0] sm:$0xff]
        %v1690 = vld [vmem:[%s1472 + $0x6c8] sm:$0xff]
        %v1691 = vld [vmem:[%s1472 + $0x6d0] sm:$0xff]
        %v1692 = vld [vmem:[%s1472 + $0x6d8] sm:$0xff]
        %v1693 = vld [vmem:[%s1472 + $0x6e0] sm:$0xff]
        %v1694 = vld [vmem:[%s1472 + $0x6e8] sm:$0xff]
        %v1695 = vld [vmem:[%s1472 + $0x6f0] sm:$0xff]
        %v1696 = vld [vmem:[%s1472 + $0x6f8] sm:$0xff]
        %v1697 = vld [vmem:[%s1472 + $0x700] sm:$0xff]
        %v1698 = vld [vmem:[%s1472 + $0x708] sm:$0xff]
        %v1699 = vld [vmem:[%s1472 + $0x710] sm:$0xff]
        %v1700 = vld [vmem:[%s1472 + $0x718] sm:$0xff]
        %v1701 = vld [vmem:[%s1472 + $0x720] sm:$0xff]
        %v1702 = vld [vmem:[%s1472 + $0x728] sm:$0xff]
        %v1703 = vld [vmem:[%s1472 + $0x730] sm:$0xff]
        %v1704 = vld [vmem:[%s1472 + $0x738] sm:$0xff]
        %v1705 = vld [vmem:[%s1472 + $0x740] sm:$0xff]
        %v1706 = vld [vmem:[%s1472 + $0x748] sm:$0xff]
        %v1707 = vld [vmem:[%s1472 + $0x750] sm:$0xff]
        %v1708 = vld [vmem:[%s1472 + $0x758] sm:$0xff]
        %v1709 = vld [vmem:[%s1472 + $0x760] sm:$0xff]
        %v1710 = vld [vmem:[%s1472 + $0x768] sm:$0xff]
        %v1711 = vld [vmem:[%s1472 + $0x770] sm:$0xff]
        %v1712 = vld [vmem:[%s1472 + $0x778] sm:$0xff]
        %v1713 = vld [vmem:[%s1472 + $0x780] sm:$0xff]
        %v1714 = vld [vmem:[%s1472 + $0x788] sm:$0xff]
        %v1715 = vld [vmem:[%s1472 + $0x790] sm:$0xff]
        %v1716 = vld [vmem:[%s1472 + $0x798] sm:$0xff]
        %v1717 = vld [vmem:[%s1472 + $0x7a0] sm:$0xff]
        %v1718 = vld [vmem:[%s1472 + $0x7a8] sm:$0xff]
        %v1719 = vld [vmem:[%s1472 + $0x7b0] sm:$0xff]
        %v1720 = vld [vmem:[%s1472 + $0x7b8] sm:$0xff]
        %v1721 = vld [vmem:[%s1472 + $0x7c0] sm:$0xff]
        %v1722 = vld [vmem:[%s1472 + $0x7c8] sm:$0xff]
        %v1723 = vld [vmem:[%s1472 + $0x7d0] sm:$0xff]
        %v1724 = vld [vmem:[%s1472 + $0x7d8] sm:$0xff]
        %v1725 = vld [vmem:[%s1472 + $0x7e0] sm:$0xff]
        %v1726 = vld [vmem:[%s1472 + $0x7e8] sm:$0xff]
        %v1727 = vld [vmem:[%s1472 + $0x7f0] sm:$0xff]
        %v1728 = vld [vmem:[%s1472 + $0x7f8] sm:$0xff]
        %vm1737 = vcmask 1045504
        %v1738 = vrot.slane %v1464, 2
        %v1739 = vrot.slane %v282, 2
        %v1740 = vsel %vm1737, %v1738, %v1739
        %v1741 = vrot.slane %v1465, 2
        %v1742 = vrot.slane %v283, 2
        %v1743 = vsel %vm1737, %v1741, %v1742
        %v1744 = vrot.slane %v1466, 2
        %v1745 = vrot.slane %v284, 2
        %v1746 = vsel %vm1737, %v1744, %v1745
        %v1747 = vrot.slane %v1467, 2
        %v1748 = vrot.slane %v285, 2
        %v1749 = vsel %vm1737, %v1747, %v1748
        %v1750 = vrot.slane %v1468, 2
        %v1751 = vsel %vm1737, %v1739, %v1750
        %v1752 = vrot.slane %v1469, 2
        %v1753 = vsel %vm1737, %v1742, %v1752
        %v1754 = vrot.slane %v1470, 2
        %v1755 = vsel %vm1737, %v1745, %v1754
        %v1756 = vrot.slane %v1471, 2
        %v1757 = vsel %vm1737, %v1748, %v1756
        %1766 = vmatprep.subr.mxu0 %v1534
        %1767 = vmatpush1.msra.mxu0 %v1533
        %1768 = vmatprep.subr.mxu0 %v1530
        %1769 = vmatpush1.msra.mxu0 %v1529
        %1770 = vmatprep.subr.mxu0 %v1526
        %1771 = vmatpush1.msra.mxu0 %v1525
        %1772 = vmatprep.subr.mxu0 %v1522
        %1773 = vmatpush1.msra.mxu0 %v1521
        %1774 = vmatprep.subr.mxu0 %v1518
        %1775 = vmatpush1.msra.mxu0 %v1517
        %1776 = vmatprep.subr.mxu0 %v1514
        %1777 = vmatpush1.msra.mxu0 %v1513
        %1778 = vmatprep.subr.mxu0 %v1510
        %1779 = vmatpush1.msra.mxu0 %v1509
        %1780 = vmatprep.subr.mxu0 %v1506
        %1781 = vmatpush1.msra.mxu0 %v1505
        %1782 = vmatprep.subr.mxu0 %v1502
        %1783 = vmatpush1.msra.mxu0 %v1501
        %1784 = vmatprep.subr.mxu0 %v1498
        %1785 = vmatpush1.msra.mxu0 %v1497
        %1786 = vmatprep.subr.mxu0 %v1494
        %1787 = vmatpush1.msra.mxu0 %v1493
        %1788 = vmatprep.subr.mxu0 %v1490
        %1789 = vmatpush1.msra.mxu0 %v1489
        %1790 = vmatprep.subr.mxu0 %v1486
        %1791 = vmatpush1.msra.mxu0 %v1485
        %1792 = vmatprep.subr.mxu0 %v1482
        %1793 = vmatpush1.msra.mxu0 %v1481
        %1794 = vmatprep.subr.mxu0 %v1478
        %1795 = vmatpush1.msra.mxu0 %v1477
        %1796 = vmatprep.subr.mxu0 %v1474
        %1797 = vmatpush1.msra.mxu0 %v1473
        %1798 = vmatprep.subr.mxu0 %v1598
        %1799 = vmatpush2.msra.mxu0 %v1597
        %1800 = vmatprep.subr.mxu0 %v1594
        %1801 = vmatpush2.msra.mxu0 %v1593
        %1802 = vmatprep.subr.mxu0 %v1590
        %1803 = vmatpush2.msra.mxu0 %v1589
        %1804 = vmatprep.subr.mxu0 %v1586
        %1805 = vmatpush2.msra.mxu0 %v1585
        %1806 = vmatprep.subr.mxu0 %v1582
        %1807 = vmatpush2.msra.mxu0 %v1581
        %1808 = vmatprep.subr.mxu0 %v1578
        %1809 = vmatpush2.msra.mxu0 %v1577
        %1810 = vmatprep.subr.mxu0 %v1574
        %1811 = vmatpush2.msra.mxu0 %v1573
        %1812 = vmatprep.subr.mxu0 %v1570
        %1813 = vmatpush2.msra.mxu0 %v1569
        %1814 = vmatprep.subr.mxu0 %v1566
        %1815 = vmatpush2.msra.mxu0 %v1565
        %1816 = vmatprep.subr.mxu0 %v1562
        %1817 = vmatpush2.msra.mxu0 %v1561
        %1818 = vmatprep.subr.mxu0 %v1558
        %1819 = vmatpush2.msra.mxu0 %v1557
        %1820 = vmatprep.subr.mxu0 %v1554
        %1821 = vmatpush2.msra.mxu0 %v1553
        %1822 = vmatprep.subr.mxu0 %v1550
        %1823 = vmatpush2.msra.mxu0 %v1549
        %1824 = vmatprep.subr.mxu0 %v1546
        %1825 = vmatpush2.msra.mxu0 %v1545
        %1826 = vmatprep.subr.mxu0 %v1542
        %1827 = vmatpush2.msra.mxu0 %v1541
        %1828 = vmatprep.subr.mxu0 %v1538
        %1829 = vmatpush2.msra.mxu0 %v1537
        %1830 = vmatprep.mubr.f32.mxu0 %v1743
        %1831 = vmatmul.mubr.f32.gmra.mxu0 %v1740
        %v1832 = vpop.f32.mrf.mxu0
        %v1833 = vadd.f32 0.0, %v1832
        %v1834 = vpop.f32.mrf.mxu0
        %v1835 = vadd.f32 0.0, %v1834
        %1836 = vmatprep.mubr.f32.mxu0 %v1753
        %1837 = vmatmul.mubr.f32.gmra.mxu0 %v1751
        %v1838 = vpop.f32.mrf.mxu0
        %v1839 = vadd.f32 0.0, %v1838
        %v1840 = vpop.f32.mrf.mxu0
        %v1841 = vadd.f32 0.0, %v1840
        %1842 = vdwg.mxu0
        %1843 = vmatprep.subr.mxu0 %v1662
        %1844 = vmatpush1.msra.mxu0 %v1661
        %1845 = vmatprep.subr.mxu0 %v1658
        %1846 = vmatpush1.msra.mxu0 %v1657
        %1847 = vmatprep.subr.mxu0 %v1654
        %1848 = vmatpush1.msra.mxu0 %v1653
        %1849 = vmatprep.subr.mxu0 %v1650
        %1850 = vmatpush1.msra.mxu0 %v1649
        %1851 = vmatprep.subr.mxu0 %v1646
        %1852 = vmatpush1.msra.mxu0 %v1645
        %1853 = vmatprep.subr.mxu0 %v1642
        %1854 = vmatpush1.msra.mxu0 %v1641
        %1855 = vmatprep.subr.mxu0 %v1638
        %1856 = vmatpush1.msra.mxu0 %v1637
        %1857 = vmatprep.subr.mxu0 %v1634
        %1858 = vmatpush1.msra.mxu0 %v1633
        %1859 = vmatprep.subr.mxu0 %v1630
        %1860 = vmatpush1.msra.mxu0 %v1629
        %1861 = vmatprep.subr.mxu0 %v1626
        %1862 = vmatpush1.msra.mxu0 %v1625
        %1863 = vmatprep.subr.mxu0 %v1622
        %1864 = vmatpush1.msra.mxu0 %v1621
        %1865 = vmatprep.subr.mxu0 %v1618
        %1866 = vmatpush1.msra.mxu0 %v1617
        %1867 = vmatprep.subr.mxu0 %v1614
        %1868 = vmatpush1.msra.mxu0 %v1613
        %1869 = vmatprep.subr.mxu0 %v1610
        %1870 = vmatpush1.msra.mxu0 %v1609
        %1871 = vmatprep.subr.mxu0 %v1606
        %1872 = vmatpush1.msra.mxu0 %v1605
        %1873 = vmatprep.subr.mxu0 %v1602
        %1874 = vmatpush1.msra.mxu0 %v1601
        %1875 = vmatprep.subr.mxu0 %v1726
        %1876 = vmatpush2.msra.mxu0 %v1725
        %1877 = vmatprep.subr.mxu0 %v1722
        %1878 = vmatpush2.msra.mxu0 %v1721
        %1879 = vmatprep.subr.mxu0 %v1718
        %1880 = vmatpush2.msra.mxu0 %v1717
        %1881 = vmatprep.subr.mxu0 %v1714
        %1882 = vmatpush2.msra.mxu0 %v1713
        %1883 = vmatprep.subr.mxu0 %v1710
        %1884 = vmatpush2.msra.mxu0 %v1709
        %1885 = vmatprep.subr.mxu0 %v1706
        %1886 = vmatpush2.msra.mxu0 %v1705
        %1887 = vmatprep.subr.mxu0 %v1702
        %1888 = vmatpush2.msra.mxu0 %v1701
        %1889 = vmatprep.subr.mxu0 %v1698
        %1890 = vmatpush2.msra.mxu0 %v1697
        %1891 = vmatprep.subr.mxu0 %v1694
        %1892 = vmatpush2.msra.mxu0 %v1693
        %1893 = vmatprep.subr.mxu0 %v1690
        %1894 = vmatpush2.msra.mxu0 %v1689
        %1895 = vmatprep.subr.mxu0 %v1686
        %1896 = vmatpush2.msra.mxu0 %v1685
        %1897 = vmatprep.subr.mxu0 %v1682
        %1898 = vmatpush2.msra.mxu0 %v1681
        %1899 = vmatprep.subr.mxu0 %v1678
        %1900 = vmatpush2.msra.mxu0 %v1677
        %1901 = vmatprep.subr.mxu0 %v1674
        %1902 = vmatpush2.msra.mxu0 %v1673
        %1903 = vmatprep.subr.mxu0 %v1670
        %1904 = vmatpush2.msra.mxu0 %v1669
        %1905 = vmatprep.subr.mxu0 %v1666
        %1906 = vmatpush2.msra.mxu0 %v1665
        %1907 = vmatprep.mubr.f32.mxu0 %v1749
        %1908 = vmatmul.mubr.f32.gmra.mxu0 %v1746
        %v1909 = vpop.f32.mrf.mxu0
        %v1910 = vadd.f32 %v1833, %v1909
        %v1911 = vpop.f32.mrf.mxu0
        %v1912 = vadd.f32 %v1835, %v1911
        %1913 = vmatprep.mubr.f32.mxu0 %v1757
        %1914 = vmatmul.mubr.f32.gmra.mxu0 %v1755
        %v1915 = vpop.f32.mrf.mxu0
        %v1916 = vadd.f32 %v1839, %v1915
        %v1917 = vpop.f32.mrf.mxu0
        %v1918 = vadd.f32 %v1841, %v1917
        %1919 = vdwg.mxu0
        %1920 = vmatprep.subr.mxu0 %v1536
        %1921 = vmatpush1.msra.mxu0 %v1535
        %1922 = vmatprep.subr.mxu0 %v1532
        %1923 = vmatpush1.msra.mxu0 %v1531
        %1924 = vmatprep.subr.mxu0 %v1528
        %1925 = vmatpush1.msra.mxu0 %v1527
        %1926 = vmatprep.subr.mxu0 %v1524
        %1927 = vmatpush1.msra.mxu0 %v1523
        %1928 = vmatprep.subr.mxu0 %v1520
        %1929 = vmatpush1.msra.mxu0 %v1519
        %1930 = vmatprep.subr.mxu0 %v1516
        %1931 = vmatpush1.msra.mxu0 %v1515
        %1932 = vmatprep.subr.mxu0 %v1512
        %1933 = vmatpush1.msra.mxu0 %v1511
        %1934 = vmatprep.subr.mxu0 %v1508
        %1935 = vmatpush1.msra.mxu0 %v1507
        %1936 = vmatprep.subr.mxu0 %v1504
        %1937 = vmatpush1.msra.mxu0 %v1503
        %1938 = vmatprep.subr.mxu0 %v1500
        %1939 = vmatpush1.msra.mxu0 %v1499
        %1940 = vmatprep.subr.mxu0 %v1496
        %1941 = vmatpush1.msra.mxu0 %v1495
        %1942 = vmatprep.subr.mxu0 %v1492
        %1943 = vmatpush1.msra.mxu0 %v1491
        %1944 = vmatprep.subr.mxu0 %v1488
        %1945 = vmatpush1.msra.mxu0 %v1487
        %1946 = vmatprep.subr.mxu0 %v1484
        %1947 = vmatpush1.msra.mxu0 %v1483
        %1948 = vmatprep.subr.mxu0 %v1480
        %1949 = vmatpush1.msra.mxu0 %v1479
        %1950 = vmatprep.subr.mxu0 %v1476
        %1951 = vmatpush1.msra.mxu0 %v1475
        %1952 = vmatprep.subr.mxu0 %v1600
        %1953 = vmatpush2.msra.mxu0 %v1599
        %1954 = vmatprep.subr.mxu0 %v1596
        %1955 = vmatpush2.msra.mxu0 %v1595
        %1956 = vmatprep.subr.mxu0 %v1592
        %1957 = vmatpush2.msra.mxu0 %v1591
        %1958 = vmatprep.subr.mxu0 %v1588
        %1959 = vmatpush2.msra.mxu0 %v1587
        %1960 = vmatprep.subr.mxu0 %v1584
        %1961 = vmatpush2.msra.mxu0 %v1583
        %1962 = vmatprep.subr.mxu0 %v1580
        %1963 = vmatpush2.msra.mxu0 %v1579
        %1964 = vmatprep.subr.mxu0 %v1576
        %1965 = vmatpush2.msra.mxu0 %v1575
        %1966 = vmatprep.subr.mxu0 %v1572
        %1967 = vmatpush2.msra.mxu0 %v1571
        %1968 = vmatprep.subr.mxu0 %v1568
        %1969 = vmatpush2.msra.mxu0 %v1567
        %1970 = vmatprep.subr.mxu0 %v1564
        %1971 = vmatpush2.msra.mxu0 %v1563
        %1972 = vmatprep.subr.mxu0 %v1560
        %1973 = vmatpush2.msra.mxu0 %v1559
        %1974 = vmatprep.subr.mxu0 %v1556
        %1975 = vmatpush2.msra.mxu0 %v1555
        %1976 = vmatprep.subr.mxu0 %v1552
        %1977 = vmatpush2.msra.mxu0 %v1551
        %1978 = vmatprep.subr.mxu0 %v1548
        %1979 = vmatpush2.msra.mxu0 %v1547
        %1980 = vmatprep.subr.mxu0 %v1544
        %1981 = vmatpush2.msra.mxu0 %v1543
        %1982 = vmatprep.subr.mxu0 %v1540
        %1983 = vmatpush2.msra.mxu0 %v1539
        %1984 = vmatprep.mubr.f32.mxu0 %v1743
        %1985 = vmatmul.mubr.f32.gmra.mxu0 %v1740
        %v1986 = vpop.f32.mrf.mxu0
        %v1987 = vadd.f32 0.0, %v1986
        %v1988 = vpop.f32.mrf.mxu0
        %v1989 = vadd.f32 0.0, %v1988
        %1990 = vmatprep.mubr.f32.mxu0 %v1753
        %1991 = vmatmul.mubr.f32.gmra.mxu0 %v1751
        %v1992 = vpop.f32.mrf.mxu0
        %v1993 = vadd.f32 0.0, %v1992
        %v1994 = vpop.f32.mrf.mxu0
        %v1995 = vadd.f32 0.0, %v1994
        %1996 = vdwg.mxu0
        %1997 = vmatprep.subr.mxu0 %v1664
        %1998 = vmatpush1.msra.mxu0 %v1663
        %1999 = vmatprep.subr.mxu0 %v1660
        %2000 = vmatpush1.msra.mxu0 %v1659
        %2001 = vmatprep.subr.mxu0 %v1656
        %2002 = vmatpush1.msra.mxu0 %v1655
        %2003 = vmatprep.subr.mxu0 %v1652
        %2004 = vmatpush1.msra.mxu0 %v1651
        %2005 = vmatprep.subr.mxu0 %v1648
        %2006 = vmatpush1.msra.mxu0 %v1647
        %2007 = vmatprep.subr.mxu0 %v1644
        %2008 = vmatpush1.msra.mxu0 %v1643
        %2009 = vmatprep.subr.mxu0 %v1640
        %2010 = vmatpush1.msra.mxu0 %v1639
        %2011 = vmatprep.subr.mxu0 %v1636
        %2012 = vmatpush1.msra.mxu0 %v1635
        %2013 = vmatprep.subr.mxu0 %v1632
        %2014 = vmatpush1.msra.mxu0 %v1631
        %2015 = vmatprep.subr.mxu0 %v1628
        %2016 = vmatpush1.msra.mxu0 %v1627
        %2017 = vmatprep.subr.mxu0 %v1624
        %2018 = vmatpush1.msra.mxu0 %v1623
        %2019 = vmatprep.subr.mxu0 %v1620
        %2020 = vmatpush1.msra.mxu0 %v1619
        %2021 = vmatprep.subr.mxu0 %v1616
        %2022 = vmatpush1.msra.mxu0 %v1615
        %2023 = vmatprep.subr.mxu0 %v1612
        %2024 = vmatpush1.msra.mxu0 %v1611
        %2025 = vmatprep.subr.mxu0 %v1608
        %2026 = vmatpush1.msra.mxu0 %v1607
        %2027 = vmatprep.subr.mxu0 %v1604
        %2028 = vmatpush1.msra.mxu0 %v1603
        %2029 = vmatprep.subr.mxu0 %v1728
        %2030 = vmatpush2.msra.mxu0 %v1727
        %2031 = vmatprep.subr.mxu0 %v1724
        %2032 = vmatpush2.msra.mxu0 %v1723
        %2033 = vmatprep.subr.mxu0 %v1720
        %2034 = vmatpush2.msra.mxu0 %v1719
        %2035 = vmatprep.subr.mxu0 %v1716
        %2036 = vmatpush2.msra.mxu0 %v1715
        %2037 = vmatprep.subr.mxu0 %v1712
        %2038 = vmatpush2.msra.mxu0 %v1711
        %2039 = vmatprep.subr.mxu0 %v1708
        %2040 = vmatpush2.msra.mxu0 %v1707
        %2041 = vmatprep.subr.mxu0 %v1704
        %2042 = vmatpush2.msra.mxu0 %v1703
        %2043 = vmatprep.subr.mxu0 %v1700
        %2044 = vmatpush2.msra.mxu0 %v1699
        %2045 = vmatprep.subr.mxu0 %v1696
        %2046 = vmatpush2.msra.mxu0 %v1695
        %2047 = vmatprep.subr.mxu0 %v1692
        %2048 = vmatpush2.msra.mxu0 %v1691
        %2049 = vmatprep.subr.mxu0 %v1688
        %2050 = vmatpush2.msra.mxu0 %v1687
        %2051 = vmatprep.subr.mxu0 %v1684
        %2052 = vmatpush2.msra.mxu0 %v1683
        %2053 = vmatprep.subr.mxu0 %v1680
        %2054 = vmatpush2.msra.mxu0 %v1679
        %2055 = vmatprep.subr.mxu0 %v1676
        %2056 = vmatpush2.msra.mxu0 %v1675
        %2057 = vmatprep.subr.mxu0 %v1672
        %2058 = vmatpush2.msra.mxu0 %v1671
        %2059 = vmatprep.subr.mxu0 %v1668
        %2060 = vmatpush2.msra.mxu0 %v1667
        %2061 = vmatprep.mubr.f32.mxu0 %v1749
        %2062 = vmatmul.mubr.f32.gmra.mxu0 %v1746
        %v2063 = vpop.f32.mrf.mxu0
        %v2064 = vadd.f32 %v1987, %v2063
        %v2065 = vpop.f32.mrf.mxu0
        %v2066 = vadd.f32 %v1989, %v2065
        %2067 = vmatprep.mubr.f32.mxu0 %v1757
        %2068 = vmatmul.mubr.f32.gmra.mxu0 %v1755
        %v2069 = vpop.f32.mrf.mxu0
        %v2070 = vadd.f32 %v1993, %v2069
        %v2071 = vpop.f32.mrf.mxu0
        %v2072 = vadd.f32 %v1995, %v2071
        %2073 = vdwg.mxu0
        %v2074 = vadd.f32 %v1300, %v1910
        %v2075 = vadd.f32 %v1302, %v1912
        %v2076 = vadd.f32 %v1454, %v2064
        %v2077 = vadd.f32 %v1456, %v2066
        %v2078 = vadd.f32 %v1306, %v1916
        %v2079 = vadd.f32 %v1308, %v1918
        %v2080 = vadd.f32 %v1460, %v2070
        %v2081 = vadd.f32 %v1462, %v2072
        %v2082 = vld [vmem:[#allocation6] sm:$0xf]
        %v2084 = vlaneseq
        %v2085 = vshrl.u32 %v2084, 7
        %v2086 = vsub.s32 0, %v2085
        %v2087 = vrot.slane %v2082, %v2086
        %v2088 = vlaneseq
        %v2089 = vshrl.u32 %v2088, 7
        %v2090 = vsub.s32 1, %v2089
        %v2091 = vrot.slane %v2082, %v2090
        %v2092 = vlaneseq
        %v2093 = vshrl.u32 %v2092, 7
        %v2094 = vsub.s32 2, %v2093
        %v2095 = vrot.slane %v2082, %v2094
        %v2096 = vlaneseq
        %v2097 = vshrl.u32 %v2096, 7
        %v2098 = vsub.s32 3, %v2097
        %v2099 = vrot.slane %v2082, %v2098
        %v2104 = vadd.f32 %v2074, %v2087
        %v2105 = vadd.f32 %v2075, %v2091
        %v2106 = vadd.f32 %v2076, %v2095
        %v2107 = vadd.f32 %v2077, %v2099
        %v2108 = vadd.f32 %v2078, %v2087
        %v2109 = vadd.f32 %v2079, %v2091
        %v2110 = vadd.f32 %v2080, %v2095
        %v2111 = vadd.f32 %v2081, %v2099
        %vm2112 = vcmp.gt.f32.partialorder %v2104, 0.0
        %vm2113 = vcmp.gt.f32.partialorder %v2105, 0.0
        %vm2114 = vcmp.gt.f32.partialorder %v2106, 0.0
        %vm2115 = vcmp.gt.f32.partialorder %v2107, 0.0
        %vm2116 = vcmp.gt.f32.partialorder %v2108, 0.0
        %vm2117 = vcmp.gt.f32.partialorder %v2109, 0.0
        %vm2118 = vcmp.gt.f32.partialorder %v2110, 0.0
        %vm2119 = vcmp.gt.f32.partialorder %v2111, 0.0
        %v2120 = vmul.f32 %v2104, 0.2
        %v2121 = vmul.f32 %v2105, 0.2
        %v2122 = vmul.f32 %v2106, 0.2
        %v2123 = vmul.f32 %v2107, 0.2
        %v2124 = vmul.f32 %v2108, 0.2
        %v2125 = vmul.f32 %v2109, 0.2
        %v2126 = vmul.f32 %v2110, 0.2
        %v2127 = vmul.f32 %v2111, 0.2
        %v2128 = vsel %vm2112, %v2104, %v2120
        %v2129 = vsel %vm2113, %v2105, %v2121
        %v2130 = vsel %vm2114, %v2106, %v2122
        %v2131 = vsel %vm2115, %v2107, %v2123
        %v2132 = vsel %vm2116, %v2108, %v2124
        %v2133 = vsel %vm2117, %v2109, %v2125
        %v2134 = vsel %vm2118, %v2110, %v2126
        %v2135 = vsel %vm2119, %v2111, %v2127
        %v2136 = vlaneseq
        %vm2137 = vcmp.ge.s32.totalorder %v2136, 0
        %vm2138 = vcmp.lt.s32.totalorder %v2136, 512
        %vm2139 = vmand %vm2137, %vm2138
        %2140 = vst.msk [vmem:[#allocation2] ss:$8 sm:$0xf] %vm2139, 0.0
        %2141 = vst.msk [vmem:[#allocation2] ss:$8 sm:$0x0] %vm2139, 0.0
        %s2142 = scalar_lea.vmem [#allocation2], 65
        %2143 = vst.msk [vmem:[%s2142] ss:$8 sm:$0xf] %vm2139, 0.0
        %2144 = vst.msk [vmem:[%s2142] ss:$8 sm:$0x0] %vm2139, 0.0
        %vm2153 = vcmask 1040384
        %v2154 = vrot.slane %v2128, 7
        %v2155 = vrot.slane %v2129, 7
        %v2156 = vrot.slane %v2130, 7
        %v2157 = vrot.slane %v2131, 7
        %v2158 = vrot.slane %v2132, 7
        %v2159 = vsel %vm2153, %v2154, %v2158
        %v2160 = vrot.slane %v2133, 7
        %v2161 = vsel %vm2153, %v2155, %v2160
        %v2162 = vrot.slane %v2134, 7
        %v2163 = vsel %vm2153, %v2156, %v2162
        %v2164 = vrot.slane %v2135, 7
        %v2165 = vsel %vm2153, %v2157, %v2164
        %2178 = vst [vmem:[#allocation2] sm:$0xfe] %v2154
        %2179 = vst [vmem:[#allocation2 + $0x8] sm:$0xfe] %v2155
        %2180 = vst [vmem:[#allocation2 + $0x10] sm:$0xfe] %v2156
        %2181 = vst [vmem:[#allocation2 + $0x18] sm:$0xfe] %v2157
        %2182 = vst [vmem:[#allocation2 + $0x20] sm:$0xff] %v2159
        %2183 = vst [vmem:[#allocation2 + $0x28] sm:$0xff] %v2161
        %2184 = vst [vmem:[#allocation2 + $0x30] sm:$0xff] %v2163
        %2185 = vst [vmem:[#allocation2 + $0x38] sm:$0xff] %v2165
        %2186 = vst [vmem:[#allocation2 + $0x40] sm:$0x1] %v2158
        %2187 = vst [vmem:[#allocation2 + $0x48] sm:$0x1] %v2160
        %2188 = vst [vmem:[#allocation2 + $0x50] sm:$0x1] %v2162
        %2189 = vst [vmem:[#allocation2 + $0x58] sm:$0x1] %v2164
        %v2190 = vld [vmem:[#allocation2] sm:$0xff]
        %v2191 = vld [vmem:[#allocation2 + $0x8] sm:$0xff]
        %v2192 = vld [vmem:[#allocation2 + $0x10] sm:$0xff]
        %v2193 = vld [vmem:[#allocation2 + $0x18] sm:$0xff]
        %v2194 = vld [vmem:[#allocation2 + $0x20] sm:$0xff]
        %v2195 = vld [vmem:[#allocation2 + $0x28] sm:$0xff]
        %v2196 = vld [vmem:[#allocation2 + $0x30] sm:$0xff]
        %v2197 = vld [vmem:[#allocation2 + $0x38] sm:$0xff]
        %v2198 = vld [vmem:[#allocation8] sm:$0xff]
        %v2199 = vld [vmem:[#allocation8 + $0x8] sm:$0xff]
        %v2200 = vld [vmem:[#allocation8 + $0x10] sm:$0xff]
        %v2201 = vld [vmem:[#allocation8 + $0x18] sm:$0xff]
        %v2202 = vld [vmem:[#allocation8 + $0x20] sm:$0xff]
        %v2203 = vld [vmem:[#allocation8 + $0x28] sm:$0xff]
        %v2204 = vld [vmem:[#allocation8 + $0x30] sm:$0xff]
        %v2205 = vld [vmem:[#allocation8 + $0x38] sm:$0xff]
        %v2206 = vld [vmem:[#allocation8 + $0x40] sm:$0xff]
        %v2207 = vld [vmem:[#allocation8 + $0x48] sm:$0xff]
        %v2208 = vld [vmem:[#allocation8 + $0x50] sm:$0xff]
        %v2209 = vld [vmem:[#allocation8 + $0x58] sm:$0xff]
        %v2210 = vld [vmem:[#allocation8 + $0x60] sm:$0xff]
        %v2211 = vld [vmem:[#allocation8 + $0x68] sm:$0xff]
        %v2212 = vld [vmem:[#allocation8 + $0x70] sm:$0xff]
        %v2213 = vld [vmem:[#allocation8 + $0x78] sm:$0xff]
        %v2214 = vld [vmem:[#allocation8 + $0x80] sm:$0xff]
        %v2215 = vld [vmem:[#allocation8 + $0x88] sm:$0xff]
        %v2216 = vld [vmem:[#allocation8 + $0x90] sm:$0xff]
        %v2217 = vld [vmem:[#allocation8 + $0x98] sm:$0xff]
        %v2218 = vld [vmem:[#allocation8 + $0xa0] sm:$0xff]
        %v2219 = vld [vmem:[#allocation8 + $0xa8] sm:$0xff]
        %v2220 = vld [vmem:[#allocation8 + $0xb0] sm:$0xff]
        %v2221 = vld [vmem:[#allocation8 + $0xb8] sm:$0xff]
        %v2222 = vld [vmem:[#allocation8 + $0xc0] sm:$0xff]
        %v2223 = vld [vmem:[#allocation8 + $0xc8] sm:$0xff]
        %v2224 = vld [vmem:[#allocation8 + $0xd0] sm:$0xff]
        %v2225 = vld [vmem:[#allocation8 + $0xd8] sm:$0xff]
        %v2226 = vld [vmem:[#allocation8 + $0xe0] sm:$0xff]
        %v2227 = vld [vmem:[#allocation8 + $0xe8] sm:$0xff]
        %v2228 = vld [vmem:[#allocation8 + $0xf0] sm:$0xff]
        %v2229 = vld [vmem:[#allocation8 + $0xf8] sm:$0xff]
        %v2230 = vld [vmem:[#allocation8 + $0x100] sm:$0xff]
        %v2231 = vld [vmem:[#allocation8 + $0x108] sm:$0xff]
        %v2232 = vld [vmem:[#allocation8 + $0x110] sm:$0xff]
        %v2233 = vld [vmem:[#allocation8 + $0x118] sm:$0xff]
        %v2234 = vld [vmem:[#allocation8 + $0x120] sm:$0xff]
        %v2235 = vld [vmem:[#allocation8 + $0x128] sm:$0xff]
        %v2236 = vld [vmem:[#allocation8 + $0x130] sm:$0xff]
        %v2237 = vld [vmem:[#allocation8 + $0x138] sm:$0xff]
        %v2238 = vld [vmem:[#allocation8 + $0x140] sm:$0xff]
        %v2239 = vld [vmem:[#allocation8 + $0x148] sm:$0xff]
        %v2240 = vld [vmem:[#allocation8 + $0x150] sm:$0xff]
        %v2241 = vld [vmem:[#allocation8 + $0x158] sm:$0xff]
        %v2242 = vld [vmem:[#allocation8 + $0x160] sm:$0xff]
        %v2243 = vld [vmem:[#allocation8 + $0x168] sm:$0xff]
        %v2244 = vld [vmem:[#allocation8 + $0x170] sm:$0xff]
        %v2245 = vld [vmem:[#allocation8 + $0x178] sm:$0xff]
        %v2246 = vld [vmem:[#allocation8 + $0x180] sm:$0xff]
        %v2247 = vld [vmem:[#allocation8 + $0x188] sm:$0xff]
        %v2248 = vld [vmem:[#allocation8 + $0x190] sm:$0xff]
        %v2249 = vld [vmem:[#allocation8 + $0x198] sm:$0xff]
        %v2250 = vld [vmem:[#allocation8 + $0x1a0] sm:$0xff]
        %v2251 = vld [vmem:[#allocation8 + $0x1a8] sm:$0xff]
        %v2252 = vld [vmem:[#allocation8 + $0x1b0] sm:$0xff]
        %v2253 = vld [vmem:[#allocation8 + $0x1b8] sm:$0xff]
        %v2254 = vld [vmem:[#allocation8 + $0x1c0] sm:$0xff]
        %v2255 = vld [vmem:[#allocation8 + $0x1c8] sm:$0xff]
        %v2256 = vld [vmem:[#allocation8 + $0x1d0] sm:$0xff]
        %v2257 = vld [vmem:[#allocation8 + $0x1d8] sm:$0xff]
        %v2258 = vld [vmem:[#allocation8 + $0x1e0] sm:$0xff]
        %v2259 = vld [vmem:[#allocation8 + $0x1e8] sm:$0xff]
        %v2260 = vld [vmem:[#allocation8 + $0x1f0] sm:$0xff]
        %v2261 = vld [vmem:[#allocation8 + $0x1f8] sm:$0xff]
        %v2262 = vld [vmem:[#allocation8 + $0x200] sm:$0xff]
        %v2263 = vld [vmem:[#allocation8 + $0x208] sm:$0xff]
        %v2264 = vld [vmem:[#allocation8 + $0x210] sm:$0xff]
        %v2265 = vld [vmem:[#allocation8 + $0x218] sm:$0xff]
        %v2266 = vld [vmem:[#allocation8 + $0x220] sm:$0xff]
        %v2267 = vld [vmem:[#allocation8 + $0x228] sm:$0xff]
        %v2268 = vld [vmem:[#allocation8 + $0x230] sm:$0xff]
        %v2269 = vld [vmem:[#allocation8 + $0x238] sm:$0xff]
        %v2270 = vld [vmem:[#allocation8 + $0x240] sm:$0xff]
        %v2271 = vld [vmem:[#allocation8 + $0x248] sm:$0xff]
        %v2272 = vld [vmem:[#allocation8 + $0x250] sm:$0xff]
        %v2273 = vld [vmem:[#allocation8 + $0x258] sm:$0xff]
        %v2274 = vld [vmem:[#allocation8 + $0x260] sm:$0xff]
        %v2275 = vld [vmem:[#allocation8 + $0x268] sm:$0xff]
        %v2276 = vld [vmem:[#allocation8 + $0x270] sm:$0xff]
        %v2277 = vld [vmem:[#allocation8 + $0x278] sm:$0xff]
        %v2278 = vld [vmem:[#allocation8 + $0x280] sm:$0xff]
        %v2279 = vld [vmem:[#allocation8 + $0x288] sm:$0xff]
        %v2280 = vld [vmem:[#allocation8 + $0x290] sm:$0xff]
        %v2281 = vld [vmem:[#allocation8 + $0x298] sm:$0xff]
        %v2282 = vld [vmem:[#allocation8 + $0x2a0] sm:$0xff]
        %v2283 = vld [vmem:[#allocation8 + $0x2a8] sm:$0xff]
        %v2284 = vld [vmem:[#allocation8 + $0x2b0] sm:$0xff]
        %v2285 = vld [vmem:[#allocation8 + $0x2b8] sm:$0xff]
        %v2286 = vld [vmem:[#allocation8 + $0x2c0] sm:$0xff]
        %v2287 = vld [vmem:[#allocation8 + $0x2c8] sm:$0xff]
        %v2288 = vld [vmem:[#allocation8 + $0x2d0] sm:$0xff]
        %v2289 = vld [vmem:[#allocation8 + $0x2d8] sm:$0xff]
        %v2290 = vld [vmem:[#allocation8 + $0x2e0] sm:$0xff]
        %v2291 = vld [vmem:[#allocation8 + $0x2e8] sm:$0xff]
        %v2292 = vld [vmem:[#allocation8 + $0x2f0] sm:$0xff]
        %v2293 = vld [vmem:[#allocation8 + $0x2f8] sm:$0xff]
        %v2294 = vld [vmem:[#allocation8 + $0x300] sm:$0xff]
        %v2295 = vld [vmem:[#allocation8 + $0x308] sm:$0xff]
        %v2296 = vld [vmem:[#allocation8 + $0x310] sm:$0xff]
        %v2297 = vld [vmem:[#allocation8 + $0x318] sm:$0xff]
        %v2298 = vld [vmem:[#allocation8 + $0x320] sm:$0xff]
        %v2299 = vld [vmem:[#allocation8 + $0x328] sm:$0xff]
        %v2300 = vld [vmem:[#allocation8 + $0x330] sm:$0xff]
        %v2301 = vld [vmem:[#allocation8 + $0x338] sm:$0xff]
        %v2302 = vld [vmem:[#allocation8 + $0x340] sm:$0xff]
        %v2303 = vld [vmem:[#allocation8 + $0x348] sm:$0xff]
        %v2304 = vld [vmem:[#allocation8 + $0x350] sm:$0xff]
        %v2305 = vld [vmem:[#allocation8 + $0x358] sm:$0xff]
        %v2306 = vld [vmem:[#allocation8 + $0x360] sm:$0xff]
        %v2307 = vld [vmem:[#allocation8 + $0x368] sm:$0xff]
        %v2308 = vld [vmem:[#allocation8 + $0x370] sm:$0xff]
        %v2309 = vld [vmem:[#allocation8 + $0x378] sm:$0xff]
        %v2310 = vld [vmem:[#allocation8 + $0x380] sm:$0xff]
        %v2311 = vld [vmem:[#allocation8 + $0x388] sm:$0xff]
        %v2312 = vld [vmem:[#allocation8 + $0x390] sm:$0xff]
        %v2313 = vld [vmem:[#allocation8 + $0x398] sm:$0xff]
        %v2314 = vld [vmem:[#allocation8 + $0x3a0] sm:$0xff]
        %v2315 = vld [vmem:[#allocation8 + $0x3a8] sm:$0xff]
        %v2316 = vld [vmem:[#allocation8 + $0x3b0] sm:$0xff]
        %v2317 = vld [vmem:[#allocation8 + $0x3b8] sm:$0xff]
        %v2318 = vld [vmem:[#allocation8 + $0x3c0] sm:$0xff]
        %v2319 = vld [vmem:[#allocation8 + $0x3c8] sm:$0xff]
        %v2320 = vld [vmem:[#allocation8 + $0x3d0] sm:$0xff]
        %v2321 = vld [vmem:[#allocation8 + $0x3d8] sm:$0xff]
        %v2322 = vld [vmem:[#allocation8 + $0x3e0] sm:$0xff]
        %v2323 = vld [vmem:[#allocation8 + $0x3e8] sm:$0xff]
        %v2324 = vld [vmem:[#allocation8 + $0x3f0] sm:$0xff]
        %v2325 = vld [vmem:[#allocation8 + $0x3f8] sm:$0xff]
        %v2326 = vld [vmem:[#allocation8 + $0x400] sm:$0xff]
        %v2327 = vld [vmem:[#allocation8 + $0x408] sm:$0xff]
        %v2328 = vld [vmem:[#allocation8 + $0x410] sm:$0xff]
        %v2329 = vld [vmem:[#allocation8 + $0x418] sm:$0xff]
        %v2330 = vld [vmem:[#allocation8 + $0x420] sm:$0xff]
        %v2331 = vld [vmem:[#allocation8 + $0x428] sm:$0xff]
        %v2332 = vld [vmem:[#allocation8 + $0x430] sm:$0xff]
        %v2333 = vld [vmem:[#allocation8 + $0x438] sm:$0xff]
        %v2334 = vld [vmem:[#allocation8 + $0x440] sm:$0xff]
        %v2335 = vld [vmem:[#allocation8 + $0x448] sm:$0xff]
        %v2336 = vld [vmem:[#allocation8 + $0x450] sm:$0xff]
        %v2337 = vld [vmem:[#allocation8 + $0x458] sm:$0xff]
        %v2338 = vld [vmem:[#allocation8 + $0x460] sm:$0xff]
        %v2339 = vld [vmem:[#allocation8 + $0x468] sm:$0xff]
        %v2340 = vld [vmem:[#allocation8 + $0x470] sm:$0xff]
        %v2341 = vld [vmem:[#allocation8 + $0x478] sm:$0xff]
        %v2342 = vld [vmem:[#allocation8 + $0x480] sm:$0xff]
        %v2343 = vld [vmem:[#allocation8 + $0x488] sm:$0xff]
        %v2344 = vld [vmem:[#allocation8 + $0x490] sm:$0xff]
        %v2345 = vld [vmem:[#allocation8 + $0x498] sm:$0xff]
        %v2346 = vld [vmem:[#allocation8 + $0x4a0] sm:$0xff]
        %v2347 = vld [vmem:[#allocation8 + $0x4a8] sm:$0xff]
        %v2348 = vld [vmem:[#allocation8 + $0x4b0] sm:$0xff]
        %v2349 = vld [vmem:[#allocation8 + $0x4b8] sm:$0xff]
        %v2350 = vld [vmem:[#allocation8 + $0x4c0] sm:$0xff]
        %v2351 = vld [vmem:[#allocation8 + $0x4c8] sm:$0xff]
        %v2352 = vld [vmem:[#allocation8 + $0x4d0] sm:$0xff]
        %v2353 = vld [vmem:[#allocation8 + $0x4d8] sm:$0xff]
        %v2354 = vld [vmem:[#allocation8 + $0x4e0] sm:$0xff]
        %v2355 = vld [vmem:[#allocation8 + $0x4e8] sm:$0xff]
        %v2356 = vld [vmem:[#allocation8 + $0x4f0] sm:$0xff]
        %v2357 = vld [vmem:[#allocation8 + $0x4f8] sm:$0xff]
        %v2358 = vld [vmem:[#allocation8 + $0x500] sm:$0xff]
        %v2359 = vld [vmem:[#allocation8 + $0x508] sm:$0xff]
        %v2360 = vld [vmem:[#allocation8 + $0x510] sm:$0xff]
        %v2361 = vld [vmem:[#allocation8 + $0x518] sm:$0xff]
        %v2362 = vld [vmem:[#allocation8 + $0x520] sm:$0xff]
        %v2363 = vld [vmem:[#allocation8 + $0x528] sm:$0xff]
        %v2364 = vld [vmem:[#allocation8 + $0x530] sm:$0xff]
        %v2365 = vld [vmem:[#allocation8 + $0x538] sm:$0xff]
        %v2366 = vld [vmem:[#allocation8 + $0x540] sm:$0xff]
        %v2367 = vld [vmem:[#allocation8 + $0x548] sm:$0xff]
        %v2368 = vld [vmem:[#allocation8 + $0x550] sm:$0xff]
        %v2369 = vld [vmem:[#allocation8 + $0x558] sm:$0xff]
        %v2370 = vld [vmem:[#allocation8 + $0x560] sm:$0xff]
        %v2371 = vld [vmem:[#allocation8 + $0x568] sm:$0xff]
        %v2372 = vld [vmem:[#allocation8 + $0x570] sm:$0xff]
        %v2373 = vld [vmem:[#allocation8 + $0x578] sm:$0xff]
        %v2374 = vld [vmem:[#allocation8 + $0x580] sm:$0xff]
        %v2375 = vld [vmem:[#allocation8 + $0x588] sm:$0xff]
        %v2376 = vld [vmem:[#allocation8 + $0x590] sm:$0xff]
        %v2377 = vld [vmem:[#allocation8 + $0x598] sm:$0xff]
        %v2378 = vld [vmem:[#allocation8 + $0x5a0] sm:$0xff]
        %v2379 = vld [vmem:[#allocation8 + $0x5a8] sm:$0xff]
        %v2380 = vld [vmem:[#allocation8 + $0x5b0] sm:$0xff]
        %v2381 = vld [vmem:[#allocation8 + $0x5b8] sm:$0xff]
        %v2382 = vld [vmem:[#allocation8 + $0x5c0] sm:$0xff]
        %v2383 = vld [vmem:[#allocation8 + $0x5c8] sm:$0xff]
        %v2384 = vld [vmem:[#allocation8 + $0x5d0] sm:$0xff]
        %v2385 = vld [vmem:[#allocation8 + $0x5d8] sm:$0xff]
        %v2386 = vld [vmem:[#allocation8 + $0x5e0] sm:$0xff]
        %v2387 = vld [vmem:[#allocation8 + $0x5e8] sm:$0xff]
        %v2388 = vld [vmem:[#allocation8 + $0x5f0] sm:$0xff]
        %v2389 = vld [vmem:[#allocation8 + $0x5f8] sm:$0xff]
        %v2390 = vld [vmem:[#allocation8 + $0x600] sm:$0xff]
        %v2391 = vld [vmem:[#allocation8 + $0x608] sm:$0xff]
        %v2392 = vld [vmem:[#allocation8 + $0x610] sm:$0xff]
        %v2393 = vld [vmem:[#allocation8 + $0x618] sm:$0xff]
        %v2394 = vld [vmem:[#allocation8 + $0x620] sm:$0xff]
        %v2395 = vld [vmem:[#allocation8 + $0x628] sm:$0xff]
        %v2396 = vld [vmem:[#allocation8 + $0x630] sm:$0xff]
        %v2397 = vld [vmem:[#allocation8 + $0x638] sm:$0xff]
        %v2398 = vld [vmem:[#allocation8 + $0x640] sm:$0xff]
        %v2399 = vld [vmem:[#allocation8 + $0x648] sm:$0xff]
        %v2400 = vld [vmem:[#allocation8 + $0x650] sm:$0xff]
        %v2401 = vld [vmem:[#allocation8 + $0x658] sm:$0xff]
        %v2402 = vld [vmem:[#allocation8 + $0x660] sm:$0xff]
        %v2403 = vld [vmem:[#allocation8 + $0x668] sm:$0xff]
        %v2404 = vld [vmem:[#allocation8 + $0x670] sm:$0xff]
        %v2405 = vld [vmem:[#allocation8 + $0x678] sm:$0xff]
        %v2406 = vld [vmem:[#allocation8 + $0x680] sm:$0xff]
        %v2407 = vld [vmem:[#allocation8 + $0x688] sm:$0xff]
        %v2408 = vld [vmem:[#allocation8 + $0x690] sm:$0xff]
        %v2409 = vld [vmem:[#allocation8 + $0x698] sm:$0xff]
        %v2410 = vld [vmem:[#allocation8 + $0x6a0] sm:$0xff]
        %v2411 = vld [vmem:[#allocation8 + $0x6a8] sm:$0xff]
        %v2412 = vld [vmem:[#allocation8 + $0x6b0] sm:$0xff]
        %v2413 = vld [vmem:[#allocation8 + $0x6b8] sm:$0xff]
        %v2414 = vld [vmem:[#allocation8 + $0x6c0] sm:$0xff]
        %v2415 = vld [vmem:[#allocation8 + $0x6c8] sm:$0xff]
        %v2416 = vld [vmem:[#allocation8 + $0x6d0] sm:$0xff]
        %v2417 = vld [vmem:[#allocation8 + $0x6d8] sm:$0xff]
        %v2418 = vld [vmem:[#allocation8 + $0x6e0] sm:$0xff]
        %v2419 = vld [vmem:[#allocation8 + $0x6e8] sm:$0xff]
        %v2420 = vld [vmem:[#allocation8 + $0x6f0] sm:$0xff]
        %v2421 = vld [vmem:[#allocation8 + $0x6f8] sm:$0xff]
        %v2422 = vld [vmem:[#allocation8 + $0x700] sm:$0xff]
        %v2423 = vld [vmem:[#allocation8 + $0x708] sm:$0xff]
        %v2424 = vld [vmem:[#allocation8 + $0x710] sm:$0xff]
        %v2425 = vld [vmem:[#allocation8 + $0x718] sm:$0xff]
        %v2426 = vld [vmem:[#allocation8 + $0x720] sm:$0xff]
        %v2427 = vld [vmem:[#allocation8 + $0x728] sm:$0xff]
        %v2428 = vld [vmem:[#allocation8 + $0x730] sm:$0xff]
        %v2429 = vld [vmem:[#allocation8 + $0x738] sm:$0xff]
        %v2430 = vld [vmem:[#allocation8 + $0x740] sm:$0xff]
        %v2431 = vld [vmem:[#allocation8 + $0x748] sm:$0xff]
        %v2432 = vld [vmem:[#allocation8 + $0x750] sm:$0xff]
        %v2433 = vld [vmem:[#allocation8 + $0x758] sm:$0xff]
        %v2434 = vld [vmem:[#allocation8 + $0x760] sm:$0xff]
        %v2435 = vld [vmem:[#allocation8 + $0x768] sm:$0xff]
        %v2436 = vld [vmem:[#allocation8 + $0x770] sm:$0xff]
        %v2437 = vld [vmem:[#allocation8 + $0x778] sm:$0xff]
        %v2438 = vld [vmem:[#allocation8 + $0x780] sm:$0xff]
        %v2439 = vld [vmem:[#allocation8 + $0x788] sm:$0xff]
        %v2440 = vld [vmem:[#allocation8 + $0x790] sm:$0xff]
        %v2441 = vld [vmem:[#allocation8 + $0x798] sm:$0xff]
        %v2442 = vld [vmem:[#allocation8 + $0x7a0] sm:$0xff]
        %v2443 = vld [vmem:[#allocation8 + $0x7a8] sm:$0xff]
        %v2444 = vld [vmem:[#allocation8 + $0x7b0] sm:$0xff]
        %v2445 = vld [vmem:[#allocation8 + $0x7b8] sm:$0xff]
        %v2446 = vld [vmem:[#allocation8 + $0x7c0] sm:$0xff]
        %v2447 = vld [vmem:[#allocation8 + $0x7c8] sm:$0xff]
        %v2448 = vld [vmem:[#allocation8 + $0x7d0] sm:$0xff]
        %v2449 = vld [vmem:[#allocation8 + $0x7d8] sm:$0xff]
        %v2450 = vld [vmem:[#allocation8 + $0x7e0] sm:$0xff]
        %v2451 = vld [vmem:[#allocation8 + $0x7e8] sm:$0xff]
        %v2452 = vld [vmem:[#allocation8 + $0x7f0] sm:$0xff]
        %v2453 = vld [vmem:[#allocation8 + $0x7f8] sm:$0xff]
        %v2454 = vld [vmem:[#allocation2] sm:$0xfe]
        %v2455 = vld [vmem:[#allocation2 + $0x8] sm:$0xfe]
        %v2456 = vld [vmem:[#allocation2 + $0x10] sm:$0xfe]
        %v2457 = vld [vmem:[#allocation2 + $0x18] sm:$0xfe]
        %v2458 = vld [vmem:[#allocation2 + $0x40] sm:$0x1]
        %v2459 = vld [vmem:[#allocation2 + $0x48] sm:$0x1]
        %v2460 = vld [vmem:[#allocation2 + $0x50] sm:$0x1]
        %v2461 = vld [vmem:[#allocation2 + $0x58] sm:$0x1]
        %s2462 = scalar_lea.vmem [#allocation8], 2048
        %v2463 = vld [vmem:[%s2462] sm:$0xff]
        %v2464 = vld [vmem:[%s2462 + $0x8] sm:$0xff]
        %v2465 = vld [vmem:[%s2462 + $0x10] sm:$0xff]
        %v2466 = vld [vmem:[%s2462 + $0x18] sm:$0xff]
        %v2467 = vld [vmem:[%s2462 + $0x20] sm:$0xff]
        %v2468 = vld [vmem:[%s2462 + $0x28] sm:$0xff]
        %v2469 = vld [vmem:[%s2462 + $0x30] sm:$0xff]
        %v2470 = vld [vmem:[%s2462 + $0x38] sm:$0xff]
        %v2471 = vld [vmem:[%s2462 + $0x40] sm:$0xff]
        %v2472 = vld [vmem:[%s2462 + $0x48] sm:$0xff]
        %v2473 = vld [vmem:[%s2462 + $0x50] sm:$0xff]
        %v2474 = vld [vmem:[%s2462 + $0x58] sm:$0xff]
        %v2475 = vld [vmem:[%s2462 + $0x60] sm:$0xff]
        %v2476 = vld [vmem:[%s2462 + $0x68] sm:$0xff]
        %v2477 = vld [vmem:[%s2462 + $0x70] sm:$0xff]
        %v2478 = vld [vmem:[%s2462 + $0x78] sm:$0xff]
        %v2479 = vld [vmem:[%s2462 + $0x80] sm:$0xff]
        %v2480 = vld [vmem:[%s2462 + $0x88] sm:$0xff]
        %v2481 = vld [vmem:[%s2462 + $0x90] sm:$0xff]
        %v2482 = vld [vmem:[%s2462 + $0x98] sm:$0xff]
        %v2483 = vld [vmem:[%s2462 + $0xa0] sm:$0xff]
        %v2484 = vld [vmem:[%s2462 + $0xa8] sm:$0xff]
        %v2485 = vld [vmem:[%s2462 + $0xb0] sm:$0xff]
        %v2486 = vld [vmem:[%s2462 + $0xb8] sm:$0xff]
        %v2487 = vld [vmem:[%s2462 + $0xc0] sm:$0xff]
        %v2488 = vld [vmem:[%s2462 + $0xc8] sm:$0xff]
        %v2489 = vld [vmem:[%s2462 + $0xd0] sm:$0xff]
        %v2490 = vld [vmem:[%s2462 + $0xd8] sm:$0xff]
        %v2491 = vld [vmem:[%s2462 + $0xe0] sm:$0xff]
        %v2492 = vld [vmem:[%s2462 + $0xe8] sm:$0xff]
        %v2493 = vld [vmem:[%s2462 + $0xf0] sm:$0xff]
        %v2494 = vld [vmem:[%s2462 + $0xf8] sm:$0xff]
        %v2495 = vld [vmem:[%s2462 + $0x100] sm:$0xff]
        %v2496 = vld [vmem:[%s2462 + $0x108] sm:$0xff]
        %v2497 = vld [vmem:[%s2462 + $0x110] sm:$0xff]
        %v2498 = vld [vmem:[%s2462 + $0x118] sm:$0xff]
        %v2499 = vld [vmem:[%s2462 + $0x120] sm:$0xff]
        %v2500 = vld [vmem:[%s2462 + $0x128] sm:$0xff]
        %v2501 = vld [vmem:[%s2462 + $0x130] sm:$0xff]
        %v2502 = vld [vmem:[%s2462 + $0x138] sm:$0xff]
        %v2503 = vld [vmem:[%s2462 + $0x140] sm:$0xff]
        %v2504 = vld [vmem:[%s2462 + $0x148] sm:$0xff]
        %v2505 = vld [vmem:[%s2462 + $0x150] sm:$0xff]
        %v2506 = vld [vmem:[%s2462 + $0x158] sm:$0xff]
        %v2507 = vld [vmem:[%s2462 + $0x160] sm:$0xff]
        %v2508 = vld [vmem:[%s2462 + $0x168] sm:$0xff]
        %v2509 = vld [vmem:[%s2462 + $0x170] sm:$0xff]
        %v2510 = vld [vmem:[%s2462 + $0x178] sm:$0xff]
        %v2511 = vld [vmem:[%s2462 + $0x180] sm:$0xff]
        %v2512 = vld [vmem:[%s2462 + $0x188] sm:$0xff]
        %v2513 = vld [vmem:[%s2462 + $0x190] sm:$0xff]
        %v2514 = vld [vmem:[%s2462 + $0x198] sm:$0xff]
        %v2515 = vld [vmem:[%s2462 + $0x1a0] sm:$0xff]
        %v2516 = vld [vmem:[%s2462 + $0x1a8] sm:$0xff]
        %v2517 = vld [vmem:[%s2462 + $0x1b0] sm:$0xff]
        %v2518 = vld [vmem:[%s2462 + $0x1b8] sm:$0xff]
        %v2519 = vld [vmem:[%s2462 + $0x1c0] sm:$0xff]
        %v2520 = vld [vmem:[%s2462 + $0x1c8] sm:$0xff]
        %v2521 = vld [vmem:[%s2462 + $0x1d0] sm:$0xff]
        %v2522 = vld [vmem:[%s2462 + $0x1d8] sm:$0xff]
        %v2523 = vld [vmem:[%s2462 + $0x1e0] sm:$0xff]
        %v2524 = vld [vmem:[%s2462 + $0x1e8] sm:$0xff]
        %v2525 = vld [vmem:[%s2462 + $0x1f0] sm:$0xff]
        %v2526 = vld [vmem:[%s2462 + $0x1f8] sm:$0xff]
        %v2527 = vld [vmem:[%s2462 + $0x200] sm:$0xff]
        %v2528 = vld [vmem:[%s2462 + $0x208] sm:$0xff]
        %v2529 = vld [vmem:[%s2462 + $0x210] sm:$0xff]
        %v2530 = vld [vmem:[%s2462 + $0x218] sm:$0xff]
        %v2531 = vld [vmem:[%s2462 + $0x220] sm:$0xff]
        %v2532 = vld [vmem:[%s2462 + $0x228] sm:$0xff]
        %v2533 = vld [vmem:[%s2462 + $0x230] sm:$0xff]
        %v2534 = vld [vmem:[%s2462 + $0x238] sm:$0xff]
        %v2535 = vld [vmem:[%s2462 + $0x240] sm:$0xff]
        %v2536 = vld [vmem:[%s2462 + $0x248] sm:$0xff]
        %v2537 = vld [vmem:[%s2462 + $0x250] sm:$0xff]
        %v2538 = vld [vmem:[%s2462 + $0x258] sm:$0xff]
        %v2539 = vld [vmem:[%s2462 + $0x260] sm:$0xff]
        %v2540 = vld [vmem:[%s2462 + $0x268] sm:$0xff]
        %v2541 = vld [vmem:[%s2462 + $0x270] sm:$0xff]
        %v2542 = vld [vmem:[%s2462 + $0x278] sm:$0xff]
        %v2543 = vld [vmem:[%s2462 + $0x280] sm:$0xff]
        %v2544 = vld [vmem:[%s2462 + $0x288] sm:$0xff]
        %v2545 = vld [vmem:[%s2462 + $0x290] sm:$0xff]
        %v2546 = vld [vmem:[%s2462 + $0x298] sm:$0xff]
        %v2547 = vld [vmem:[%s2462 + $0x2a0] sm:$0xff]
        %v2548 = vld [vmem:[%s2462 + $0x2a8] sm:$0xff]
        %v2549 = vld [vmem:[%s2462 + $0x2b0] sm:$0xff]
        %v2550 = vld [vmem:[%s2462 + $0x2b8] sm:$0xff]
        %v2551 = vld [vmem:[%s2462 + $0x2c0] sm:$0xff]
        %v2552 = vld [vmem:[%s2462 + $0x2c8] sm:$0xff]
        %v2553 = vld [vmem:[%s2462 + $0x2d0] sm:$0xff]
        %v2554 = vld [vmem:[%s2462 + $0x2d8] sm:$0xff]
        %v2555 = vld [vmem:[%s2462 + $0x2e0] sm:$0xff]
        %v2556 = vld [vmem:[%s2462 + $0x2e8] sm:$0xff]
        %v2557 = vld [vmem:[%s2462 + $0x2f0] sm:$0xff]
        %v2558 = vld [vmem:[%s2462 + $0x2f8] sm:$0xff]
        %v2559 = vld [vmem:[%s2462 + $0x300] sm:$0xff]
        %v2560 = vld [vmem:[%s2462 + $0x308] sm:$0xff]
        %v2561 = vld [vmem:[%s2462 + $0x310] sm:$0xff]
        %v2562 = vld [vmem:[%s2462 + $0x318] sm:$0xff]
        %v2563 = vld [vmem:[%s2462 + $0x320] sm:$0xff]
        %v2564 = vld [vmem:[%s2462 + $0x328] sm:$0xff]
        %v2565 = vld [vmem:[%s2462 + $0x330] sm:$0xff]
        %v2566 = vld [vmem:[%s2462 + $0x338] sm:$0xff]
        %v2567 = vld [vmem:[%s2462 + $0x340] sm:$0xff]
        %v2568 = vld [vmem:[%s2462 + $0x348] sm:$0xff]
        %v2569 = vld [vmem:[%s2462 + $0x350] sm:$0xff]
        %v2570 = vld [vmem:[%s2462 + $0x358] sm:$0xff]
        %v2571 = vld [vmem:[%s2462 + $0x360] sm:$0xff]
        %v2572 = vld [vmem:[%s2462 + $0x368] sm:$0xff]
        %v2573 = vld [vmem:[%s2462 + $0x370] sm:$0xff]
        %v2574 = vld [vmem:[%s2462 + $0x378] sm:$0xff]
        %v2575 = vld [vmem:[%s2462 + $0x380] sm:$0xff]
        %v2576 = vld [vmem:[%s2462 + $0x388] sm:$0xff]
        %v2577 = vld [vmem:[%s2462 + $0x390] sm:$0xff]
        %v2578 = vld [vmem:[%s2462 + $0x398] sm:$0xff]
        %v2579 = vld [vmem:[%s2462 + $0x3a0] sm:$0xff]
        %v2580 = vld [vmem:[%s2462 + $0x3a8] sm:$0xff]
        %v2581 = vld [vmem:[%s2462 + $0x3b0] sm:$0xff]
        %v2582 = vld [vmem:[%s2462 + $0x3b8] sm:$0xff]
        %v2583 = vld [vmem:[%s2462 + $0x3c0] sm:$0xff]
        %v2584 = vld [vmem:[%s2462 + $0x3c8] sm:$0xff]
        %v2585 = vld [vmem:[%s2462 + $0x3d0] sm:$0xff]
        %v2586 = vld [vmem:[%s2462 + $0x3d8] sm:$0xff]
        %v2587 = vld [vmem:[%s2462 + $0x3e0] sm:$0xff]
        %v2588 = vld [vmem:[%s2462 + $0x3e8] sm:$0xff]
        %v2589 = vld [vmem:[%s2462 + $0x3f0] sm:$0xff]
        %v2590 = vld [vmem:[%s2462 + $0x3f8] sm:$0xff]
        %v2591 = vld [vmem:[%s2462 + $0x400] sm:$0xff]
        %v2592 = vld [vmem:[%s2462 + $0x408] sm:$0xff]
        %v2593 = vld [vmem:[%s2462 + $0x410] sm:$0xff]
        %v2594 = vld [vmem:[%s2462 + $0x418] sm:$0xff]
        %v2595 = vld [vmem:[%s2462 + $0x420] sm:$0xff]
        %v2596 = vld [vmem:[%s2462 + $0x428] sm:$0xff]
        %v2597 = vld [vmem:[%s2462 + $0x430] sm:$0xff]
        %v2598 = vld [vmem:[%s2462 + $0x438] sm:$0xff]
        %v2599 = vld [vmem:[%s2462 + $0x440] sm:$0xff]
        %v2600 = vld [vmem:[%s2462 + $0x448] sm:$0xff]
        %v2601 = vld [vmem:[%s2462 + $0x450] sm:$0xff]
        %v2602 = vld [vmem:[%s2462 + $0x458] sm:$0xff]
        %v2603 = vld [vmem:[%s2462 + $0x460] sm:$0xff]
        %v2604 = vld [vmem:[%s2462 + $0x468] sm:$0xff]
        %v2605 = vld [vmem:[%s2462 + $0x470] sm:$0xff]
        %v2606 = vld [vmem:[%s2462 + $0x478] sm:$0xff]
        %v2607 = vld [vmem:[%s2462 + $0x480] sm:$0xff]
        %v2608 = vld [vmem:[%s2462 + $0x488] sm:$0xff]
        %v2609 = vld [vmem:[%s2462 + $0x490] sm:$0xff]
        %v2610 = vld [vmem:[%s2462 + $0x498] sm:$0xff]
        %v2611 = vld [vmem:[%s2462 + $0x4a0] sm:$0xff]
        %v2612 = vld [vmem:[%s2462 + $0x4a8] sm:$0xff]
        %v2613 = vld [vmem:[%s2462 + $0x4b0] sm:$0xff]
        %v2614 = vld [vmem:[%s2462 + $0x4b8] sm:$0xff]
        %v2615 = vld [vmem:[%s2462 + $0x4c0] sm:$0xff]
        %v2616 = vld [vmem:[%s2462 + $0x4c8] sm:$0xff]
        %v2617 = vld [vmem:[%s2462 + $0x4d0] sm:$0xff]
        %v2618 = vld [vmem:[%s2462 + $0x4d8] sm:$0xff]
        %v2619 = vld [vmem:[%s2462 + $0x4e0] sm:$0xff]
        %v2620 = vld [vmem:[%s2462 + $0x4e8] sm:$0xff]
        %v2621 = vld [vmem:[%s2462 + $0x4f0] sm:$0xff]
        %v2622 = vld [vmem:[%s2462 + $0x4f8] sm:$0xff]
        %v2623 = vld [vmem:[%s2462 + $0x500] sm:$0xff]
        %v2624 = vld [vmem:[%s2462 + $0x508] sm:$0xff]
        %v2625 = vld [vmem:[%s2462 + $0x510] sm:$0xff]
        %v2626 = vld [vmem:[%s2462 + $0x518] sm:$0xff]
        %v2627 = vld [vmem:[%s2462 + $0x520] sm:$0xff]
        %v2628 = vld [vmem:[%s2462 + $0x528] sm:$0xff]
        %v2629 = vld [vmem:[%s2462 + $0x530] sm:$0xff]
        %v2630 = vld [vmem:[%s2462 + $0x538] sm:$0xff]
        %v2631 = vld [vmem:[%s2462 + $0x540] sm:$0xff]
        %v2632 = vld [vmem:[%s2462 + $0x548] sm:$0xff]
        %v2633 = vld [vmem:[%s2462 + $0x550] sm:$0xff]
        %v2634 = vld [vmem:[%s2462 + $0x558] sm:$0xff]
        %v2635 = vld [vmem:[%s2462 + $0x560] sm:$0xff]
        %v2636 = vld [vmem:[%s2462 + $0x568] sm:$0xff]
        %v2637 = vld [vmem:[%s2462 + $0x570] sm:$0xff]
        %v2638 = vld [vmem:[%s2462 + $0x578] sm:$0xff]
        %v2639 = vld [vmem:[%s2462 + $0x580] sm:$0xff]
        %v2640 = vld [vmem:[%s2462 + $0x588] sm:$0xff]
        %v2641 = vld [vmem:[%s2462 + $0x590] sm:$0xff]
        %v2642 = vld [vmem:[%s2462 + $0x598] sm:$0xff]
        %v2643 = vld [vmem:[%s2462 + $0x5a0] sm:$0xff]
        %v2644 = vld [vmem:[%s2462 + $0x5a8] sm:$0xff]
        %v2645 = vld [vmem:[%s2462 + $0x5b0] sm:$0xff]
        %v2646 = vld [vmem:[%s2462 + $0x5b8] sm:$0xff]
        %v2647 = vld [vmem:[%s2462 + $0x5c0] sm:$0xff]
        %v2648 = vld [vmem:[%s2462 + $0x5c8] sm:$0xff]
        %v2649 = vld [vmem:[%s2462 + $0x5d0] sm:$0xff]
        %v2650 = vld [vmem:[%s2462 + $0x5d8] sm:$0xff]
        %v2651 = vld [vmem:[%s2462 + $0x5e0] sm:$0xff]
        %v2652 = vld [vmem:[%s2462 + $0x5e8] sm:$0xff]
        %v2653 = vld [vmem:[%s2462 + $0x5f0] sm:$0xff]
        %v2654 = vld [vmem:[%s2462 + $0x5f8] sm:$0xff]
        %v2655 = vld [vmem:[%s2462 + $0x600] sm:$0xff]
        %v2656 = vld [vmem:[%s2462 + $0x608] sm:$0xff]
        %v2657 = vld [vmem:[%s2462 + $0x610] sm:$0xff]
        %v2658 = vld [vmem:[%s2462 + $0x618] sm:$0xff]
        %v2659 = vld [vmem:[%s2462 + $0x620] sm:$0xff]
        %v2660 = vld [vmem:[%s2462 + $0x628] sm:$0xff]
        %v2661 = vld [vmem:[%s2462 + $0x630] sm:$0xff]
        %v2662 = vld [vmem:[%s2462 + $0x638] sm:$0xff]
        %v2663 = vld [vmem:[%s2462 + $0x640] sm:$0xff]
        %v2664 = vld [vmem:[%s2462 + $0x648] sm:$0xff]
        %v2665 = vld [vmem:[%s2462 + $0x650] sm:$0xff]
        %v2666 = vld [vmem:[%s2462 + $0x658] sm:$0xff]
        %v2667 = vld [vmem:[%s2462 + $0x660] sm:$0xff]
        %v2668 = vld [vmem:[%s2462 + $0x668] sm:$0xff]
        %v2669 = vld [vmem:[%s2462 + $0x670] sm:$0xff]
        %v2670 = vld [vmem:[%s2462 + $0x678] sm:$0xff]
        %v2671 = vld [vmem:[%s2462 + $0x680] sm:$0xff]
        %v2672 = vld [vmem:[%s2462 + $0x688] sm:$0xff]
        %v2673 = vld [vmem:[%s2462 + $0x690] sm:$0xff]
        %v2674 = vld [vmem:[%s2462 + $0x698] sm:$0xff]
        %v2675 = vld [vmem:[%s2462 + $0x6a0] sm:$0xff]
        %v2676 = vld [vmem:[%s2462 + $0x6a8] sm:$0xff]
        %v2677 = vld [vmem:[%s2462 + $0x6b0] sm:$0xff]
        %v2678 = vld [vmem:[%s2462 + $0x6b8] sm:$0xff]
        %v2679 = vld [vmem:[%s2462 + $0x6c0] sm:$0xff]
        %v2680 = vld [vmem:[%s2462 + $0x6c8] sm:$0xff]
        %v2681 = vld [vmem:[%s2462 + $0x6d0] sm:$0xff]
        %v2682 = vld [vmem:[%s2462 + $0x6d8] sm:$0xff]
        %v2683 = vld [vmem:[%s2462 + $0x6e0] sm:$0xff]
        %v2684 = vld [vmem:[%s2462 + $0x6e8] sm:$0xff]
        %v2685 = vld [vmem:[%s2462 + $0x6f0] sm:$0xff]
        %v2686 = vld [vmem:[%s2462 + $0x6f8] sm:$0xff]
        %v2687 = vld [vmem:[%s2462 + $0x700] sm:$0xff]
        %v2688 = vld [vmem:[%s2462 + $0x708] sm:$0xff]
        %v2689 = vld [vmem:[%s2462 + $0x710] sm:$0xff]
        %v2690 = vld [vmem:[%s2462 + $0x718] sm:$0xff]
        %v2691 = vld [vmem:[%s2462 + $0x720] sm:$0xff]
        %v2692 = vld [vmem:[%s2462 + $0x728] sm:$0xff]
        %v2693 = vld [vmem:[%s2462 + $0x730] sm:$0xff]
        %v2694 = vld [vmem:[%s2462 + $0x738] sm:$0xff]
        %v2695 = vld [vmem:[%s2462 + $0x740] sm:$0xff]
        %v2696 = vld [vmem:[%s2462 + $0x748] sm:$0xff]
        %v2697 = vld [vmem:[%s2462 + $0x750] sm:$0xff]
        %v2698 = vld [vmem:[%s2462 + $0x758] sm:$0xff]
        %v2699 = vld [vmem:[%s2462 + $0x760] sm:$0xff]
        %v2700 = vld [vmem:[%s2462 + $0x768] sm:$0xff]
        %v2701 = vld [vmem:[%s2462 + $0x770] sm:$0xff]
        %v2702 = vld [vmem:[%s2462 + $0x778] sm:$0xff]
        %v2703 = vld [vmem:[%s2462 + $0x780] sm:$0xff]
        %v2704 = vld [vmem:[%s2462 + $0x788] sm:$0xff]
        %v2705 = vld [vmem:[%s2462 + $0x790] sm:$0xff]
        %v2706 = vld [vmem:[%s2462 + $0x798] sm:$0xff]
        %v2707 = vld [vmem:[%s2462 + $0x7a0] sm:$0xff]
        %v2708 = vld [vmem:[%s2462 + $0x7a8] sm:$0xff]
        %v2709 = vld [vmem:[%s2462 + $0x7b0] sm:$0xff]
        %v2710 = vld [vmem:[%s2462 + $0x7b8] sm:$0xff]
        %v2711 = vld [vmem:[%s2462 + $0x7c0] sm:$0xff]
        %v2712 = vld [vmem:[%s2462 + $0x7c8] sm:$0xff]
        %v2713 = vld [vmem:[%s2462 + $0x7d0] sm:$0xff]
        %v2714 = vld [vmem:[%s2462 + $0x7d8] sm:$0xff]
        %v2715 = vld [vmem:[%s2462 + $0x7e0] sm:$0xff]
        %v2716 = vld [vmem:[%s2462 + $0x7e8] sm:$0xff]
        %v2717 = vld [vmem:[%s2462 + $0x7f0] sm:$0xff]
        %v2718 = vld [vmem:[%s2462 + $0x7f8] sm:$0xff]
        %v2731 = vrot.slane %v2454, 1
        %v2732 = vrot.slane %v2194, 1
        %v2733 = vsel %vm819, %v2731, %v2732
        %v2734 = vrot.slane %v2455, 1
        %v2735 = vrot.slane %v2195, 1
        %v2736 = vsel %vm819, %v2734, %v2735
        %v2737 = vrot.slane %v2456, 1
        %v2738 = vrot.slane %v2196, 1
        %v2739 = vsel %vm819, %v2737, %v2738
        %v2740 = vrot.slane %v2457, 1
        %v2741 = vrot.slane %v2197, 1
        %v2742 = vsel %vm819, %v2740, %v2741
        %v2743 = vrot.slane %v2458, 1
        %v2744 = vsel %vm819, %v2732, %v2743
        %v2745 = vrot.slane %v2459, 1
        %v2746 = vsel %vm819, %v2735, %v2745
        %v2747 = vrot.slane %v2460, 1
        %v2748 = vsel %vm819, %v2738, %v2747
        %v2749 = vrot.slane %v2461, 1
        %v2750 = vsel %vm819, %v2741, %v2749
        %2759 = vmatprep.subr.mxu0 %v2524
        %2760 = vmatpush1.msra.mxu0 %v2523
        %2761 = vmatprep.subr.mxu0 %v2520
        %2762 = vmatpush1.msra.mxu0 %v2519
        %2763 = vmatprep.subr.mxu0 %v2516
        %2764 = vmatpush1.msra.mxu0 %v2515
        %2765 = vmatprep.subr.mxu0 %v2512
        %2766 = vmatpush1.msra.mxu0 %v2511
        %2767 = vmatprep.subr.mxu0 %v2508
        %2768 = vmatpush1.msra.mxu0 %v2507
        %2769 = vmatprep.subr.mxu0 %v2504
        %2770 = vmatpush1.msra.mxu0 %v2503
        %2771 = vmatprep.subr.mxu0 %v2500
        %2772 = vmatpush1.msra.mxu0 %v2499
        %2773 = vmatprep.subr.mxu0 %v2496
        %2774 = vmatpush1.msra.mxu0 %v2495
        %2775 = vmatprep.subr.mxu0 %v2492
        %2776 = vmatpush1.msra.mxu0 %v2491
        %2777 = vmatprep.subr.mxu0 %v2488
        %2778 = vmatpush1.msra.mxu0 %v2487
        %2779 = vmatprep.subr.mxu0 %v2484
        %2780 = vmatpush1.msra.mxu0 %v2483
        %2781 = vmatprep.subr.mxu0 %v2480
        %2782 = vmatpush1.msra.mxu0 %v2479
        %2783 = vmatprep.subr.mxu0 %v2476
        %2784 = vmatpush1.msra.mxu0 %v2475
        %2785 = vmatprep.subr.mxu0 %v2472
        %2786 = vmatpush1.msra.mxu0 %v2471
        %2787 = vmatprep.subr.mxu0 %v2468
        %2788 = vmatpush1.msra.mxu0 %v2467
        %2789 = vmatprep.subr.mxu0 %v2464
        %2790 = vmatpush1.msra.mxu0 %v2463
        %2791 = vmatprep.subr.mxu0 %v2588
        %2792 = vmatpush2.msra.mxu0 %v2587
        %2793 = vmatprep.subr.mxu0 %v2584
        %2794 = vmatpush2.msra.mxu0 %v2583
        %2795 = vmatprep.subr.mxu0 %v2580
        %2796 = vmatpush2.msra.mxu0 %v2579
        %2797 = vmatprep.subr.mxu0 %v2576
        %2798 = vmatpush2.msra.mxu0 %v2575
        %2799 = vmatprep.subr.mxu0 %v2572
        %2800 = vmatpush2.msra.mxu0 %v2571
        %2801 = vmatprep.subr.mxu0 %v2568
        %2802 = vmatpush2.msra.mxu0 %v2567
        %2803 = vmatprep.subr.mxu0 %v2564
        %2804 = vmatpush2.msra.mxu0 %v2563
        %2805 = vmatprep.subr.mxu0 %v2560
        %2806 = vmatpush2.msra.mxu0 %v2559
        %2807 = vmatprep.subr.mxu0 %v2556
        %2808 = vmatpush2.msra.mxu0 %v2555
        %2809 = vmatprep.subr.mxu0 %v2552
        %2810 = vmatpush2.msra.mxu0 %v2551
        %2811 = vmatprep.subr.mxu0 %v2548
        %2812 = vmatpush2.msra.mxu0 %v2547
        %2813 = vmatprep.subr.mxu0 %v2544
        %2814 = vmatpush2.msra.mxu0 %v2543
        %2815 = vmatprep.subr.mxu0 %v2540
        %2816 = vmatpush2.msra.mxu0 %v2539
        %2817 = vmatprep.subr.mxu0 %v2536
        %2818 = vmatpush2.msra.mxu0 %v2535
        %2819 = vmatprep.subr.mxu0 %v2532
        %2820 = vmatpush2.msra.mxu0 %v2531
        %2821 = vmatprep.subr.mxu0 %v2528
        %2822 = vmatpush2.msra.mxu0 %v2527
        %2823 = vmatprep.mubr.f32.mxu0 %v2736
        %2824 = vmatmul.mubr.f32.gmra.mxu0 %v2733
        %v2825 = vpop.f32.mrf.mxu0
        %v2826 = vadd.f32 0.0, %v2825
        %v2827 = vpop.f32.mrf.mxu0
        %v2828 = vadd.f32 0.0, %v2827
        %2829 = vmatprep.mubr.f32.mxu0 %v2746
        %2830 = vmatmul.mubr.f32.gmra.mxu0 %v2744
        %v2831 = vpop.f32.mrf.mxu0
        %v2832 = vadd.f32 0.0, %v2831
        %v2833 = vpop.f32.mrf.mxu0
        %v2834 = vadd.f32 0.0, %v2833
        %2835 = vdwg.mxu0
        %2836 = vmatprep.subr.mxu0 %v2652
        %2837 = vmatpush1.msra.mxu0 %v2651
        %2838 = vmatprep.subr.mxu0 %v2648
        %2839 = vmatpush1.msra.mxu0 %v2647
        %2840 = vmatprep.subr.mxu0 %v2644
        %2841 = vmatpush1.msra.mxu0 %v2643
        %2842 = vmatprep.subr.mxu0 %v2640
        %2843 = vmatpush1.msra.mxu0 %v2639
        %2844 = vmatprep.subr.mxu0 %v2636
        %2845 = vmatpush1.msra.mxu0 %v2635
        %2846 = vmatprep.subr.mxu0 %v2632
        %2847 = vmatpush1.msra.mxu0 %v2631
        %2848 = vmatprep.subr.mxu0 %v2628
        %2849 = vmatpush1.msra.mxu0 %v2627
        %2850 = vmatprep.subr.mxu0 %v2624
        %2851 = vmatpush1.msra.mxu0 %v2623
        %2852 = vmatprep.subr.mxu0 %v2620
        %2853 = vmatpush1.msra.mxu0 %v2619
        %2854 = vmatprep.subr.mxu0 %v2616
        %2855 = vmatpush1.msra.mxu0 %v2615
        %2856 = vmatprep.subr.mxu0 %v2612
        %2857 = vmatpush1.msra.mxu0 %v2611
        %2858 = vmatprep.subr.mxu0 %v2608
        %2859 = vmatpush1.msra.mxu0 %v2607
        %2860 = vmatprep.subr.mxu0 %v2604
        %2861 = vmatpush1.msra.mxu0 %v2603
        %2862 = vmatprep.subr.mxu0 %v2600
        %2863 = vmatpush1.msra.mxu0 %v2599
        %2864 = vmatprep.subr.mxu0 %v2596
        %2865 = vmatpush1.msra.mxu0 %v2595
        %2866 = vmatprep.subr.mxu0 %v2592
        %2867 = vmatpush1.msra.mxu0 %v2591
        %2868 = vmatprep.subr.mxu0 %v2716
        %2869 = vmatpush2.msra.mxu0 %v2715
        %2870 = vmatprep.subr.mxu0 %v2712
        %2871 = vmatpush2.msra.mxu0 %v2711
        %2872 = vmatprep.subr.mxu0 %v2708
        %2873 = vmatpush2.msra.mxu0 %v2707
        %2874 = vmatprep.subr.mxu0 %v2704
        %2875 = vmatpush2.msra.mxu0 %v2703
        %2876 = vmatprep.subr.mxu0 %v2700
        %2877 = vmatpush2.msra.mxu0 %v2699
        %2878 = vmatprep.subr.mxu0 %v2696
        %2879 = vmatpush2.msra.mxu0 %v2695
        %2880 = vmatprep.subr.mxu0 %v2692
        %2881 = vmatpush2.msra.mxu0 %v2691
        %2882 = vmatprep.subr.mxu0 %v2688
        %2883 = vmatpush2.msra.mxu0 %v2687
        %2884 = vmatprep.subr.mxu0 %v2684
        %2885 = vmatpush2.msra.mxu0 %v2683
        %2886 = vmatprep.subr.mxu0 %v2680
        %2887 = vmatpush2.msra.mxu0 %v2679
        %2888 = vmatprep.subr.mxu0 %v2676
        %2889 = vmatpush2.msra.mxu0 %v2675
        %2890 = vmatprep.subr.mxu0 %v2672
        %2891 = vmatpush2.msra.mxu0 %v2671
        %2892 = vmatprep.subr.mxu0 %v2668
        %2893 = vmatpush2.msra.mxu0 %v2667
        %2894 = vmatprep.subr.mxu0 %v2664
        %2895 = vmatpush2.msra.mxu0 %v2663
        %2896 = vmatprep.subr.mxu0 %v2660
        %2897 = vmatpush2.msra.mxu0 %v2659
        %2898 = vmatprep.subr.mxu0 %v2656
        %2899 = vmatpush2.msra.mxu0 %v2655
        %2900 = vmatprep.mubr.f32.mxu0 %v2742
        %2901 = vmatmul.mubr.f32.gmra.mxu0 %v2739
        %v2902 = vpop.f32.mrf.mxu0
        %v2903 = vadd.f32 %v2826, %v2902
        %v2904 = vpop.f32.mrf.mxu0
        %v2905 = vadd.f32 %v2828, %v2904
        %2906 = vmatprep.mubr.f32.mxu0 %v2750
        %2907 = vmatmul.mubr.f32.gmra.mxu0 %v2748
        %v2908 = vpop.f32.mrf.mxu0
        %v2909 = vadd.f32 %v2832, %v2908
        %v2910 = vpop.f32.mrf.mxu0
        %v2911 = vadd.f32 %v2834, %v2910
        %2912 = vdwg.mxu0
        %2913 = vmatprep.subr.mxu0 %v2526
        %2914 = vmatpush1.msra.mxu0 %v2525
        %2915 = vmatprep.subr.mxu0 %v2522
        %2916 = vmatpush1.msra.mxu0 %v2521
        %2917 = vmatprep.subr.mxu0 %v2518
        %2918 = vmatpush1.msra.mxu0 %v2517
        %2919 = vmatprep.subr.mxu0 %v2514
        %2920 = vmatpush1.msra.mxu0 %v2513
        %2921 = vmatprep.subr.mxu0 %v2510
        %2922 = vmatpush1.msra.mxu0 %v2509
        %2923 = vmatprep.subr.mxu0 %v2506
        %2924 = vmatpush1.msra.mxu0 %v2505
        %2925 = vmatprep.subr.mxu0 %v2502
        %2926 = vmatpush1.msra.mxu0 %v2501
        %2927 = vmatprep.subr.mxu0 %v2498
        %2928 = vmatpush1.msra.mxu0 %v2497
        %2929 = vmatprep.subr.mxu0 %v2494
        %2930 = vmatpush1.msra.mxu0 %v2493
        %2931 = vmatprep.subr.mxu0 %v2490
        %2932 = vmatpush1.msra.mxu0 %v2489
        %2933 = vmatprep.subr.mxu0 %v2486
        %2934 = vmatpush1.msra.mxu0 %v2485
        %2935 = vmatprep.subr.mxu0 %v2482
        %2936 = vmatpush1.msra.mxu0 %v2481
        %2937 = vmatprep.subr.mxu0 %v2478
        %2938 = vmatpush1.msra.mxu0 %v2477
        %2939 = vmatprep.subr.mxu0 %v2474
        %2940 = vmatpush1.msra.mxu0 %v2473
        %2941 = vmatprep.subr.mxu0 %v2470
        %2942 = vmatpush1.msra.mxu0 %v2469
        %2943 = vmatprep.subr.mxu0 %v2466
        %2944 = vmatpush1.msra.mxu0 %v2465
        %2945 = vmatprep.subr.mxu0 %v2590
        %2946 = vmatpush2.msra.mxu0 %v2589
        %2947 = vmatprep.subr.mxu0 %v2586
        %2948 = vmatpush2.msra.mxu0 %v2585
        %2949 = vmatprep.subr.mxu0 %v2582
        %2950 = vmatpush2.msra.mxu0 %v2581
        %2951 = vmatprep.subr.mxu0 %v2578
        %2952 = vmatpush2.msra.mxu0 %v2577
        %2953 = vmatprep.subr.mxu0 %v2574
        %2954 = vmatpush2.msra.mxu0 %v2573
        %2955 = vmatprep.subr.mxu0 %v2570
        %2956 = vmatpush2.msra.mxu0 %v2569
        %2957 = vmatprep.subr.mxu0 %v2566
        %2958 = vmatpush2.msra.mxu0 %v2565
        %2959 = vmatprep.subr.mxu0 %v2562
        %2960 = vmatpush2.msra.mxu0 %v2561
        %2961 = vmatprep.subr.mxu0 %v2558
        %2962 = vmatpush2.msra.mxu0 %v2557
        %2963 = vmatprep.subr.mxu0 %v2554
        %2964 = vmatpush2.msra.mxu0 %v2553
        %2965 = vmatprep.subr.mxu0 %v2550
        %2966 = vmatpush2.msra.mxu0 %v2549
        %2967 = vmatprep.subr.mxu0 %v2546
        %2968 = vmatpush2.msra.mxu0 %v2545
        %2969 = vmatprep.subr.mxu0 %v2542
        %2970 = vmatpush2.msra.mxu0 %v2541
        %2971 = vmatprep.subr.mxu0 %v2538
        %2972 = vmatpush2.msra.mxu0 %v2537
        %2973 = vmatprep.subr.mxu0 %v2534
        %2974 = vmatpush2.msra.mxu0 %v2533
        %2975 = vmatprep.subr.mxu0 %v2530
        %2976 = vmatpush2.msra.mxu0 %v2529
        %2977 = vmatprep.mubr.f32.mxu0 %v2736
        %2978 = vmatmul.mubr.f32.gmra.mxu0 %v2733
        %v2979 = vpop.f32.mrf.mxu0
        %v2980 = vadd.f32 0.0, %v2979
        %v2981 = vpop.f32.mrf.mxu0
        %v2982 = vadd.f32 0.0, %v2981
        %2983 = vmatprep.mubr.f32.mxu0 %v2746
        %2984 = vmatmul.mubr.f32.gmra.mxu0 %v2744
        %v2985 = vpop.f32.mrf.mxu0
        %v2986 = vadd.f32 0.0, %v2985
        %v2987 = vpop.f32.mrf.mxu0
        %v2988 = vadd.f32 0.0, %v2987
        %2989 = vdwg.mxu0
        %2990 = vmatprep.subr.mxu0 %v2654
        %2991 = vmatpush1.msra.mxu0 %v2653
        %2992 = vmatprep.subr.mxu0 %v2650
        %2993 = vmatpush1.msra.mxu0 %v2649
        %2994 = vmatprep.subr.mxu0 %v2646
        %2995 = vmatpush1.msra.mxu0 %v2645
        %2996 = vmatprep.subr.mxu0 %v2642
        %2997 = vmatpush1.msra.mxu0 %v2641
        %2998 = vmatprep.subr.mxu0 %v2638
        %2999 = vmatpush1.msra.mxu0 %v2637
        %3000 = vmatprep.subr.mxu0 %v2634
        %3001 = vmatpush1.msra.mxu0 %v2633
        %3002 = vmatprep.subr.mxu0 %v2630
        %3003 = vmatpush1.msra.mxu0 %v2629
        %3004 = vmatprep.subr.mxu0 %v2626
        %3005 = vmatpush1.msra.mxu0 %v2625
        %3006 = vmatprep.subr.mxu0 %v2622
        %3007 = vmatpush1.msra.mxu0 %v2621
        %3008 = vmatprep.subr.mxu0 %v2618
        %3009 = vmatpush1.msra.mxu0 %v2617
        %3010 = vmatprep.subr.mxu0 %v2614
        %3011 = vmatpush1.msra.mxu0 %v2613
        %3012 = vmatprep.subr.mxu0 %v2610
        %3013 = vmatpush1.msra.mxu0 %v2609
        %3014 = vmatprep.subr.mxu0 %v2606
        %3015 = vmatpush1.msra.mxu0 %v2605
        %3016 = vmatprep.subr.mxu0 %v2602
        %3017 = vmatpush1.msra.mxu0 %v2601
        %3018 = vmatprep.subr.mxu0 %v2598
        %3019 = vmatpush1.msra.mxu0 %v2597
        %3020 = vmatprep.subr.mxu0 %v2594
        %3021 = vmatpush1.msra.mxu0 %v2593
        %3022 = vmatprep.subr.mxu0 %v2718
        %3023 = vmatpush2.msra.mxu0 %v2717
        %3024 = vmatprep.subr.mxu0 %v2714
        %3025 = vmatpush2.msra.mxu0 %v2713
        %3026 = vmatprep.subr.mxu0 %v2710
        %3027 = vmatpush2.msra.mxu0 %v2709
        %3028 = vmatprep.subr.mxu0 %v2706
        %3029 = vmatpush2.msra.mxu0 %v2705
        %3030 = vmatprep.subr.mxu0 %v2702
        %3031 = vmatpush2.msra.mxu0 %v2701
        %3032 = vmatprep.subr.mxu0 %v2698
        %3033 = vmatpush2.msra.mxu0 %v2697
        %3034 = vmatprep.subr.mxu0 %v2694
        %3035 = vmatpush2.msra.mxu0 %v2693
        %3036 = vmatprep.subr.mxu0 %v2690
        %3037 = vmatpush2.msra.mxu0 %v2689
        %3038 = vmatprep.subr.mxu0 %v2686
        %3039 = vmatpush2.msra.mxu0 %v2685
        %3040 = vmatprep.subr.mxu0 %v2682
        %3041 = vmatpush2.msra.mxu0 %v2681
        %3042 = vmatprep.subr.mxu0 %v2678
        %3043 = vmatpush2.msra.mxu0 %v2677
        %3044 = vmatprep.subr.mxu0 %v2674
        %3045 = vmatpush2.msra.mxu0 %v2673
        %3046 = vmatprep.subr.mxu0 %v2670
        %3047 = vmatpush2.msra.mxu0 %v2669
        %3048 = vmatprep.subr.mxu0 %v2666
        %3049 = vmatpush2.msra.mxu0 %v2665
        %3050 = vmatprep.subr.mxu0 %v2662
        %3051 = vmatpush2.msra.mxu0 %v2661
        %3052 = vmatprep.subr.mxu0 %v2658
        %3053 = vmatpush2.msra.mxu0 %v2657
        %3054 = vmatprep.mubr.f32.mxu0 %v2742
        %3055 = vmatmul.mubr.f32.gmra.mxu0 %v2739
        %v3056 = vpop.f32.mrf.mxu0
        %v3057 = vadd.f32 %v2980, %v3056
        %v3058 = vpop.f32.mrf.mxu0
        %v3059 = vadd.f32 %v2982, %v3058
        %3060 = vmatprep.mubr.f32.mxu0 %v2750
        %3061 = vmatmul.mubr.f32.gmra.mxu0 %v2748
        %v3062 = vpop.f32.mrf.mxu0
        %v3063 = vadd.f32 %v2986, %v3062
        %v3064 = vpop.f32.mrf.mxu0
        %v3065 = vadd.f32 %v2988, %v3064
        %3066 = vdwg.mxu0
        %3067 = vmatprep.subr.mxu0 %v2259
        %3068 = vmatpush1.msra.mxu0 %v2258
        %3069 = vmatprep.subr.mxu0 %v2255
        %3070 = vmatpush1.msra.mxu0 %v2254
        %3071 = vmatprep.subr.mxu0 %v2251
        %3072 = vmatpush1.msra.mxu0 %v2250
        %3073 = vmatprep.subr.mxu0 %v2247
        %3074 = vmatpush1.msra.mxu0 %v2246
        %3075 = vmatprep.subr.mxu0 %v2243
        %3076 = vmatpush1.msra.mxu0 %v2242
        %3077 = vmatprep.subr.mxu0 %v2239
        %3078 = vmatpush1.msra.mxu0 %v2238
        %3079 = vmatprep.subr.mxu0 %v2235
        %3080 = vmatpush1.msra.mxu0 %v2234
        %3081 = vmatprep.subr.mxu0 %v2231
        %3082 = vmatpush1.msra.mxu0 %v2230
        %3083 = vmatprep.subr.mxu0 %v2227
        %3084 = vmatpush1.msra.mxu0 %v2226
        %3085 = vmatprep.subr.mxu0 %v2223
        %3086 = vmatpush1.msra.mxu0 %v2222
        %3087 = vmatprep.subr.mxu0 %v2219
        %3088 = vmatpush1.msra.mxu0 %v2218
        %3089 = vmatprep.subr.mxu0 %v2215
        %3090 = vmatpush1.msra.mxu0 %v2214
        %3091 = vmatprep.subr.mxu0 %v2211
        %3092 = vmatpush1.msra.mxu0 %v2210
        %3093 = vmatprep.subr.mxu0 %v2207
        %3094 = vmatpush1.msra.mxu0 %v2206
        %3095 = vmatprep.subr.mxu0 %v2203
        %3096 = vmatpush1.msra.mxu0 %v2202
        %3097 = vmatprep.subr.mxu0 %v2199
        %3098 = vmatpush1.msra.mxu0 %v2198
        %3099 = vmatprep.subr.mxu0 %v2323
        %3100 = vmatpush2.msra.mxu0 %v2322
        %3101 = vmatprep.subr.mxu0 %v2319
        %3102 = vmatpush2.msra.mxu0 %v2318
        %3103 = vmatprep.subr.mxu0 %v2315
        %3104 = vmatpush2.msra.mxu0 %v2314
        %3105 = vmatprep.subr.mxu0 %v2311
        %3106 = vmatpush2.msra.mxu0 %v2310
        %3107 = vmatprep.subr.mxu0 %v2307
        %3108 = vmatpush2.msra.mxu0 %v2306
        %3109 = vmatprep.subr.mxu0 %v2303
        %3110 = vmatpush2.msra.mxu0 %v2302
        %3111 = vmatprep.subr.mxu0 %v2299
        %3112 = vmatpush2.msra.mxu0 %v2298
        %3113 = vmatprep.subr.mxu0 %v2295
        %3114 = vmatpush2.msra.mxu0 %v2294
        %3115 = vmatprep.subr.mxu0 %v2291
        %3116 = vmatpush2.msra.mxu0 %v2290
        %3117 = vmatprep.subr.mxu0 %v2287
        %3118 = vmatpush2.msra.mxu0 %v2286
        %3119 = vmatprep.subr.mxu0 %v2283
        %3120 = vmatpush2.msra.mxu0 %v2282
        %3121 = vmatprep.subr.mxu0 %v2279
        %3122 = vmatpush2.msra.mxu0 %v2278
        %3123 = vmatprep.subr.mxu0 %v2275
        %3124 = vmatpush2.msra.mxu0 %v2274
        %3125 = vmatprep.subr.mxu0 %v2271
        %3126 = vmatpush2.msra.mxu0 %v2270
        %3127 = vmatprep.subr.mxu0 %v2267
        %3128 = vmatpush2.msra.mxu0 %v2266
        %3129 = vmatprep.subr.mxu0 %v2263
        %3130 = vmatpush2.msra.mxu0 %v2262
        %3131 = vmatprep.mubr.f32.mxu0 %v2191
        %3132 = vmatmul.mubr.f32.gmra.mxu0 %v2190
        %v3133 = vpop.f32.mrf.mxu0
        %v3134 = vadd.f32 %v2903, %v3133
        %v3135 = vpop.f32.mrf.mxu0
        %v3136 = vadd.f32 %v2905, %v3135
        %3137 = vmatprep.mubr.f32.mxu0 %v2195
        %3138 = vmatmul.mubr.f32.gmra.mxu0 %v2194
        %v3139 = vpop.f32.mrf.mxu0
        %v3140 = vadd.f32 %v2909, %v3139
        %v3141 = vpop.f32.mrf.mxu0
        %v3142 = vadd.f32 %v2911, %v3141
        %3143 = vdwg.mxu0
        %3144 = vmatprep.subr.mxu0 %v2387
        %3145 = vmatpush1.msra.mxu0 %v2386
        %3146 = vmatprep.subr.mxu0 %v2383
        %3147 = vmatpush1.msra.mxu0 %v2382
        %3148 = vmatprep.subr.mxu0 %v2379
        %3149 = vmatpush1.msra.mxu0 %v2378
        %3150 = vmatprep.subr.mxu0 %v2375
        %3151 = vmatpush1.msra.mxu0 %v2374
        %3152 = vmatprep.subr.mxu0 %v2371
        %3153 = vmatpush1.msra.mxu0 %v2370
        %3154 = vmatprep.subr.mxu0 %v2367
        %3155 = vmatpush1.msra.mxu0 %v2366
        %3156 = vmatprep.subr.mxu0 %v2363
        %3157 = vmatpush1.msra.mxu0 %v2362
        %3158 = vmatprep.subr.mxu0 %v2359
        %3159 = vmatpush1.msra.mxu0 %v2358
        %3160 = vmatprep.subr.mxu0 %v2355
        %3161 = vmatpush1.msra.mxu0 %v2354
        %3162 = vmatprep.subr.mxu0 %v2351
        %3163 = vmatpush1.msra.mxu0 %v2350
        %3164 = vmatprep.subr.mxu0 %v2347
        %3165 = vmatpush1.msra.mxu0 %v2346
        %3166 = vmatprep.subr.mxu0 %v2343
        %3167 = vmatpush1.msra.mxu0 %v2342
        %3168 = vmatprep.subr.mxu0 %v2339
        %3169 = vmatpush1.msra.mxu0 %v2338
        %3170 = vmatprep.subr.mxu0 %v2335
        %3171 = vmatpush1.msra.mxu0 %v2334
        %3172 = vmatprep.subr.mxu0 %v2331
        %3173 = vmatpush1.msra.mxu0 %v2330
        %3174 = vmatprep.subr.mxu0 %v2327
        %3175 = vmatpush1.msra.mxu0 %v2326
        %3176 = vmatprep.subr.mxu0 %v2451
        %3177 = vmatpush2.msra.mxu0 %v2450
        %3178 = vmatprep.subr.mxu0 %v2447
        %3179 = vmatpush2.msra.mxu0 %v2446
        %3180 = vmatprep.subr.mxu0 %v2443
        %3181 = vmatpush2.msra.mxu0 %v2442
        %3182 = vmatprep.subr.mxu0 %v2439
        %3183 = vmatpush2.msra.mxu0 %v2438
        %3184 = vmatprep.subr.mxu0 %v2435
        %3185 = vmatpush2.msra.mxu0 %v2434
        %3186 = vmatprep.subr.mxu0 %v2431
        %3187 = vmatpush2.msra.mxu0 %v2430
        %3188 = vmatprep.subr.mxu0 %v2427
        %3189 = vmatpush2.msra.mxu0 %v2426
        %3190 = vmatprep.subr.mxu0 %v2423
        %3191 = vmatpush2.msra.mxu0 %v2422
        %3192 = vmatprep.subr.mxu0 %v2419
        %3193 = vmatpush2.msra.mxu0 %v2418
        %3194 = vmatprep.subr.mxu0 %v2415
        %3195 = vmatpush2.msra.mxu0 %v2414
        %3196 = vmatprep.subr.mxu0 %v2411
        %3197 = vmatpush2.msra.mxu0 %v2410
        %3198 = vmatprep.subr.mxu0 %v2407
        %3199 = vmatpush2.msra.mxu0 %v2406
        %3200 = vmatprep.subr.mxu0 %v2403
        %3201 = vmatpush2.msra.mxu0 %v2402
        %3202 = vmatprep.subr.mxu0 %v2399
        %3203 = vmatpush2.msra.mxu0 %v2398
        %3204 = vmatprep.subr.mxu0 %v2395
        %3205 = vmatpush2.msra.mxu0 %v2394
        %3206 = vmatprep.subr.mxu0 %v2391
        %3207 = vmatpush2.msra.mxu0 %v2390
        %3208 = vmatprep.mubr.f32.mxu0 %v2193
        %3209 = vmatmul.mubr.f32.gmra.mxu0 %v2192
        %v3210 = vpop.f32.mrf.mxu0
        %v3211 = vadd.f32 %v3134, %v3210
        %v3212 = vpop.f32.mrf.mxu0
        %v3213 = vadd.f32 %v3136, %v3212
        %3214 = vmatprep.mubr.f32.mxu0 %v2197
        %3215 = vmatmul.mubr.f32.gmra.mxu0 %v2196
        %v3216 = vpop.f32.mrf.mxu0
        %v3217 = vadd.f32 %v3140, %v3216
        %v3218 = vpop.f32.mrf.mxu0
        %v3219 = vadd.f32 %v3142, %v3218
        %3220 = vdwg.mxu0
        %3221 = vmatprep.subr.mxu0 %v2261
        %3222 = vmatpush1.msra.mxu0 %v2260
        %3223 = vmatprep.subr.mxu0 %v2257
        %3224 = vmatpush1.msra.mxu0 %v2256
        %3225 = vmatprep.subr.mxu0 %v2253
        %3226 = vmatpush1.msra.mxu0 %v2252
        %3227 = vmatprep.subr.mxu0 %v2249
        %3228 = vmatpush1.msra.mxu0 %v2248
        %3229 = vmatprep.subr.mxu0 %v2245
        %3230 = vmatpush1.msra.mxu0 %v2244
        %3231 = vmatprep.subr.mxu0 %v2241
        %3232 = vmatpush1.msra.mxu0 %v2240
        %3233 = vmatprep.subr.mxu0 %v2237
        %3234 = vmatpush1.msra.mxu0 %v2236
        %3235 = vmatprep.subr.mxu0 %v2233
        %3236 = vmatpush1.msra.mxu0 %v2232
        %3237 = vmatprep.subr.mxu0 %v2229
        %3238 = vmatpush1.msra.mxu0 %v2228
        %3239 = vmatprep.subr.mxu0 %v2225
        %3240 = vmatpush1.msra.mxu0 %v2224
        %3241 = vmatprep.subr.mxu0 %v2221
        %3242 = vmatpush1.msra.mxu0 %v2220
        %3243 = vmatprep.subr.mxu0 %v2217
        %3244 = vmatpush1.msra.mxu0 %v2216
        %3245 = vmatprep.subr.mxu0 %v2213
        %3246 = vmatpush1.msra.mxu0 %v2212
        %3247 = vmatprep.subr.mxu0 %v2209
        %3248 = vmatpush1.msra.mxu0 %v2208
        %3249 = vmatprep.subr.mxu0 %v2205
        %3250 = vmatpush1.msra.mxu0 %v2204
        %3251 = vmatprep.subr.mxu0 %v2201
        %3252 = vmatpush1.msra.mxu0 %v2200
        %3253 = vmatprep.subr.mxu0 %v2325
        %3254 = vmatpush2.msra.mxu0 %v2324
        %3255 = vmatprep.subr.mxu0 %v2321
        %3256 = vmatpush2.msra.mxu0 %v2320
        %3257 = vmatprep.subr.mxu0 %v2317
        %3258 = vmatpush2.msra.mxu0 %v2316
        %3259 = vmatprep.subr.mxu0 %v2313
        %3260 = vmatpush2.msra.mxu0 %v2312
        %3261 = vmatprep.subr.mxu0 %v2309
        %3262 = vmatpush2.msra.mxu0 %v2308
        %3263 = vmatprep.subr.mxu0 %v2305
        %3264 = vmatpush2.msra.mxu0 %v2304
        %3265 = vmatprep.subr.mxu0 %v2301
        %3266 = vmatpush2.msra.mxu0 %v2300
        %3267 = vmatprep.subr.mxu0 %v2297
        %3268 = vmatpush2.msra.mxu0 %v2296
        %3269 = vmatprep.subr.mxu0 %v2293
        %3270 = vmatpush2.msra.mxu0 %v2292
        %3271 = vmatprep.subr.mxu0 %v2289
        %3272 = vmatpush2.msra.mxu0 %v2288
        %3273 = vmatprep.subr.mxu0 %v2285
        %3274 = vmatpush2.msra.mxu0 %v2284
        %3275 = vmatprep.subr.mxu0 %v2281
        %3276 = vmatpush2.msra.mxu0 %v2280
        %3277 = vmatprep.subr.mxu0 %v2277
        %3278 = vmatpush2.msra.mxu0 %v2276
        %3279 = vmatprep.subr.mxu0 %v2273
        %3280 = vmatpush2.msra.mxu0 %v2272
        %3281 = vmatprep.subr.mxu0 %v2269
        %3282 = vmatpush2.msra.mxu0 %v2268
        %3283 = vmatprep.subr.mxu0 %v2265
        %3284 = vmatpush2.msra.mxu0 %v2264
        %3285 = vmatprep.mubr.f32.mxu0 %v2191
        %3286 = vmatmul.mubr.f32.gmra.mxu0 %v2190
        %v3287 = vpop.f32.mrf.mxu0
        %v3288 = vadd.f32 %v3057, %v3287
        %v3289 = vpop.f32.mrf.mxu0
        %v3290 = vadd.f32 %v3059, %v3289
        %3291 = vmatprep.mubr.f32.mxu0 %v2195
        %3292 = vmatmul.mubr.f32.gmra.mxu0 %v2194
        %v3293 = vpop.f32.mrf.mxu0
        %v3294 = vadd.f32 %v3063, %v3293
        %v3295 = vpop.f32.mrf.mxu0
        %v3296 = vadd.f32 %v3065, %v3295
        %3297 = vdwg.mxu0
        %3298 = vmatprep.subr.mxu0 %v2389
        %3299 = vmatpush1.msra.mxu0 %v2388
        %3300 = vmatprep.subr.mxu0 %v2385
        %3301 = vmatpush1.msra.mxu0 %v2384
        %3302 = vmatprep.subr.mxu0 %v2381
        %3303 = vmatpush1.msra.mxu0 %v2380
        %3304 = vmatprep.subr.mxu0 %v2377
        %3305 = vmatpush1.msra.mxu0 %v2376
        %3306 = vmatprep.subr.mxu0 %v2373
        %3307 = vmatpush1.msra.mxu0 %v2372
        %3308 = vmatprep.subr.mxu0 %v2369
        %3309 = vmatpush1.msra.mxu0 %v2368
        %3310 = vmatprep.subr.mxu0 %v2365
        %3311 = vmatpush1.msra.mxu0 %v2364
        %3312 = vmatprep.subr.mxu0 %v2361
        %3313 = vmatpush1.msra.mxu0 %v2360
        %3314 = vmatprep.subr.mxu0 %v2357
        %3315 = vmatpush1.msra.mxu0 %v2356
        %3316 = vmatprep.subr.mxu0 %v2353
        %3317 = vmatpush1.msra.mxu0 %v2352
        %3318 = vmatprep.subr.mxu0 %v2349
        %3319 = vmatpush1.msra.mxu0 %v2348
        %3320 = vmatprep.subr.mxu0 %v2345
        %3321 = vmatpush1.msra.mxu0 %v2344
        %3322 = vmatprep.subr.mxu0 %v2341
        %3323 = vmatpush1.msra.mxu0 %v2340
        %3324 = vmatprep.subr.mxu0 %v2337
        %3325 = vmatpush1.msra.mxu0 %v2336
        %3326 = vmatprep.subr.mxu0 %v2333
        %3327 = vmatpush1.msra.mxu0 %v2332
        %3328 = vmatprep.subr.mxu0 %v2329
        %3329 = vmatpush1.msra.mxu0 %v2328
        %3330 = vmatprep.subr.mxu0 %v2453
        %3331 = vmatpush2.msra.mxu0 %v2452
        %3332 = vmatprep.subr.mxu0 %v2449
        %3333 = vmatpush2.msra.mxu0 %v2448
        %3334 = vmatprep.subr.mxu0 %v2445
        %3335 = vmatpush2.msra.mxu0 %v2444
        %3336 = vmatprep.subr.mxu0 %v2441
        %3337 = vmatpush2.msra.mxu0 %v2440
        %3338 = vmatprep.subr.mxu0 %v2437
        %3339 = vmatpush2.msra.mxu0 %v2436
        %3340 = vmatprep.subr.mxu0 %v2433
        %3341 = vmatpush2.msra.mxu0 %v2432
        %3342 = vmatprep.subr.mxu0 %v2429
        %3343 = vmatpush2.msra.mxu0 %v2428
        %3344 = vmatprep.subr.mxu0 %v2425
        %3345 = vmatpush2.msra.mxu0 %v2424
        %3346 = vmatprep.subr.mxu0 %v2421
        %3347 = vmatpush2.msra.mxu0 %v2420
        %3348 = vmatprep.subr.mxu0 %v2417
        %3349 = vmatpush2.msra.mxu0 %v2416
        %3350 = vmatprep.subr.mxu0 %v2413
        %3351 = vmatpush2.msra.mxu0 %v2412
        %3352 = vmatprep.subr.mxu0 %v2409
        %3353 = vmatpush2.msra.mxu0 %v2408
        %3354 = vmatprep.subr.mxu0 %v2405
        %3355 = vmatpush2.msra.mxu0 %v2404
        %3356 = vmatprep.subr.mxu0 %v2401
        %3357 = vmatpush2.msra.mxu0 %v2400
        %3358 = vmatprep.subr.mxu0 %v2397
        %3359 = vmatpush2.msra.mxu0 %v2396
        %3360 = vmatprep.subr.mxu0 %v2393
        %3361 = vmatpush2.msra.mxu0 %v2392
        %3362 = vmatprep.mubr.f32.mxu0 %v2193
        %3363 = vmatmul.mubr.f32.gmra.mxu0 %v2192
        %v3364 = vpop.f32.mrf.mxu0
        %v3365 = vadd.f32 %v3288, %v3364
        %v3366 = vpop.f32.mrf.mxu0
        %v3367 = vadd.f32 %v3290, %v3366
        %3368 = vmatprep.mubr.f32.mxu0 %v2197
        %3369 = vmatmul.mubr.f32.gmra.mxu0 %v2196
        %v3370 = vpop.f32.mrf.mxu0
        %v3371 = vadd.f32 %v3294, %v3370
        %v3372 = vpop.f32.mrf.mxu0
        %v3373 = vadd.f32 %v3296, %v3372
        %3374 = vdwg.mxu0
        %v3375 = vld [vmem:[#allocation2] sm:$0xfc]
        %v3376 = vld [vmem:[#allocation2 + $0x8] sm:$0xfc]
        %v3377 = vld [vmem:[#allocation2 + $0x10] sm:$0xfc]
        %v3378 = vld [vmem:[#allocation2 + $0x18] sm:$0xfc]
        %v3379 = vld [vmem:[#allocation2 + $0x40] sm:$0x3]
        %v3380 = vld [vmem:[#allocation2 + $0x48] sm:$0x3]
        %v3381 = vld [vmem:[#allocation2 + $0x50] sm:$0x3]
        %v3382 = vld [vmem:[#allocation2 + $0x58] sm:$0x3]
        %s3383 = scalar_lea.vmem [#allocation8], 4096
        %v3384 = vld [vmem:[%s3383] sm:$0xff]
        %v3385 = vld [vmem:[%s3383 + $0x8] sm:$0xff]
        %v3386 = vld [vmem:[%s3383 + $0x10] sm:$0xff]
        %v3387 = vld [vmem:[%s3383 + $0x18] sm:$0xff]
        %v3388 = vld [vmem:[%s3383 + $0x20] sm:$0xff]
        %v3389 = vld [vmem:[%s3383 + $0x28] sm:$0xff]
        %v3390 = vld [vmem:[%s3383 + $0x30] sm:$0xff]
        %v3391 = vld [vmem:[%s3383 + $0x38] sm:$0xff]
        %v3392 = vld [vmem:[%s3383 + $0x40] sm:$0xff]
        %v3393 = vld [vmem:[%s3383 + $0x48] sm:$0xff]
        %v3394 = vld [vmem:[%s3383 + $0x50] sm:$0xff]
        %v3395 = vld [vmem:[%s3383 + $0x58] sm:$0xff]
        %v3396 = vld [vmem:[%s3383 + $0x60] sm:$0xff]
        %v3397 = vld [vmem:[%s3383 + $0x68] sm:$0xff]
        %v3398 = vld [vmem:[%s3383 + $0x70] sm:$0xff]
        %v3399 = vld [vmem:[%s3383 + $0x78] sm:$0xff]
        %v3400 = vld [vmem:[%s3383 + $0x80] sm:$0xff]
        %v3401 = vld [vmem:[%s3383 + $0x88] sm:$0xff]
        %v3402 = vld [vmem:[%s3383 + $0x90] sm:$0xff]
        %v3403 = vld [vmem:[%s3383 + $0x98] sm:$0xff]
        %v3404 = vld [vmem:[%s3383 + $0xa0] sm:$0xff]
        %v3405 = vld [vmem:[%s3383 + $0xa8] sm:$0xff]
        %v3406 = vld [vmem:[%s3383 + $0xb0] sm:$0xff]
        %v3407 = vld [vmem:[%s3383 + $0xb8] sm:$0xff]
        %v3408 = vld [vmem:[%s3383 + $0xc0] sm:$0xff]
        %v3409 = vld [vmem:[%s3383 + $0xc8] sm:$0xff]
        %v3410 = vld [vmem:[%s3383 + $0xd0] sm:$0xff]
        %v3411 = vld [vmem:[%s3383 + $0xd8] sm:$0xff]
        %v3412 = vld [vmem:[%s3383 + $0xe0] sm:$0xff]
        %v3413 = vld [vmem:[%s3383 + $0xe8] sm:$0xff]
        %v3414 = vld [vmem:[%s3383 + $0xf0] sm:$0xff]
        %v3415 = vld [vmem:[%s3383 + $0xf8] sm:$0xff]
        %v3416 = vld [vmem:[%s3383 + $0x100] sm:$0xff]
        %v3417 = vld [vmem:[%s3383 + $0x108] sm:$0xff]
        %v3418 = vld [vmem:[%s3383 + $0x110] sm:$0xff]
        %v3419 = vld [vmem:[%s3383 + $0x118] sm:$0xff]
        %v3420 = vld [vmem:[%s3383 + $0x120] sm:$0xff]
        %v3421 = vld [vmem:[%s3383 + $0x128] sm:$0xff]
        %v3422 = vld [vmem:[%s3383 + $0x130] sm:$0xff]
        %v3423 = vld [vmem:[%s3383 + $0x138] sm:$0xff]
        %v3424 = vld [vmem:[%s3383 + $0x140] sm:$0xff]
        %v3425 = vld [vmem:[%s3383 + $0x148] sm:$0xff]
        %v3426 = vld [vmem:[%s3383 + $0x150] sm:$0xff]
        %v3427 = vld [vmem:[%s3383 + $0x158] sm:$0xff]
        %v3428 = vld [vmem:[%s3383 + $0x160] sm:$0xff]
        %v3429 = vld [vmem:[%s3383 + $0x168] sm:$0xff]
        %v3430 = vld [vmem:[%s3383 + $0x170] sm:$0xff]
        %v3431 = vld [vmem:[%s3383 + $0x178] sm:$0xff]
        %v3432 = vld [vmem:[%s3383 + $0x180] sm:$0xff]
        %v3433 = vld [vmem:[%s3383 + $0x188] sm:$0xff]
        %v3434 = vld [vmem:[%s3383 + $0x190] sm:$0xff]
        %v3435 = vld [vmem:[%s3383 + $0x198] sm:$0xff]
        %v3436 = vld [vmem:[%s3383 + $0x1a0] sm:$0xff]
        %v3437 = vld [vmem:[%s3383 + $0x1a8] sm:$0xff]
        %v3438 = vld [vmem:[%s3383 + $0x1b0] sm:$0xff]
        %v3439 = vld [vmem:[%s3383 + $0x1b8] sm:$0xff]
        %v3440 = vld [vmem:[%s3383 + $0x1c0] sm:$0xff]
        %v3441 = vld [vmem:[%s3383 + $0x1c8] sm:$0xff]
        %v3442 = vld [vmem:[%s3383 + $0x1d0] sm:$0xff]
        %v3443 = vld [vmem:[%s3383 + $0x1d8] sm:$0xff]
        %v3444 = vld [vmem:[%s3383 + $0x1e0] sm:$0xff]
        %v3445 = vld [vmem:[%s3383 + $0x1e8] sm:$0xff]
        %v3446 = vld [vmem:[%s3383 + $0x1f0] sm:$0xff]
        %v3447 = vld [vmem:[%s3383 + $0x1f8] sm:$0xff]
        %v3448 = vld [vmem:[%s3383 + $0x200] sm:$0xff]
        %v3449 = vld [vmem:[%s3383 + $0x208] sm:$0xff]
        %v3450 = vld [vmem:[%s3383 + $0x210] sm:$0xff]
        %v3451 = vld [vmem:[%s3383 + $0x218] sm:$0xff]
        %v3452 = vld [vmem:[%s3383 + $0x220] sm:$0xff]
        %v3453 = vld [vmem:[%s3383 + $0x228] sm:$0xff]
        %v3454 = vld [vmem:[%s3383 + $0x230] sm:$0xff]
        %v3455 = vld [vmem:[%s3383 + $0x238] sm:$0xff]
        %v3456 = vld [vmem:[%s3383 + $0x240] sm:$0xff]
        %v3457 = vld [vmem:[%s3383 + $0x248] sm:$0xff]
        %v3458 = vld [vmem:[%s3383 + $0x250] sm:$0xff]
        %v3459 = vld [vmem:[%s3383 + $0x258] sm:$0xff]
        %v3460 = vld [vmem:[%s3383 + $0x260] sm:$0xff]
        %v3461 = vld [vmem:[%s3383 + $0x268] sm:$0xff]
        %v3462 = vld [vmem:[%s3383 + $0x270] sm:$0xff]
        %v3463 = vld [vmem:[%s3383 + $0x278] sm:$0xff]
        %v3464 = vld [vmem:[%s3383 + $0x280] sm:$0xff]
        %v3465 = vld [vmem:[%s3383 + $0x288] sm:$0xff]
        %v3466 = vld [vmem:[%s3383 + $0x290] sm:$0xff]
        %v3467 = vld [vmem:[%s3383 + $0x298] sm:$0xff]
        %v3468 = vld [vmem:[%s3383 + $0x2a0] sm:$0xff]
        %v3469 = vld [vmem:[%s3383 + $0x2a8] sm:$0xff]
        %v3470 = vld [vmem:[%s3383 + $0x2b0] sm:$0xff]
        %v3471 = vld [vmem:[%s3383 + $0x2b8] sm:$0xff]
        %v3472 = vld [vmem:[%s3383 + $0x2c0] sm:$0xff]
        %v3473 = vld [vmem:[%s3383 + $0x2c8] sm:$0xff]
        %v3474 = vld [vmem:[%s3383 + $0x2d0] sm:$0xff]
        %v3475 = vld [vmem:[%s3383 + $0x2d8] sm:$0xff]
        %v3476 = vld [vmem:[%s3383 + $0x2e0] sm:$0xff]
        %v3477 = vld [vmem:[%s3383 + $0x2e8] sm:$0xff]
        %v3478 = vld [vmem:[%s3383 + $0x2f0] sm:$0xff]
        %v3479 = vld [vmem:[%s3383 + $0x2f8] sm:$0xff]
        %v3480 = vld [vmem:[%s3383 + $0x300] sm:$0xff]
        %v3481 = vld [vmem:[%s3383 + $0x308] sm:$0xff]
        %v3482 = vld [vmem:[%s3383 + $0x310] sm:$0xff]
        %v3483 = vld [vmem:[%s3383 + $0x318] sm:$0xff]
        %v3484 = vld [vmem:[%s3383 + $0x320] sm:$0xff]
        %v3485 = vld [vmem:[%s3383 + $0x328] sm:$0xff]
        %v3486 = vld [vmem:[%s3383 + $0x330] sm:$0xff]
        %v3487 = vld [vmem:[%s3383 + $0x338] sm:$0xff]
        %v3488 = vld [vmem:[%s3383 + $0x340] sm:$0xff]
        %v3489 = vld [vmem:[%s3383 + $0x348] sm:$0xff]
        %v3490 = vld [vmem:[%s3383 + $0x350] sm:$0xff]
        %v3491 = vld [vmem:[%s3383 + $0x358] sm:$0xff]
        %v3492 = vld [vmem:[%s3383 + $0x360] sm:$0xff]
        %v3493 = vld [vmem:[%s3383 + $0x368] sm:$0xff]
        %v3494 = vld [vmem:[%s3383 + $0x370] sm:$0xff]
        %v3495 = vld [vmem:[%s3383 + $0x378] sm:$0xff]
        %v3496 = vld [vmem:[%s3383 + $0x380] sm:$0xff]
        %v3497 = vld [vmem:[%s3383 + $0x388] sm:$0xff]
        %v3498 = vld [vmem:[%s3383 + $0x390] sm:$0xff]
        %v3499 = vld [vmem:[%s3383 + $0x398] sm:$0xff]
        %v3500 = vld [vmem:[%s3383 + $0x3a0] sm:$0xff]
        %v3501 = vld [vmem:[%s3383 + $0x3a8] sm:$0xff]
        %v3502 = vld [vmem:[%s3383 + $0x3b0] sm:$0xff]
        %v3503 = vld [vmem:[%s3383 + $0x3b8] sm:$0xff]
        %v3504 = vld [vmem:[%s3383 + $0x3c0] sm:$0xff]
        %v3505 = vld [vmem:[%s3383 + $0x3c8] sm:$0xff]
        %v3506 = vld [vmem:[%s3383 + $0x3d0] sm:$0xff]
        %v3507 = vld [vmem:[%s3383 + $0x3d8] sm:$0xff]
        %v3508 = vld [vmem:[%s3383 + $0x3e0] sm:$0xff]
        %v3509 = vld [vmem:[%s3383 + $0x3e8] sm:$0xff]
        %v3510 = vld [vmem:[%s3383 + $0x3f0] sm:$0xff]
        %v3511 = vld [vmem:[%s3383 + $0x3f8] sm:$0xff]
        %v3512 = vld [vmem:[%s3383 + $0x400] sm:$0xff]
        %v3513 = vld [vmem:[%s3383 + $0x408] sm:$0xff]
        %v3514 = vld [vmem:[%s3383 + $0x410] sm:$0xff]
        %v3515 = vld [vmem:[%s3383 + $0x418] sm:$0xff]
        %v3516 = vld [vmem:[%s3383 + $0x420] sm:$0xff]
        %v3517 = vld [vmem:[%s3383 + $0x428] sm:$0xff]
        %v3518 = vld [vmem:[%s3383 + $0x430] sm:$0xff]
        %v3519 = vld [vmem:[%s3383 + $0x438] sm:$0xff]
        %v3520 = vld [vmem:[%s3383 + $0x440] sm:$0xff]
        %v3521 = vld [vmem:[%s3383 + $0x448] sm:$0xff]
        %v3522 = vld [vmem:[%s3383 + $0x450] sm:$0xff]
        %v3523 = vld [vmem:[%s3383 + $0x458] sm:$0xff]
        %v3524 = vld [vmem:[%s3383 + $0x460] sm:$0xff]
        %v3525 = vld [vmem:[%s3383 + $0x468] sm:$0xff]
        %v3526 = vld [vmem:[%s3383 + $0x470] sm:$0xff]
        %v3527 = vld [vmem:[%s3383 + $0x478] sm:$0xff]
        %v3528 = vld [vmem:[%s3383 + $0x480] sm:$0xff]
        %v3529 = vld [vmem:[%s3383 + $0x488] sm:$0xff]
        %v3530 = vld [vmem:[%s3383 + $0x490] sm:$0xff]
        %v3531 = vld [vmem:[%s3383 + $0x498] sm:$0xff]
        %v3532 = vld [vmem:[%s3383 + $0x4a0] sm:$0xff]
        %v3533 = vld [vmem:[%s3383 + $0x4a8] sm:$0xff]
        %v3534 = vld [vmem:[%s3383 + $0x4b0] sm:$0xff]
        %v3535 = vld [vmem:[%s3383 + $0x4b8] sm:$0xff]
        %v3536 = vld [vmem:[%s3383 + $0x4c0] sm:$0xff]
        %v3537 = vld [vmem:[%s3383 + $0x4c8] sm:$0xff]
        %v3538 = vld [vmem:[%s3383 + $0x4d0] sm:$0xff]
        %v3539 = vld [vmem:[%s3383 + $0x4d8] sm:$0xff]
        %v3540 = vld [vmem:[%s3383 + $0x4e0] sm:$0xff]
        %v3541 = vld [vmem:[%s3383 + $0x4e8] sm:$0xff]
        %v3542 = vld [vmem:[%s3383 + $0x4f0] sm:$0xff]
        %v3543 = vld [vmem:[%s3383 + $0x4f8] sm:$0xff]
        %v3544 = vld [vmem:[%s3383 + $0x500] sm:$0xff]
        %v3545 = vld [vmem:[%s3383 + $0x508] sm:$0xff]
        %v3546 = vld [vmem:[%s3383 + $0x510] sm:$0xff]
        %v3547 = vld [vmem:[%s3383 + $0x518] sm:$0xff]
        %v3548 = vld [vmem:[%s3383 + $0x520] sm:$0xff]
        %v3549 = vld [vmem:[%s3383 + $0x528] sm:$0xff]
        %v3550 = vld [vmem:[%s3383 + $0x530] sm:$0xff]
        %v3551 = vld [vmem:[%s3383 + $0x538] sm:$0xff]
        %v3552 = vld [vmem:[%s3383 + $0x540] sm:$0xff]
        %v3553 = vld [vmem:[%s3383 + $0x548] sm:$0xff]
        %v3554 = vld [vmem:[%s3383 + $0x550] sm:$0xff]
        %v3555 = vld [vmem:[%s3383 + $0x558] sm:$0xff]
        %v3556 = vld [vmem:[%s3383 + $0x560] sm:$0xff]
        %v3557 = vld [vmem:[%s3383 + $0x568] sm:$0xff]
        %v3558 = vld [vmem:[%s3383 + $0x570] sm:$0xff]
        %v3559 = vld [vmem:[%s3383 + $0x578] sm:$0xff]
        %v3560 = vld [vmem:[%s3383 + $0x580] sm:$0xff]
        %v3561 = vld [vmem:[%s3383 + $0x588] sm:$0xff]
        %v3562 = vld [vmem:[%s3383 + $0x590] sm:$0xff]
        %v3563 = vld [vmem:[%s3383 + $0x598] sm:$0xff]
        %v3564 = vld [vmem:[%s3383 + $0x5a0] sm:$0xff]
        %v3565 = vld [vmem:[%s3383 + $0x5a8] sm:$0xff]
        %v3566 = vld [vmem:[%s3383 + $0x5b0] sm:$0xff]
        %v3567 = vld [vmem:[%s3383 + $0x5b8] sm:$0xff]
        %v3568 = vld [vmem:[%s3383 + $0x5c0] sm:$0xff]
        %v3569 = vld [vmem:[%s3383 + $0x5c8] sm:$0xff]
        %v3570 = vld [vmem:[%s3383 + $0x5d0] sm:$0xff]
        %v3571 = vld [vmem:[%s3383 + $0x5d8] sm:$0xff]
        %v3572 = vld [vmem:[%s3383 + $0x5e0] sm:$0xff]
        %v3573 = vld [vmem:[%s3383 + $0x5e8] sm:$0xff]
        %v3574 = vld [vmem:[%s3383 + $0x5f0] sm:$0xff]
        %v3575 = vld [vmem:[%s3383 + $0x5f8] sm:$0xff]
        %v3576 = vld [vmem:[%s3383 + $0x600] sm:$0xff]
        %v3577 = vld [vmem:[%s3383 + $0x608] sm:$0xff]
        %v3578 = vld [vmem:[%s3383 + $0x610] sm:$0xff]
        %v3579 = vld [vmem:[%s3383 + $0x618] sm:$0xff]
        %v3580 = vld [vmem:[%s3383 + $0x620] sm:$0xff]
        %v3581 = vld [vmem:[%s3383 + $0x628] sm:$0xff]
        %v3582 = vld [vmem:[%s3383 + $0x630] sm:$0xff]
        %v3583 = vld [vmem:[%s3383 + $0x638] sm:$0xff]
        %v3584 = vld [vmem:[%s3383 + $0x640] sm:$0xff]
        %v3585 = vld [vmem:[%s3383 + $0x648] sm:$0xff]
        %v3586 = vld [vmem:[%s3383 + $0x650] sm:$0xff]
        %v3587 = vld [vmem:[%s3383 + $0x658] sm:$0xff]
        %v3588 = vld [vmem:[%s3383 + $0x660] sm:$0xff]
        %v3589 = vld [vmem:[%s3383 + $0x668] sm:$0xff]
        %v3590 = vld [vmem:[%s3383 + $0x670] sm:$0xff]
        %v3591 = vld [vmem:[%s3383 + $0x678] sm:$0xff]
        %v3592 = vld [vmem:[%s3383 + $0x680] sm:$0xff]
        %v3593 = vld [vmem:[%s3383 + $0x688] sm:$0xff]
        %v3594 = vld [vmem:[%s3383 + $0x690] sm:$0xff]
        %v3595 = vld [vmem:[%s3383 + $0x698] sm:$0xff]
        %v3596 = vld [vmem:[%s3383 + $0x6a0] sm:$0xff]
        %v3597 = vld [vmem:[%s3383 + $0x6a8] sm:$0xff]
        %v3598 = vld [vmem:[%s3383 + $0x6b0] sm:$0xff]
        %v3599 = vld [vmem:[%s3383 + $0x6b8] sm:$0xff]
        %v3600 = vld [vmem:[%s3383 + $0x6c0] sm:$0xff]
        %v3601 = vld [vmem:[%s3383 + $0x6c8] sm:$0xff]
        %v3602 = vld [vmem:[%s3383 + $0x6d0] sm:$0xff]
        %v3603 = vld [vmem:[%s3383 + $0x6d8] sm:$0xff]
        %v3604 = vld [vmem:[%s3383 + $0x6e0] sm:$0xff]
        %v3605 = vld [vmem:[%s3383 + $0x6e8] sm:$0xff]
        %v3606 = vld [vmem:[%s3383 + $0x6f0] sm:$0xff]
        %v3607 = vld [vmem:[%s3383 + $0x6f8] sm:$0xff]
        %v3608 = vld [vmem:[%s3383 + $0x700] sm:$0xff]
        %v3609 = vld [vmem:[%s3383 + $0x708] sm:$0xff]
        %v3610 = vld [vmem:[%s3383 + $0x710] sm:$0xff]
        %v3611 = vld [vmem:[%s3383 + $0x718] sm:$0xff]
        %v3612 = vld [vmem:[%s3383 + $0x720] sm:$0xff]
        %v3613 = vld [vmem:[%s3383 + $0x728] sm:$0xff]
        %v3614 = vld [vmem:[%s3383 + $0x730] sm:$0xff]
        %v3615 = vld [vmem:[%s3383 + $0x738] sm:$0xff]
        %v3616 = vld [vmem:[%s3383 + $0x740] sm:$0xff]
        %v3617 = vld [vmem:[%s3383 + $0x748] sm:$0xff]
        %v3618 = vld [vmem:[%s3383 + $0x750] sm:$0xff]
        %v3619 = vld [vmem:[%s3383 + $0x758] sm:$0xff]
        %v3620 = vld [vmem:[%s3383 + $0x760] sm:$0xff]
        %v3621 = vld [vmem:[%s3383 + $0x768] sm:$0xff]
        %v3622 = vld [vmem:[%s3383 + $0x770] sm:$0xff]
        %v3623 = vld [vmem:[%s3383 + $0x778] sm:$0xff]
        %v3624 = vld [vmem:[%s3383 + $0x780] sm:$0xff]
        %v3625 = vld [vmem:[%s3383 + $0x788] sm:$0xff]
        %v3626 = vld [vmem:[%s3383 + $0x790] sm:$0xff]
        %v3627 = vld [vmem:[%s3383 + $0x798] sm:$0xff]
        %v3628 = vld [vmem:[%s3383 + $0x7a0] sm:$0xff]
        %v3629 = vld [vmem:[%s3383 + $0x7a8] sm:$0xff]
        %v3630 = vld [vmem:[%s3383 + $0x7b0] sm:$0xff]
        %v3631 = vld [vmem:[%s3383 + $0x7b8] sm:$0xff]
        %v3632 = vld [vmem:[%s3383 + $0x7c0] sm:$0xff]
        %v3633 = vld [vmem:[%s3383 + $0x7c8] sm:$0xff]
        %v3634 = vld [vmem:[%s3383 + $0x7d0] sm:$0xff]
        %v3635 = vld [vmem:[%s3383 + $0x7d8] sm:$0xff]
        %v3636 = vld [vmem:[%s3383 + $0x7e0] sm:$0xff]
        %v3637 = vld [vmem:[%s3383 + $0x7e8] sm:$0xff]
        %v3638 = vld [vmem:[%s3383 + $0x7f0] sm:$0xff]
        %v3639 = vld [vmem:[%s3383 + $0x7f8] sm:$0xff]
        %v3648 = vrot.slane %v3375, 2
        %v3649 = vrot.slane %v2194, 2
        %v3650 = vsel %vm1737, %v3648, %v3649
        %v3651 = vrot.slane %v3376, 2
        %v3652 = vrot.slane %v2195, 2
        %v3653 = vsel %vm1737, %v3651, %v3652
        %v3654 = vrot.slane %v3377, 2
        %v3655 = vrot.slane %v2196, 2
        %v3656 = vsel %vm1737, %v3654, %v3655
        %v3657 = vrot.slane %v3378, 2
        %v3658 = vrot.slane %v2197, 2
        %v3659 = vsel %vm1737, %v3657, %v3658
        %v3660 = vrot.slane %v3379, 2
        %v3661 = vsel %vm1737, %v3649, %v3660
        %v3662 = vrot.slane %v3380, 2
        %v3663 = vsel %vm1737, %v3652, %v3662
        %v3664 = vrot.slane %v3381, 2
        %v3665 = vsel %vm1737, %v3655, %v3664
        %v3666 = vrot.slane %v3382, 2
        %v3667 = vsel %vm1737, %v3658, %v3666
        %3676 = vmatprep.subr.mxu0 %v3445
        %3677 = vmatpush1.msra.mxu0 %v3444
        %3678 = vmatprep.subr.mxu0 %v3441
        %3679 = vmatpush1.msra.mxu0 %v3440
        %3680 = vmatprep.subr.mxu0 %v3437
        %3681 = vmatpush1.msra.mxu0 %v3436
        %3682 = vmatprep.subr.mxu0 %v3433
        %3683 = vmatpush1.msra.mxu0 %v3432
        %3684 = vmatprep.subr.mxu0 %v3429
        %3685 = vmatpush1.msra.mxu0 %v3428
        %3686 = vmatprep.subr.mxu0 %v3425
        %3687 = vmatpush1.msra.mxu0 %v3424
        %3688 = vmatprep.subr.mxu0 %v3421
        %3689 = vmatpush1.msra.mxu0 %v3420
        %3690 = vmatprep.subr.mxu0 %v3417
        %3691 = vmatpush1.msra.mxu0 %v3416
        %3692 = vmatprep.subr.mxu0 %v3413
        %3693 = vmatpush1.msra.mxu0 %v3412
        %3694 = vmatprep.subr.mxu0 %v3409
        %3695 = vmatpush1.msra.mxu0 %v3408
        %3696 = vmatprep.subr.mxu0 %v3405
        %3697 = vmatpush1.msra.mxu0 %v3404
        %3698 = vmatprep.subr.mxu0 %v3401
        %3699 = vmatpush1.msra.mxu0 %v3400
        %3700 = vmatprep.subr.mxu0 %v3397
        %3701 = vmatpush1.msra.mxu0 %v3396
        %3702 = vmatprep.subr.mxu0 %v3393
        %3703 = vmatpush1.msra.mxu0 %v3392
        %3704 = vmatprep.subr.mxu0 %v3389
        %3705 = vmatpush1.msra.mxu0 %v3388
        %3706 = vmatprep.subr.mxu0 %v3385
        %3707 = vmatpush1.msra.mxu0 %v3384
        %3708 = vmatprep.subr.mxu0 %v3509
        %3709 = vmatpush2.msra.mxu0 %v3508
        %3710 = vmatprep.subr.mxu0 %v3505
        %3711 = vmatpush2.msra.mxu0 %v3504
        %3712 = vmatprep.subr.mxu0 %v3501
        %3713 = vmatpush2.msra.mxu0 %v3500
        %3714 = vmatprep.subr.mxu0 %v3497
        %3715 = vmatpush2.msra.mxu0 %v3496
        %3716 = vmatprep.subr.mxu0 %v3493
        %3717 = vmatpush2.msra.mxu0 %v3492
        %3718 = vmatprep.subr.mxu0 %v3489
        %3719 = vmatpush2.msra.mxu0 %v3488
        %3720 = vmatprep.subr.mxu0 %v3485
        %3721 = vmatpush2.msra.mxu0 %v3484
        %3722 = vmatprep.subr.mxu0 %v3481
        %3723 = vmatpush2.msra.mxu0 %v3480
        %3724 = vmatprep.subr.mxu0 %v3477
        %3725 = vmatpush2.msra.mxu0 %v3476
        %3726 = vmatprep.subr.mxu0 %v3473
        %3727 = vmatpush2.msra.mxu0 %v3472
        %3728 = vmatprep.subr.mxu0 %v3469
        %3729 = vmatpush2.msra.mxu0 %v3468
        %3730 = vmatprep.subr.mxu0 %v3465
        %3731 = vmatpush2.msra.mxu0 %v3464
        %3732 = vmatprep.subr.mxu0 %v3461
        %3733 = vmatpush2.msra.mxu0 %v3460
        %3734 = vmatprep.subr.mxu0 %v3457
        %3735 = vmatpush2.msra.mxu0 %v3456
        %3736 = vmatprep.subr.mxu0 %v3453
        %3737 = vmatpush2.msra.mxu0 %v3452
        %3738 = vmatprep.subr.mxu0 %v3449
        %3739 = vmatpush2.msra.mxu0 %v3448
        %3740 = vmatprep.mubr.f32.mxu0 %v3653
        %3741 = vmatmul.mubr.f32.gmra.mxu0 %v3650
        %v3742 = vpop.f32.mrf.mxu0
        %v3743 = vadd.f32 0.0, %v3742
        %v3744 = vpop.f32.mrf.mxu0
        %v3745 = vadd.f32 0.0, %v3744
        %3746 = vmatprep.mubr.f32.mxu0 %v3663
        %3747 = vmatmul.mubr.f32.gmra.mxu0 %v3661
        %v3748 = vpop.f32.mrf.mxu0
        %v3749 = vadd.f32 0.0, %v3748
        %v3750 = vpop.f32.mrf.mxu0
        %v3751 = vadd.f32 0.0, %v3750
        %3752 = vdwg.mxu0
        %3753 = vmatprep.subr.mxu0 %v3573
        %3754 = vmatpush1.msra.mxu0 %v3572
        %3755 = vmatprep.subr.mxu0 %v3569
        %3756 = vmatpush1.msra.mxu0 %v3568
        %3757 = vmatprep.subr.mxu0 %v3565
        %3758 = vmatpush1.msra.mxu0 %v3564
        %3759 = vmatprep.subr.mxu0 %v3561
        %3760 = vmatpush1.msra.mxu0 %v3560
        %3761 = vmatprep.subr.mxu0 %v3557
        %3762 = vmatpush1.msra.mxu0 %v3556
        %3763 = vmatprep.subr.mxu0 %v3553
        %3764 = vmatpush1.msra.mxu0 %v3552
        %3765 = vmatprep.subr.mxu0 %v3549
        %3766 = vmatpush1.msra.mxu0 %v3548
        %3767 = vmatprep.subr.mxu0 %v3545
        %3768 = vmatpush1.msra.mxu0 %v3544
        %3769 = vmatprep.subr.mxu0 %v3541
        %3770 = vmatpush1.msra.mxu0 %v3540
        %3771 = vmatprep.subr.mxu0 %v3537
        %3772 = vmatpush1.msra.mxu0 %v3536
        %3773 = vmatprep.subr.mxu0 %v3533
        %3774 = vmatpush1.msra.mxu0 %v3532
        %3775 = vmatprep.subr.mxu0 %v3529
        %3776 = vmatpush1.msra.mxu0 %v3528
        %3777 = vmatprep.subr.mxu0 %v3525
        %3778 = vmatpush1.msra.mxu0 %v3524
        %3779 = vmatprep.subr.mxu0 %v3521
        %3780 = vmatpush1.msra.mxu0 %v3520
        %3781 = vmatprep.subr.mxu0 %v3517
        %3782 = vmatpush1.msra.mxu0 %v3516
        %3783 = vmatprep.subr.mxu0 %v3513
        %3784 = vmatpush1.msra.mxu0 %v3512
        %3785 = vmatprep.subr.mxu0 %v3637
        %3786 = vmatpush2.msra.mxu0 %v3636
        %3787 = vmatprep.subr.mxu0 %v3633
        %3788 = vmatpush2.msra.mxu0 %v3632
        %3789 = vmatprep.subr.mxu0 %v3629
        %3790 = vmatpush2.msra.mxu0 %v3628
        %3791 = vmatprep.subr.mxu0 %v3625
        %3792 = vmatpush2.msra.mxu0 %v3624
        %3793 = vmatprep.subr.mxu0 %v3621
        %3794 = vmatpush2.msra.mxu0 %v3620
        %3795 = vmatprep.subr.mxu0 %v3617
        %3796 = vmatpush2.msra.mxu0 %v3616
        %3797 = vmatprep.subr.mxu0 %v3613
        %3798 = vmatpush2.msra.mxu0 %v3612
        %3799 = vmatprep.subr.mxu0 %v3609
        %3800 = vmatpush2.msra.mxu0 %v3608
        %3801 = vmatprep.subr.mxu0 %v3605
        %3802 = vmatpush2.msra.mxu0 %v3604
        %3803 = vmatprep.subr.mxu0 %v3601
        %3804 = vmatpush2.msra.mxu0 %v3600
        %3805 = vmatprep.subr.mxu0 %v3597
        %3806 = vmatpush2.msra.mxu0 %v3596
        %3807 = vmatprep.subr.mxu0 %v3593
        %3808 = vmatpush2.msra.mxu0 %v3592
        %3809 = vmatprep.subr.mxu0 %v3589
        %3810 = vmatpush2.msra.mxu0 %v3588
        %3811 = vmatprep.subr.mxu0 %v3585
        %3812 = vmatpush2.msra.mxu0 %v3584
        %3813 = vmatprep.subr.mxu0 %v3581
        %3814 = vmatpush2.msra.mxu0 %v3580
        %3815 = vmatprep.subr.mxu0 %v3577
        %3816 = vmatpush2.msra.mxu0 %v3576
        %3817 = vmatprep.mubr.f32.mxu0 %v3659
        %3818 = vmatmul.mubr.f32.gmra.mxu0 %v3656
        %v3819 = vpop.f32.mrf.mxu0
        %v3820 = vadd.f32 %v3743, %v3819
        %v3821 = vpop.f32.mrf.mxu0
        %v3822 = vadd.f32 %v3745, %v3821
        %3823 = vmatprep.mubr.f32.mxu0 %v3667
        %3824 = vmatmul.mubr.f32.gmra.mxu0 %v3665
        %v3825 = vpop.f32.mrf.mxu0
        %v3826 = vadd.f32 %v3749, %v3825
        %v3827 = vpop.f32.mrf.mxu0
        %v3828 = vadd.f32 %v3751, %v3827
        %3829 = vdwg.mxu0
        %3830 = vmatprep.subr.mxu0 %v3447
        %3831 = vmatpush1.msra.mxu0 %v3446
        %3832 = vmatprep.subr.mxu0 %v3443
        %3833 = vmatpush1.msra.mxu0 %v3442
        %3834 = vmatprep.subr.mxu0 %v3439
        %3835 = vmatpush1.msra.mxu0 %v3438
        %3836 = vmatprep.subr.mxu0 %v3435
        %3837 = vmatpush1.msra.mxu0 %v3434
        %3838 = vmatprep.subr.mxu0 %v3431
        %3839 = vmatpush1.msra.mxu0 %v3430
        %3840 = vmatprep.subr.mxu0 %v3427
        %3841 = vmatpush1.msra.mxu0 %v3426
        %3842 = vmatprep.subr.mxu0 %v3423
        %3843 = vmatpush1.msra.mxu0 %v3422
        %3844 = vmatprep.subr.mxu0 %v3419
        %3845 = vmatpush1.msra.mxu0 %v3418
        %3846 = vmatprep.subr.mxu0 %v3415
        %3847 = vmatpush1.msra.mxu0 %v3414
        %3848 = vmatprep.subr.mxu0 %v3411
        %3849 = vmatpush1.msra.mxu0 %v3410
        %3850 = vmatprep.subr.mxu0 %v3407
        %3851 = vmatpush1.msra.mxu0 %v3406
        %3852 = vmatprep.subr.mxu0 %v3403
        %3853 = vmatpush1.msra.mxu0 %v3402
        %3854 = vmatprep.subr.mxu0 %v3399
        %3855 = vmatpush1.msra.mxu0 %v3398
        %3856 = vmatprep.subr.mxu0 %v3395
        %3857 = vmatpush1.msra.mxu0 %v3394
        %3858 = vmatprep.subr.mxu0 %v3391
        %3859 = vmatpush1.msra.mxu0 %v3390
        %3860 = vmatprep.subr.mxu0 %v3387
        %3861 = vmatpush1.msra.mxu0 %v3386
        %3862 = vmatprep.subr.mxu0 %v3511
        %3863 = vmatpush2.msra.mxu0 %v3510
        %3864 = vmatprep.subr.mxu0 %v3507
        %3865 = vmatpush2.msra.mxu0 %v3506
        %3866 = vmatprep.subr.mxu0 %v3503
        %3867 = vmatpush2.msra.mxu0 %v3502
        %3868 = vmatprep.subr.mxu0 %v3499
        %3869 = vmatpush2.msra.mxu0 %v3498
        %3870 = vmatprep.subr.mxu0 %v3495
        %3871 = vmatpush2.msra.mxu0 %v3494
        %3872 = vmatprep.subr.mxu0 %v3491
        %3873 = vmatpush2.msra.mxu0 %v3490
        %3874 = vmatprep.subr.mxu0 %v3487
        %3875 = vmatpush2.msra.mxu0 %v3486
        %3876 = vmatprep.subr.mxu0 %v3483
        %3877 = vmatpush2.msra.mxu0 %v3482
        %3878 = vmatprep.subr.mxu0 %v3479
        %3879 = vmatpush2.msra.mxu0 %v3478
        %3880 = vmatprep.subr.mxu0 %v3475
        %3881 = vmatpush2.msra.mxu0 %v3474
        %3882 = vmatprep.subr.mxu0 %v3471
        %3883 = vmatpush2.msra.mxu0 %v3470
        %3884 = vmatprep.subr.mxu0 %v3467
        %3885 = vmatpush2.msra.mxu0 %v3466
        %3886 = vmatprep.subr.mxu0 %v3463
        %3887 = vmatpush2.msra.mxu0 %v3462
        %3888 = vmatprep.subr.mxu0 %v3459
        %3889 = vmatpush2.msra.mxu0 %v3458
        %3890 = vmatprep.subr.mxu0 %v3455
        %3891 = vmatpush2.msra.mxu0 %v3454
        %3892 = vmatprep.subr.mxu0 %v3451
        %3893 = vmatpush2.msra.mxu0 %v3450
        %3894 = vmatprep.mubr.f32.mxu0 %v3653
        %3895 = vmatmul.mubr.f32.gmra.mxu0 %v3650
        %v3896 = vpop.f32.mrf.mxu0
        %v3897 = vadd.f32 0.0, %v3896
        %v3898 = vpop.f32.mrf.mxu0
        %v3899 = vadd.f32 0.0, %v3898
        %3900 = vmatprep.mubr.f32.mxu0 %v3663
        %3901 = vmatmul.mubr.f32.gmra.mxu0 %v3661
        %v3902 = vpop.f32.mrf.mxu0
        %v3903 = vadd.f32 0.0, %v3902
        %v3904 = vpop.f32.mrf.mxu0
        %v3905 = vadd.f32 0.0, %v3904
        %3906 = vdwg.mxu0
        %3907 = vmatprep.subr.mxu0 %v3575
        %3908 = vmatpush1.msra.mxu0 %v3574
        %3909 = vmatprep.subr.mxu0 %v3571
        %3910 = vmatpush1.msra.mxu0 %v3570
        %3911 = vmatprep.subr.mxu0 %v3567
        %3912 = vmatpush1.msra.mxu0 %v3566
        %3913 = vmatprep.subr.mxu0 %v3563
        %3914 = vmatpush1.msra.mxu0 %v3562
        %3915 = vmatprep.subr.mxu0 %v3559
        %3916 = vmatpush1.msra.mxu0 %v3558
        %3917 = vmatprep.subr.mxu0 %v3555
        %3918 = vmatpush1.msra.mxu0 %v3554
        %3919 = vmatprep.subr.mxu0 %v3551
        %3920 = vmatpush1.msra.mxu0 %v3550
        %3921 = vmatprep.subr.mxu0 %v3547
        %3922 = vmatpush1.msra.mxu0 %v3546
        %3923 = vmatprep.subr.mxu0 %v3543
        %3924 = vmatpush1.msra.mxu0 %v3542
        %3925 = vmatprep.subr.mxu0 %v3539
        %3926 = vmatpush1.msra.mxu0 %v3538
        %3927 = vmatprep.subr.mxu0 %v3535
        %3928 = vmatpush1.msra.mxu0 %v3534
        %3929 = vmatprep.subr.mxu0 %v3531
        %3930 = vmatpush1.msra.mxu0 %v3530
        %3931 = vmatprep.subr.mxu0 %v3527
        %3932 = vmatpush1.msra.mxu0 %v3526
        %3933 = vmatprep.subr.mxu0 %v3523
        %3934 = vmatpush1.msra.mxu0 %v3522
        %3935 = vmatprep.subr.mxu0 %v3519
        %3936 = vmatpush1.msra.mxu0 %v3518
        %3937 = vmatprep.subr.mxu0 %v3515
        %3938 = vmatpush1.msra.mxu0 %v3514
        %3939 = vmatprep.subr.mxu0 %v3639
        %3940 = vmatpush2.msra.mxu0 %v3638
        %3941 = vmatprep.subr.mxu0 %v3635
        %3942 = vmatpush2.msra.mxu0 %v3634
        %3943 = vmatprep.subr.mxu0 %v3631
        %3944 = vmatpush2.msra.mxu0 %v3630
        %3945 = vmatprep.subr.mxu0 %v3627
        %3946 = vmatpush2.msra.mxu0 %v3626
        %3947 = vmatprep.subr.mxu0 %v3623
        %3948 = vmatpush2.msra.mxu0 %v3622
        %3949 = vmatprep.subr.mxu0 %v3619
        %3950 = vmatpush2.msra.mxu0 %v3618
        %3951 = vmatprep.subr.mxu0 %v3615
        %3952 = vmatpush2.msra.mxu0 %v3614
        %3953 = vmatprep.subr.mxu0 %v3611
        %3954 = vmatpush2.msra.mxu0 %v3610
        %3955 = vmatprep.subr.mxu0 %v3607
        %3956 = vmatpush2.msra.mxu0 %v3606
        %3957 = vmatprep.subr.mxu0 %v3603
        %3958 = vmatpush2.msra.mxu0 %v3602
        %3959 = vmatprep.subr.mxu0 %v3599
        %3960 = vmatpush2.msra.mxu0 %v3598
        %3961 = vmatprep.subr.mxu0 %v3595
        %3962 = vmatpush2.msra.mxu0 %v3594
        %3963 = vmatprep.subr.mxu0 %v3591
        %3964 = vmatpush2.msra.mxu0 %v3590
        %3965 = vmatprep.subr.mxu0 %v3587
        %3966 = vmatpush2.msra.mxu0 %v3586
        %3967 = vmatprep.subr.mxu0 %v3583
        %3968 = vmatpush2.msra.mxu0 %v3582
        %3969 = vmatprep.subr.mxu0 %v3579
        %3970 = vmatpush2.msra.mxu0 %v3578
        %3971 = vmatprep.mubr.f32.mxu0 %v3659
        %3972 = vmatmul.mubr.f32.gmra.mxu0 %v3656
        %v3973 = vpop.f32.mrf.mxu0
        %v3974 = vadd.f32 %v3897, %v3973
        %v3975 = vpop.f32.mrf.mxu0
        %v3976 = vadd.f32 %v3899, %v3975
        %3977 = vmatprep.mubr.f32.mxu0 %v3667
        %3978 = vmatmul.mubr.f32.gmra.mxu0 %v3665
        %v3979 = vpop.f32.mrf.mxu0
        %v3980 = vadd.f32 %v3903, %v3979
        %v3981 = vpop.f32.mrf.mxu0
        %v3982 = vadd.f32 %v3905, %v3981
        %3983 = vdwg.mxu0
        %v3984 = vadd.f32 %v3211, %v3820
        %v3985 = vadd.f32 %v3213, %v3822
        %v3986 = vadd.f32 %v3365, %v3974
        %v3987 = vadd.f32 %v3367, %v3976
        %v3988 = vadd.f32 %v3217, %v3826
        %v3989 = vadd.f32 %v3219, %v3828
        %v3990 = vadd.f32 %v3371, %v3980
        %v3991 = vadd.f32 %v3373, %v3982
        %v3992 = vld [vmem:[#allocation9] sm:$0xf]
        %v3994 = vlaneseq
        %v3995 = vshrl.u32 %v3994, 7
        %v3996 = vsub.s32 0, %v3995
        %v3997 = vrot.slane %v3992, %v3996
        %v3998 = vlaneseq
        %v3999 = vshrl.u32 %v3998, 7
        %v4000 = vsub.s32 1, %v3999
        %v4001 = vrot.slane %v3992, %v4000
        %v4002 = vlaneseq
        %v4003 = vshrl.u32 %v4002, 7
        %v4004 = vsub.s32 2, %v4003
        %v4005 = vrot.slane %v3992, %v4004
        %v4006 = vlaneseq
        %v4007 = vshrl.u32 %v4006, 7
        %v4008 = vsub.s32 3, %v4007
        %v4009 = vrot.slane %v3992, %v4008
        %v4014 = vadd.f32 %v3984, %v3997
        %v4015 = vadd.f32 %v3985, %v4001
        %v4016 = vadd.f32 %v3986, %v4005
        %v4017 = vadd.f32 %v3987, %v4009
        %v4018 = vadd.f32 %v3988, %v3997
        %v4019 = vadd.f32 %v3989, %v4001
        %v4020 = vadd.f32 %v3990, %v4005
        %v4021 = vadd.f32 %v3991, %v4009
        %v4022 = vld [vmem:[%s277] sm:$0xfe]
        %v4023 = vld [vmem:[%s277 + $0x8] sm:$0xfe]
        %v4024 = vld [vmem:[%s277 + $0x10] sm:$0xfe]
        %v4025 = vld [vmem:[%s277 + $0x18] sm:$0xfe]
        %v4026 = vld [vmem:[%s277 + $0x20] sm:$0xff]
        %v4027 = vld [vmem:[%s277 + $0x28] sm:$0xff]
        %v4028 = vld [vmem:[%s277 + $0x30] sm:$0xff]
        %v4029 = vld [vmem:[%s277 + $0x38] sm:$0xff]
        %v4030 = vld [vmem:[%s277 + $0x40] sm:$0x1]
        %v4031 = vld [vmem:[%s277 + $0x48] sm:$0x1]
        %v4032 = vld [vmem:[%s277 + $0x50] sm:$0x1]
        %v4033 = vld [vmem:[%s277 + $0x58] sm:$0x1]
        %v4046 = vrot.slane %v4022, 1
        %v4047 = vrot.slane %v4026, 1
        %v4048 = vsel %vm819, %v4046, %v4047
        %v4049 = vrot.slane %v4023, 1
        %v4050 = vrot.slane %v4027, 1
        %v4051 = vsel %vm819, %v4049, %v4050
        %v4052 = vrot.slane %v4024, 1
        %v4053 = vrot.slane %v4028, 1
        %v4054 = vsel %vm819, %v4052, %v4053
        %v4055 = vrot.slane %v4025, 1
        %v4056 = vrot.slane %v4029, 1
        %v4057 = vsel %vm819, %v4055, %v4056
        %v4058 = vrot.slane %v4030, 1
        %v4059 = vsel %vm819, %v4047, %v4058
        %v4060 = vrot.slane %v4031, 1
        %v4061 = vsel %vm819, %v4050, %v4060
        %v4062 = vrot.slane %v4032, 1
        %v4063 = vsel %vm819, %v4053, %v4062
        %v4064 = vrot.slane %v4033, 1
        %v4065 = vsel %vm819, %v4056, %v4064
        %v4074 = vadd.f32 %v4014, %v4048
        %v4075 = vadd.f32 %v4015, %v4051
        %v4076 = vadd.f32 %v4016, %v4054
        %v4077 = vadd.f32 %v4017, %v4057
        %v4078 = vadd.f32 %v4018, %v4059
        %v4079 = vadd.f32 %v4019, %v4061
        %v4080 = vadd.f32 %v4020, %v4063
        %v4081 = vadd.f32 %v4021, %v4065
        %vm4082 = vcmp.gt.f32.partialorder %v4074, 0.0
        %vm4083 = vcmp.gt.f32.partialorder %v4075, 0.0
        %vm4084 = vcmp.gt.f32.partialorder %v4076, 0.0
        %vm4085 = vcmp.gt.f32.partialorder %v4077, 0.0
        %vm4086 = vcmp.gt.f32.partialorder %v4078, 0.0
        %vm4087 = vcmp.gt.f32.partialorder %v4079, 0.0
        %vm4088 = vcmp.gt.f32.partialorder %v4080, 0.0
        %vm4089 = vcmp.gt.f32.partialorder %v4081, 0.0
        %v4090 = vmul.f32 %v4074, 0.2
        %v4091 = vmul.f32 %v4075, 0.2
        %v4092 = vmul.f32 %v4076, 0.2
        %v4093 = vmul.f32 %v4077, 0.2
        %v4094 = vmul.f32 %v4078, 0.2
        %v4095 = vmul.f32 %v4079, 0.2
        %v4096 = vmul.f32 %v4080, 0.2
        %v4097 = vmul.f32 %v4081, 0.2
        %v4098 = vsel %vm4082, %v4074, %v4090
        %v4099 = vsel %vm4083, %v4075, %v4091
        %v4100 = vsel %vm4084, %v4076, %v4092
        %v4101 = vsel %vm4085, %v4077, %v4093
        %v4102 = vsel %vm4086, %v4078, %v4094
        %v4103 = vsel %vm4087, %v4079, %v4095
        %v4104 = vsel %vm4088, %v4080, %v4096
        %v4105 = vsel %vm4089, %v4081, %v4097
        %4106 = vst [vmem:[%s272] sm:$0xff] %v4098
        %4107 = vst [vmem:[%s272 + $0x8] sm:$0xff] %v4099
        %4108 = vst [vmem:[%s272 + $0x10] sm:$0xff] %v4100
        %4109 = vst [vmem:[%s272 + $0x18] sm:$0xff] %v4101
        %4110 = vst [vmem:[%s272 + $0x20] sm:$0xff] %v4102
        %4111 = vst [vmem:[%s272 + $0x28] sm:$0xff] %v4103
        %4112 = vst [vmem:[%s272 + $0x30] sm:$0xff] %v4104
        %4113 = vst [vmem:[%s272 + $0x38] sm:$0xff] %v4105
        %s4114 = sand.u32 %s140, 1
        %s4115 = scalar_lea.sflag [#allocation5], %s4114
        %s4116 = sand.u32 %s140, 1
        %s4117 = smul.addr %s4116, 64
        %s4118 = scalar_lea.vmem [#allocation11], %s4117
        // Predicated region
        $region57: #{tpu_custom_call.1} parent=39 // pred_check
          %p4119 = pneg %p150
        $region58: #{tpu_custom_call.1} parent=39 // pred_check_branch
          %4121 = sbr.rel (%p4119) target = $region60
        $region59: #{tpu_custom_call.1} parent=39 // pred_region
          %s4123 = ssub.s32 1024, 1024
          %4124 = vsyncadd %s4115, %s4123
          %s4125 = smul.addr %s22, 8
          %s4126 = smul.addr %s4125, 128
          %s4127 = scalar_lea.hbm %s5, %s4126
          %s4128 = sshll.u32 %s4118, 4
          %s4129 = int_to_ptr.vmem [resolvable:$true] %s4128
          %4134 = dma.vmem_to_hbm [thread:$0]  %s4129, 1024, %s4127, %s4115, 512, 512, 32
        $region60: #{tpu_custom_call.1} parent=39 // pred_fallthru
          _
      $region40: #{tpu_custom_call.1} parent=5 // pred_fallthru
        _
      %p4135 = scmp.le.s32.totalorder 2, %s17
      // Predicated region
      $region61: #{tpu_custom_call.1} parent=5 // pred_check
        %p4136 = pneg %p4135
      $region62: #{tpu_custom_call.1} parent=5 // pred_check_branch
        %4138 = sbr.rel (%p4136) target = $region64
      $region63: #{tpu_custom_call.1} parent=5 // pred_region
        %s4139 = ssub.s32 %s17, 2
        // Predicated region
        $region65: #{tpu_custom_call.1} parent=63 // pred_check
          %p4140 = pneg %p156
        $region66: #{tpu_custom_call.1} parent=63 // pred_check_branch
          %4142 = sbr.rel (%p4140) target = $region68
        $region67: #{tpu_custom_call.1} parent=63 // pred_region
          %s4143 = sand.u32 %s141, 1
          %s4144 = scalar_lea.sflag [#allocation5], %s4143
          %s4145 = sand.u32 %s141, 1
          %s4146 = smul.addr %s4145, 64
          %s4147 = scalar_lea.vmem [#allocation11], %s4146
          %4148 = dma.done %s4144, 1024
        $region68: #{tpu_custom_call.1} parent=63 // pred_fallthru
          _
      $region64: #{tpu_custom_call.1} parent=5 // pred_fallthru
        _
    $region6: #{tpu_custom_call.1} parent=1 // loop_footer
      %s21 = sadd.s32 1, %s17
    $region7: #{tpu_custom_call.1} parent=1 // loop_footer_branch
      %16 = sbr.rel target = $region3
    $region8: #{tpu_custom_call.1} parent=1 // loop_exit
      _
    %4149 = vsyncpa [#allocation4], 1
    %s4150 = scalar_lea.sflag [#allocation4], 1
    %4151 = vsyncpa %s4150, 1
    %4152 = vsyncpa [#allocation7], 1
    %4153 = vsyncpa [#allocation10], 1
    %4154 = vsyncpa [#allocation5], 1
    %s4155 = scalar_lea.sflag [#allocation5], 1
    %4156 = vsyncpa %s4155, 1

</llo_original>
